<compile_context>
chip_gen: v5e
topology: v5e:2x2
jax: 0.10.0
libtpu: 0.0.40
codegen_flags: <defaults>
</compile_context>

<pallas_src>
import functools
import math

import jax
import jax.numpy as jnp
from jax.experimental import pallas as pl
from jax.experimental.pallas import tpu as pltpu


VMEM_LIMIT = 48 * 1024 * 1024  # headroom below v7x's 64 MiB physical VMEM


# ----------------------------------------------------------------------------
# In-kernel helpers (f32 math)
# ----------------------------------------------------------------------------
def _layernorm_f32(x, g, b, eps=1e-5):
    mean = jnp.mean(x, axis=-1, keepdims=True)
    var = jnp.mean(jnp.square(x - mean), axis=-1, keepdims=True)
    return (x - mean) * jax.lax.rsqrt(var + eps) * g + b


def _gelu_new(x):
    # GPT-2 "gelu_new" (tanh approximation), f32.
    c = math.sqrt(2.0 / math.pi)
    return 0.5 * x * (1.0 + jnp.tanh(c * (x + 0.044715 * x * x * x)))


def _pick_tile(n, max_tile):
    """Largest power-of-two tile <= max_tile dividing n, preferring >=2 steps."""
    best = None
    t = max_tile
    while t >= 8:
        if t <= n and n % t == 0:
            if n // t >= 2:
                return t
            if best is None:
                best = t
        t //= 2
    return best if best is not None else n


def _const_spec(shape):
    """BlockSpec for an operand whose block is identical at every grid step.

    Single-buffered: re-fetching the same block gains no overlap, so double
    buffering it would only double its VMEM footprint.
    """
    nd = len(shape)
    return pl.BlockSpec(shape, lambda *_: (0,) * nd,
                        pipeline_mode=pl.Buffered(1))


# ----------------------------------------------------------------------------
# Kernel 1: LN1 + fused QKV projection (row-tiled).  q is pre-scaled by
# 1/sqrt(Dh) here (one cheap [tm,H] pass) instead of scaling [S,S] scores.
# ----------------------------------------------------------------------------
def _qkv_kernel(x_ref, g_ref, b_ref, w_ref, bias_ref, q_ref, k_ref, v_ref, *,
                n_head):
    x = x_ref[...].astype(jnp.float32)                     # [tm, H]
    H = x.shape[-1]
    scale = 1.0 / math.sqrt(H // n_head)
    a_in = _layernorm_f32(x, g_ref[...], b_ref[...])
    qkv = jnp.dot(a_in.astype(jnp.bfloat16), w_ref[...],
                  preferred_element_type=jnp.float32) + bias_ref[...]   # [tm,3H]
    q_ref[...] = (qkv[:, :H] * scale).astype(q_ref.dtype)
    k_ref[...] = qkv[:, H:2 * H].astype(k_ref.dtype)
    v_ref[...] = qkv[:, 2 * H:].astype(v_ref.dtype)


def qkv_proj(x2, ln1_g, ln1_b, w_qkv, b_qkv, *, n_head):
    """x2: [M, H] bf16. Returns (q, k, v) each [M, H] bf16 (q pre-scaled)."""
    M, H = x2.shape
    tm = _pick_tile(M, 256)
    out = jax.ShapeDtypeStruct((M, H), jnp.bfloat16)
    return pl.pallas_call(
        functools.partial(_qkv_kernel, n_head=n_head),
        out_shape=(out, out, out),
        grid=(M // tm,),
        in_specs=[
            pl.BlockSpec((tm, H), lambda i: (i, 0)),
            _const_spec((1, H)),
            _const_spec((1, H)),
            _const_spec((H, 3 * H)),
            _const_spec((1, 3 * H)),
        ],
        out_specs=(pl.BlockSpec((tm, H), lambda i: (i, 0)),) * 3,
        compiler_params=pltpu.CompilerParams(
            dimension_semantics=("parallel",),
            vmem_limit_bytes=VMEM_LIMIT),
    )(x2, ln1_g.reshape(1, H), ln1_b.reshape(1, H),
      w_qkv, b_qkv.reshape(1, 3 * H))


# ----------------------------------------------------------------------------
# Kernel 2: flash attention (online softmax over KV tiles) + output projection
# + residual add.  Grid = (batch [parallel], q-tiles [parallel], kv [arbitrary]).
# Per-head running state lives in VMEM scratch so only one head's [tq,tkv]
# score tile is live at a time.
# ----------------------------------------------------------------------------
def _flash_attn_kernel(x_ref, q_ref, k_ref, v_ref, mask_ref, wpr_ref, bpr_ref,
                       o_ref, m_ref, l_ref, acc_ref, *, n_head, tq, tkv):
    ki = pl.program_id(2)

    @pl.when(ki == 0)
    def _():
        m_ref[...] = jnp.full_like(m_ref, -1e30)
        l_ref[...] = jnp.zeros_like(l_ref)
        acc_ref[...] = jnp.zeros_like(acc_ref)

    q = q_ref[0]                                           # [tq, H]  bf16 (pre-scaled)
    k = k_ref[0]                                           # [tkv, H] bf16
    v = v_ref[0]                                           # [tkv, H] bf16
    H = q.shape[-1]
    Dh = H // n_head

    row = jax.lax.broadcasted_iota(jnp.int32, (tq, tkv), 0) + pl.program_id(1) * tq
    col = jax.lax.broadcasted_iota(jnp.int32, (tq, tkv), 1) + ki * tkv
    keep = (col <= row) & (mask_ref[0] > 0.5)              # causal AND key padding

    # n_head is small & static; per-head state is stored to scratch each
    # iteration so intermediates do not accumulate live ranges across heads.
    for hh in range(n_head):
        q_h = q[:, hh * Dh:(hh + 1) * Dh]
        k_h = k[:, hh * Dh:(hh + 1) * Dh]
        v_h = v[:, hh * Dh:(hh + 1) * Dh]
        s = jax.lax.dot_general(q_h, k_h, (((1,), (1,)), ((), ())),
                                preferred_element_type=jnp.float32)   # [tq, tkv]
        s = jnp.where(keep, s, jnp.float32(-1e9))
        m_prev = m_ref[hh]                                             # [tq, 1]
        m_new = jnp.maximum(m_prev, jnp.max(s, axis=-1, keepdims=True))
        alpha = jnp.exp(m_prev - m_new)
        p = jnp.exp(s - m_new)
        l_ref[hh] = alpha * l_ref[hh] + jnp.sum(p, axis=-1, keepdims=True)
        acc_ref[hh] = alpha * acc_ref[hh] + jnp.dot(
            p.astype(jnp.bfloat16), v_h, preferred_element_type=jnp.float32)
        m_ref[hh] = m_new

    @pl.when(ki == pl.num_programs(2) - 1)
    def _():
        # Normalize each head once, reassemble [tq, H], then a single
        # [tq,H]@[H,H] output projection + residual.
        ctx = jnp.concatenate(
            [(acc_ref[hh] * pl.reciprocal(l_ref[hh], approx=True)
              ).astype(jnp.bfloat16) for hh in range(n_head)], axis=-1)
        attn = jnp.dot(ctx, wpr_ref[...],
                       preferred_element_type=jnp.float32) + bpr_ref[...]
        o_ref[0] = (x_ref[0].astype(jnp.float32) + attn).astype(o_ref.dtype)


def attn_block(h, q, k, v, mask_f, w_pr, b_pr, *, n_head):
    """h/q/k/v: [B, S, H] bf16; mask_f: [B, 1, S] f32.  Returns h + attn, bf16."""
    B, S, H = h.shape
    assert H % n_head == 0
    Dh = H // n_head
    tq = _pick_tile(S, 256)
    tkv = _pick_tile(S, 512)
    return pl.pallas_call(
        functools.partial(_flash_attn_kernel, n_head=n_head, tq=tq, tkv=tkv),
        out_shape=jax.ShapeDtypeStruct((B, S, H), jnp.bfloat16),
        grid=(B, S // tq, S // tkv),
        in_specs=[
            pl.BlockSpec((1, tq, H), lambda b, qi, ki: (b, qi, 0)),    # residual
            pl.BlockSpec((1, tq, H), lambda b, qi, ki: (b, qi, 0)),    # q
            pl.BlockSpec((1, tkv, H), lambda b, qi, ki: (b, ki, 0)),   # k
            pl.BlockSpec((1, tkv, H), lambda b, qi, ki: (b, ki, 0)),   # v
            pl.BlockSpec((1, 1, tkv), lambda b, qi, ki: (b, 0, ki)),   # key mask
            _const_spec((H, H)),
            _const_spec((1, H)),
        ],
        out_specs=pl.BlockSpec((1, tq, H), lambda b, qi, ki: (b, qi, 0)),
        scratch_shapes=[
            pltpu.VMEM((n_head, tq, 1), jnp.float32),    # running max
            pltpu.VMEM((n_head, tq, 1), jnp.float32),    # running denom
            pltpu.VMEM((n_head, tq, Dh), jnp.float32),   # running ctx accumulator
        ],
        compiler_params=pltpu.CompilerParams(
            dimension_semantics=("parallel", "parallel", "arbitrary"),
            vmem_limit_bytes=VMEM_LIMIT),
    )(h, q, k, v, mask_f, w_pr, b_pr.reshape(1, H))


# ----------------------------------------------------------------------------
# Kernel 3: fused MLP sub-block (row-tiled):
#   out = x + proj( gelu_new( LN2(x) @ Wfc + bfc ) )   [ + optional final ln_f ]
# ----------------------------------------------------------------------------
def _mlp_block_kernel(x_ref, g2_ref, b2_ref, wf_ref, bf_ref, wp_ref, bp_ref,
                      gf_ref, bfin_ref, o_ref, *, apply_final_ln):
    x = x_ref[...].astype(jnp.float32)                     # [tm, H]
    hh = _layernorm_f32(x, g2_ref[...], b2_ref[...])
    u = jnp.dot(hh.astype(jnp.bfloat16), wf_ref[...],
                preferred_element_type=jnp.float32) + bf_ref[...]       # [tm, 4H]
    u = _gelu_new(u).astype(jnp.bfloat16)                  # bf16 intermediate
    m = jnp.dot(u, wp_ref[...],
                preferred_element_type=jnp.float32) + bp_ref[...]       # [tm, H]
    y = x + m
    if apply_final_ln:
        y = _layernorm_f32(y, gf_ref[...], bfin_ref[...])
    o_ref[...] = y.astype(o_ref.dtype)


def mlp_block(x2, ln2_g, ln2_b, w_fc, b_fc, w_pr, b_pr, lnf_g, lnf_b, *,
              apply_final_ln):
    """x2: [M, H] bf16 (flattened batch*seq rows).  Returns bf16."""
    M, H = x2.shape
    F = w_fc.shape[1]
    tm = _pick_tile(M, 256)
    return pl.pallas_call(
        functools.partial(_mlp_block_kernel, apply_final_ln=apply_final_ln),
        out_shape=jax.ShapeDtypeStruct((M, H), jnp.bfloat16),
        grid=(M // tm,),
        in_specs=[
            pl.BlockSpec((tm, H), lambda i: (i, 0)),
            _const_spec((1, H)),
            _const_spec((1, H)),
            _const_spec((H, F)),
            _const_spec((1, F)),
            _const_spec((F, H)),
            _const_spec((1, H)),
            _const_spec((1, H)),
            _const_spec((1, H)),
        ],
        out_specs=pl.BlockSpec((tm, H), lambda i: (i, 0)),
        compiler_params=pltpu.CompilerParams(
            dimension_semantics=("parallel",),
            vmem_limit_bytes=VMEM_LIMIT),
    )(x2, ln2_g.reshape(1, H), ln2_b.reshape(1, H),
      w_fc, b_fc.reshape(1, F), w_pr, b_pr.reshape(1, H),
      lnf_g.reshape(1, H), lnf_b.reshape(1, H))


# ----------------------------------------------------------------------------
# Kernel 4: classifier head — K-tiled matmul accumulating directly into the
# resident f32 output block; N padded to 128 lanes (sliced after).
# ----------------------------------------------------------------------------
def _head_kernel(x_ref, w_ref, b_ref, o_ref):
    @pl.when(pl.program_id(0) == 0)
    def _():
        o_ref[...] = jnp.zeros_like(o_ref)

    o_ref[...] += jnp.dot(x_ref[...], w_ref[...],
                          preferred_element_type=jnp.float32)

    @pl.when(pl.program_id(0) == pl.num_programs(0) - 1)
    def _():
        o_ref[...] = o_ref[...] + b_ref[...]


def classifier_head(flat, w_pad, b_pad, num_classes):
    """flat: [B, S*H] bf16; w_pad: [S*H, Npad] bf16; b_pad: [Npad] f32."""
    M, K = flat.shape
    Kw, Np = w_pad.shape
    assert K == Kw
    tk = _pick_tile(K, 32768)   # large K tile -> per-step overhead << HBM time
    out = pl.pallas_call(
        _head_kernel,
        out_shape=jax.ShapeDtypeStruct((M, Np), jnp.float32),
        grid=(K // tk,),
        in_specs=[
            pl.BlockSpec((M, tk), lambda kk: (0, kk)),
            pl.BlockSpec((tk, Np), lambda kk: (kk, 0)),
            _const_spec((1, Np)),
        ],
        out_specs=pl.BlockSpec((M, Np), lambda kk: (0, 0)),
        compiler_params=pltpu.CompilerParams(
            dimension_semantics=("arbitrary",),
            vmem_limit_bytes=VMEM_LIMIT),
    )(flat, w_pad, b_pad.reshape(1, Np))
    return out[:, :num_classes]


# ----------------------------------------------------------------------------
# Synthetic GPT-2 + classifier parameters (deterministic init)
# ----------------------------------------------------------------------------
def init_params(key, *, vocab, hidden, n_head, n_layer, max_seq_len, num_classes):
    def nrm(k, shape, std=0.02, dtype=jnp.float32):
        return (std * jax.random.normal(k, shape)).astype(dtype)

    keys = list(jax.random.split(key, 3 + 4 * n_layer))
    ki = iter(keys)

    npad = ((num_classes + 127) // 128) * 128
    fc1_w = nrm(next(ki), (hidden * max_seq_len, num_classes))
    fc1_w_pad = (jnp.zeros((hidden * max_seq_len, npad), jnp.float32)
                 .at[:, :num_classes].set(fc1_w).astype(jnp.bfloat16))
    fc1_b_pad = jnp.zeros((npad,), jnp.float32)

    params = {
        "wte": nrm(next(ki), (vocab, hidden)),
        "wpe": nrm(next(ki), (max_seq_len, hidden)),
        "blocks": [],
        "ln_f_g": jnp.ones((hidden,), jnp.float32),
        "ln_f_b": jnp.zeros((hidden,), jnp.float32),
        "fc1_w_pad": fc1_w_pad,
        "fc1_b_pad": fc1_b_pad,
    }
    for _ in range(n_layer):
        blk = {
            "ln1_g": jnp.ones((hidden,), jnp.float32),
            "ln1_b": jnp.zeros((hidden,), jnp.float32),
            "w_qkv": nrm(next(ki), (hidden, 3 * hidden), dtype=jnp.bfloat16),
            "b_qkv": jnp.zeros((3 * hidden,), jnp.float32),
            "w_attn_proj": nrm(next(ki), (hidden, hidden), dtype=jnp.bfloat16),
            "b_attn_proj": jnp.zeros((hidden,), jnp.float32),
            "ln2_g": jnp.ones((hidden,), jnp.float32),
            "ln2_b": jnp.zeros((hidden,), jnp.float32),
            "w_fc": nrm(next(ki), (hidden, 4 * hidden), dtype=jnp.bfloat16),
            "b_fc": jnp.zeros((4 * hidden,), jnp.float32),
            "w_proj": nrm(next(ki), (4 * hidden, hidden), dtype=jnp.bfloat16),
            "b_proj": jnp.zeros((hidden,), jnp.float32),
        }
        params["blocks"].append(blk)
    return params


# ----------------------------------------------------------------------------
# Forward pass (embedding gather is plain-JAX glue; hot path is fused kernels)
# ----------------------------------------------------------------------------
def gpt2_classifier_forward(params, input_ids, mask, *, n_head, num_classes):
    B, S = input_ids.shape
    H = params["wte"].shape[1]

    # token + position embeddings (gather stays in plain JAX), bf16 residual
    h = (params["wte"][input_ids] + params["wpe"][:S][None, :, :]).astype(jnp.bfloat16)
    mask_f = mask.astype(jnp.float32).reshape(B, 1, S)

    n_layer = len(params["blocks"])
    for li, blk in enumerate(params["blocks"]):
        q, k, v = qkv_proj(h.reshape(B * S, H), blk["ln1_g"], blk["ln1_b"],
                           blk["w_qkv"], blk["b_qkv"], n_head=n_head)
        h = attn_block(h, q.reshape(B, S, H), k.reshape(B, S, H),
                       v.reshape(B, S, H), mask_f,
                       blk["w_attn_proj"], blk["b_attn_proj"], n_head=n_head)
        h2 = mlp_block(h.reshape(B * S, H), blk["ln2_g"], blk["ln2_b"],
                       blk["w_fc"], blk["b_fc"], blk["w_proj"], blk["b_proj"],
                       params["ln_f_g"], params["ln_f_b"],
                       apply_final_ln=(li == n_layer - 1))   # fold ln_f into last layer
        h = h2.reshape(B, S, H)

    # classifier head: fc1(gpt_out.view(batch_size, -1))
    flat = h.reshape(B, S * H)
    return classifier_head(flat, params["fc1_w_pad"], params["fc1_b_pad"],
                           num_classes)


# ----------------------------------------------------------------------------
if __name__ == "__main__":
    # small GPT-2-like config
    VOCAB = 50
    HIDDEN = 32
    N_HEAD = 4
    N_LAYER = 2
    MAX_SEQ = 8
    NUM_CLASSES = 3
    BATCH = 2

    key = jax.random.PRNGKey(0)
    k_par, k_ids = jax.random.split(key)

    params = init_params(
        k_par, vocab=VOCAB, hidden=HIDDEN, n_head=N_HEAD, n_layer=N_LAYER,
        max_seq_len=MAX_SEQ, num_classes=NUM_CLASSES)

    input_ids = jax.random.randint(k_ids, (BATCH, MAX_SEQ), 0, VOCAB, dtype=jnp.int32)
    mask = jnp.ones((BATCH, MAX_SEQ), dtype=jnp.int32)
    mask = mask.at[1, 6:].set(0)  # exercise attention-mask padding on example 1

    fwd = jax.jit(functools.partial(gpt2_classifier_forward,
                                    n_head=N_HEAD, num_classes=NUM_CLASSES))
    logits = jax.block_until_ready(fwd(params, input_ids, mask))
    assert logits.shape == (BATCH, NUM_CLASSES)
    assert bool(jnp.all(jnp.isfinite(logits)))
    print("KERNEL_OK")
</pallas_src>

<mosaic_0001>
module attributes {stable_mosaic.version = 11 : i64} {
  func.func @_qkv_kernel(%arg0: i32, %arg1: memref<8x32xbf16, #tpu.memory_space<vmem>>, %arg2: memref<1x32xf32, #tpu.memory_space<vmem>>, %arg3: memref<1x32xf32, #tpu.memory_space<vmem>>, %arg4: memref<32x96xbf16, #tpu.memory_space<vmem>>, %arg5: memref<1x96xf32, #tpu.memory_space<vmem>>, %arg6: memref<8x32xbf16, #tpu.memory_space<vmem>>, %arg7: memref<8x32xbf16, #tpu.memory_space<vmem>>, %arg8: memref<8x32xbf16, #tpu.memory_space<vmem>>) attributes {dimension_semantics = [#tpu.dimension_semantics<parallel>], iteration_bounds = array<i64: 2>, scalar_prefetch = 0 : i64, scratch_operands = 0 : i64, tpu.core_type = #tpu.core_type<tc>, window_params = [{transform_indices = @transform_0, window_bounds = array<i64: 8, 32>}, {pipeline_mode = #tpu.pipeline_mode<synchronous>, transform_indices = @transform_1, window_bounds = array<i64: 1, 32>}, {pipeline_mode = #tpu.pipeline_mode<synchronous>, transform_indices = @transform_2, window_bounds = array<i64: 1, 32>}, {pipeline_mode = #tpu.pipeline_mode<synchronous>, transform_indices = @transform_3, window_bounds = array<i64: 32, 96>}, {pipeline_mode = #tpu.pipeline_mode<synchronous>, transform_indices = @transform_4, window_bounds = array<i64: 1, 96>}, {transform_indices = @transform_5, window_bounds = array<i64: 8, 32>}, {transform_indices = @transform_6, window_bounds = array<i64: 8, 32>}, {transform_indices = @transform_7, window_bounds = array<i64: 8, 32>}]} {
    %c0 = arith.constant 0 : index
    %c0_0 = arith.constant 0 : index
    %0 = vector.load %arg1[%c0, %c0_0] : memref<8x32xbf16, #tpu.memory_space<vmem>>, vector<8x32xbf16>
    %1 = arith.extf %0 : vector<8x32xbf16> to vector<8x32xf32>
    %c0_1 = arith.constant 0 : index
    %c0_2 = arith.constant 0 : index
    %2 = vector.load %arg2[%c0_1, %c0_2] : memref<1x32xf32, #tpu.memory_space<vmem>>, vector<1x32xf32>
    %c0_3 = arith.constant 0 : index
    %c0_4 = arith.constant 0 : index
    %3 = vector.load %arg3[%c0_3, %c0_4] : memref<1x32xf32, #tpu.memory_space<vmem>>, vector<1x32xf32>
    %cst = arith.constant dense<0.000000e+00> : vector<8xf32>
    %4 = vector.multi_reduction <add>, %1, %cst [1] : vector<8x32xf32> to vector<8xf32>
    %5 = vector.shape_cast %4 : vector<8xf32> to vector<8x1xf32>
    %cst_5 = arith.constant 3.200000e+01 : f32
    %6 = vector.broadcast %cst_5 : f32 to vector<8x1xf32>
    %7 = arith.divf %5, %6 : vector<8x1xf32>
    %8 = vector.broadcast %7 : vector<8x1xf32> to vector<8x32xf32>
    %9 = arith.subf %1, %8 : vector<8x32xf32>
    %10 = arith.mulf %9, %9 : vector<8x32xf32>
    %cst_6 = arith.constant dense<0.000000e+00> : vector<8xf32>
    %11 = vector.multi_reduction <add>, %10, %cst_6 [1] : vector<8x32xf32> to vector<8xf32>
    %12 = vector.shape_cast %11 : vector<8xf32> to vector<8x1xf32>
    %cst_7 = arith.constant 3.200000e+01 : f32
    %13 = vector.broadcast %cst_7 : f32 to vector<8x1xf32>
    %14 = arith.divf %12, %13 : vector<8x1xf32>
    %15 = vector.broadcast %7 : vector<8x1xf32> to vector<8x32xf32>
    %16 = arith.subf %1, %15 : vector<8x32xf32>
    %cst_8 = arith.constant 9.99999974E-6 : f32
    %17 = vector.broadcast %cst_8 : f32 to vector<8x1xf32>
    %18 = arith.addf %14, %17 : vector<8x1xf32>
    %19 = math.rsqrt %18 : vector<8x1xf32>
    %20 = vector.broadcast %19 : vector<8x1xf32> to vector<8x32xf32>
    %21 = arith.mulf %16, %20 : vector<8x32xf32>
    %22 = vector.broadcast %2 : vector<1x32xf32> to vector<8x32xf32>
    %23 = arith.mulf %21, %22 : vector<8x32xf32>
    %24 = vector.broadcast %3 : vector<1x32xf32> to vector<8x32xf32>
    %25 = arith.addf %23, %24 : vector<8x32xf32>
    %26 = arith.truncf %25 : vector<8x32xf32> to vector<8x32xbf16>
    %c0_9 = arith.constant 0 : index
    %c0_10 = arith.constant 0 : index
    %27 = vector.load %arg4[%c0_9, %c0_10] : memref<32x96xbf16, #tpu.memory_space<vmem>>, vector<32x96xbf16>
    %cst_11 = arith.constant dense<0.000000e+00> : vector<8x96xf32>
    %28 = tpu.matmul %26, %27, %cst_11 {dimension_numbers = #tpu.dot_dimension_numbers<[1], [0], [0], [1], [0, 0, 1, 1], [], []>} : vector<8x32xbf16>, vector<32x96xbf16>, vector<8x96xf32> -> vector<8x96xf32>
    %c0_12 = arith.constant 0 : index
    %c0_13 = arith.constant 0 : index
    %29 = vector.load %arg5[%c0_12, %c0_13] : memref<1x96xf32, #tpu.memory_space<vmem>>, vector<1x96xf32>
    %30 = vector.broadcast %29 : vector<1x96xf32> to vector<8x96xf32>
    %31 = arith.addf %28, %30 : vector<8x96xf32>
    %32 = vector.extract_strided_slice %31 {offsets = [0, 0], sizes = [8, 32], strides = [1, 1]} : vector<8x96xf32> to vector<8x32xf32>
    %cst_14 = arith.constant 0.353553385 : f32
    %33 = vector.broadcast %cst_14 : f32 to vector<8x32xf32>
    %34 = arith.mulf %32, %33 : vector<8x32xf32>
    %35 = arith.truncf %34 : vector<8x32xf32> to vector<8x32xbf16>
    %c0_15 = arith.constant 0 : index
    %c0_16 = arith.constant 0 : index
    %36 = vector.load %arg6[%c0_15, %c0_16] : memref<8x32xbf16, #tpu.memory_space<vmem>>, vector<8x32xbf16>
    tpu.vector_store %arg6[%c0_15, %c0_16], %35 {strides = array<i32>} : memref<8x32xbf16, #tpu.memory_space<vmem>>, vector<8x32xbf16>,
    %37 = vector.extract_strided_slice %31 {offsets = [0, 32], sizes = [8, 32], strides = [1, 1]} : vector<8x96xf32> to vector<8x32xf32>
    %38 = arith.truncf %37 : vector<8x32xf32> to vector<8x32xbf16>
    %c0_17 = arith.constant 0 : index
    %c0_18 = arith.constant 0 : index
    %39 = vector.load %arg7[%c0_17, %c0_18] : memref<8x32xbf16, #tpu.memory_space<vmem>>, vector<8x32xbf16>
    tpu.vector_store %arg7[%c0_17, %c0_18], %38 {strides = array<i32>} : memref<8x32xbf16, #tpu.memory_space<vmem>>, vector<8x32xbf16>,
    %40 = vector.extract_strided_slice %31 {offsets = [0, 64], sizes = [8, 32], strides = [1, 1]} : vector<8x96xf32> to vector<8x32xf32>
    %41 = arith.truncf %40 : vector<8x32xf32> to vector<8x32xbf16>
    %c0_19 = arith.constant 0 : index
    %c0_20 = arith.constant 0 : index
    %42 = vector.load %arg8[%c0_19, %c0_20] : memref<8x32xbf16, #tpu.memory_space<vmem>>, vector<8x32xbf16>
    tpu.vector_store %arg8[%c0_19, %c0_20], %41 {strides = array<i32>} : memref<8x32xbf16, #tpu.memory_space<vmem>>, vector<8x32xbf16>,
    return
  }
  func.func @transform_0(%arg0: i32) -> (i32, i32) {
    %c0_i32 = arith.constant 0 : i32
    %c0_i32_0 = arith.constant 0 : i32
    return %arg0, %c0_i32 : i32, i32
  }
  func.func @transform_1(%arg0: i32) -> (i32, i32) {
    %c0_i32 = arith.constant 0 : i32
    %c0_i32_0 = arith.constant 0 : i32
    %c0_i32_1 = arith.constant 0 : i32
    return %c0_i32, %c0_i32_0 : i32, i32
  }
  func.func @transform_2(%arg0: i32) -> (i32, i32) {
    %c0_i32 = arith.constant 0 : i32
    %c0_i32_0 = arith.constant 0 : i32
    %c0_i32_1 = arith.constant 0 : i32
    return %c0_i32, %c0_i32_0 : i32, i32
  }
  func.func @transform_3(%arg0: i32) -> (i32, i32) {
    %c0_i32 = arith.constant 0 : i32
    %c0_i32_0 = arith.constant 0 : i32
    %c0_i32_1 = arith.constant 0 : i32
    return %c0_i32, %c0_i32_0 : i32, i32
  }
  func.func @transform_4(%arg0: i32) -> (i32, i32) {
    %c0_i32 = arith.constant 0 : i32
    %c0_i32_0 = arith.constant 0 : i32
    %c0_i32_1 = arith.constant 0 : i32
    return %c0_i32, %c0_i32_0 : i32, i32
  }
  func.func @transform_5(%arg0: i32) -> (i32, i32) {
    %c0_i32 = arith.constant 0 : i32
    %c0_i32_0 = arith.constant 0 : i32
    return %arg0, %c0_i32 : i32, i32
  }
  func.func @transform_6(%arg0: i32) -> (i32, i32) {
    %c0_i32 = arith.constant 0 : i32
    %c0_i32_0 = arith.constant 0 : i32
    return %arg0, %c0_i32 : i32, i32
  }
  func.func @transform_7(%arg0: i32) -> (i32, i32) {
    %c0_i32 = arith.constant 0 : i32
    %c0_i32_0 = arith.constant 0 : i32
    return %arg0, %c0_i32 : i32, i32
  }
}

module attributes {stable_mosaic.version = 11 : i64} {
  func.func @_mlp_block_kernel(%arg0: i32, %arg1: memref<8x32xbf16, #tpu.memory_space<vmem>>, %arg2: memref<1x32xf32, #tpu.memory_space<vmem>>, %arg3: memref<1x32xf32, #tpu.memory_space<vmem>>, %arg4: memref<32x128xbf16, #tpu.memory_space<vmem>>, %arg5: memref<1x128xf32, #tpu.memory_space<vmem>>, %arg6: memref<128x32xbf16, #tpu.memory_space<vmem>>, %arg7: memref<1x32xf32, #tpu.memory_space<vmem>>, %arg8: memref<1x32xf32, #tpu.memory_space<vmem>>, %arg9: memref<1x32xf32, #tpu.memory_space<vmem>>, %arg10: memref<8x32xbf16, #tpu.memory_space<vmem>>) attributes {dimension_semantics = [#tpu.dimension_semantics<parallel>], iteration_bounds = array<i64: 2>, scalar_prefetch = 0 : i64, scratch_operands = 0 : i64, tpu.core_type = #tpu.core_type<tc>, window_params = [{transform_indices = @transform_0, window_bounds = array<i64: 8, 32>}, {pipeline_mode = #tpu.pipeline_mode<synchronous>, transform_indices = @transform_1, window_bounds = array<i64: 1, 32>}, {pipeline_mode = #tpu.pipeline_mode<synchronous>, transform_indices = @transform_2, window_bounds = array<i64: 1, 32>}, {pipeline_mode = #tpu.pipeline_mode<synchronous>, transform_indices = @transform_3, window_bounds = array<i64: 32, 128>}, {pipeline_mode = #tpu.pipeline_mode<synchronous>, transform_indices = @transform_4, window_bounds = array<i64: 1, 128>}, {pipeline_mode = #tpu.pipeline_mode<synchronous>, transform_indices = @transform_5, window_bounds = array<i64: 128, 32>}, {pipeline_mode = #tpu.pipeline_mode<synchronous>, transform_indices = @transform_6, window_bounds = array<i64: 1, 32>}, {pipeline_mode = #tpu.pipeline_mode<synchronous>, transform_indices = @transform_7, window_bounds = array<i64: 1, 32>}, {pipeline_mode = #tpu.pipeline_mode<synchronous>, transform_indices = @transform_8, window_bounds = array<i64: 1, 32>}, {transform_indices = @transform_9, window_bounds = array<i64: 8, 32>}]} {
    %c0 = arith.constant 0 : index
    %c0_0 = arith.constant 0 : index
    %0 = vector.load %arg1[%c0, %c0_0] : memref<8x32xbf16, #tpu.memory_space<vmem>>, vector<8x32xbf16>
    %1 = arith.extf %0 : vector<8x32xbf16> to vector<8x32xf32>
    %c0_1 = arith.constant 0 : index
    %c0_2 = arith.constant 0 : index
    %2 = vector.load %arg2[%c0_1, %c0_2] : memref<1x32xf32, #tpu.memory_space<vmem>>, vector<1x32xf32>
    %c0_3 = arith.constant 0 : index
    %c0_4 = arith.constant 0 : index
    %3 = vector.load %arg3[%c0_3, %c0_4] : memref<1x32xf32, #tpu.memory_space<vmem>>, vector<1x32xf32>
    %cst = arith.constant dense<0.000000e+00> : vector<8xf32>
    %4 = vector.multi_reduction <add>, %1, %cst [1] : vector<8x32xf32> to vector<8xf32>
    %5 = vector.shape_cast %4 : vector<8xf32> to vector<8x1xf32>
    %cst_5 = arith.constant 3.200000e+01 : f32
    %6 = vector.broadcast %cst_5 : f32 to vector<8x1xf32>
    %7 = arith.divf %5, %6 : vector<8x1xf32>
    %8 = vector.broadcast %7 : vector<8x1xf32> to vector<8x32xf32>
    %9 = arith.subf %1, %8 : vector<8x32xf32>
    %10 = arith.mulf %9, %9 : vector<8x32xf32>
    %cst_6 = arith.constant dense<0.000000e+00> : vector<8xf32>
    %11 = vector.multi_reduction <add>, %10, %cst_6 [1] : vector<8x32xf32> to vector<8xf32>
    %12 = vector.shape_cast %11 : vector<8xf32> to vector<8x1xf32>
    %cst_7 = arith.constant 3.200000e+01 : f32
    %13 = vector.broadcast %cst_7 : f32 to vector<8x1xf32>
    %14 = arith.divf %12, %13 : vector<8x1xf32>
    %15 = vector.broadcast %7 : vector<8x1xf32> to vector<8x32xf32>
    %16 = arith.subf %1, %15 : vector<8x32xf32>
    %cst_8 = arith.constant 9.99999974E-6 : f32
    %17 = vector.broadcast %cst_8 : f32 to vector<8x1xf32>
    %18 = arith.addf %14, %17 : vector<8x1xf32>
    %19 = math.rsqrt %18 : vector<8x1xf32>
    %20 = vector.broadcast %19 : vector<8x1xf32> to vector<8x32xf32>
    %21 = arith.mulf %16, %20 : vector<8x32xf32>
    %22 = vector.broadcast %2 : vector<1x32xf32> to vector<8x32xf32>
    %23 = arith.mulf %21, %22 : vector<8x32xf32>
    %24 = vector.broadcast %3 : vector<1x32xf32> to vector<8x32xf32>
    %25 = arith.addf %23, %24 : vector<8x32xf32>
    %26 = arith.truncf %25 : vector<8x32xf32> to vector<8x32xbf16>
    %c0_9 = arith.constant 0 : index
    %c0_10 = arith.constant 0 : index
    %27 = vector.load %arg4[%c0_9, %c0_10] : memref<32x128xbf16, #tpu.memory_space<vmem>>, vector<32x128xbf16>
    %cst_11 = arith.constant dense<0.000000e+00> : vector<8x128xf32>
    %28 = tpu.matmul %26, %27, %cst_11 {dimension_numbers = #tpu.dot_dimension_numbers<[1], [0], [0], [1], [0, 0, 1, 1], [], []>} : vector<8x32xbf16>, vector<32x128xbf16>, vector<8x128xf32> -> vector<8x128xf32>
    %c0_12 = arith.constant 0 : index
    %c0_13 = arith.constant 0 : index
    %29 = vector.load %arg5[%c0_12, %c0_13] : memref<1x128xf32, #tpu.memory_space<vmem>>, vector<1x128xf32>
    %30 = vector.broadcast %29 : vector<1x128xf32> to vector<8x128xf32>
    %31 = arith.addf %28, %30 : vector<8x128xf32>
    %cst_14 = arith.constant 5.000000e-01 : f32
    %32 = vector.broadcast %cst_14 : f32 to vector<8x128xf32>
    %33 = arith.mulf %32, %31 : vector<8x128xf32>
    %cst_15 = arith.constant 4.471500e-02 : f32
    %34 = vector.broadcast %cst_15 : f32 to vector<8x128xf32>
    %35 = arith.mulf %34, %31 : vector<8x128xf32>
    %36 = arith.mulf %35, %31 : vector<8x128xf32>
    %37 = arith.mulf %36, %31 : vector<8x128xf32>
    %38 = arith.addf %31, %37 : vector<8x128xf32>
    %cst_16 = arith.constant 0.797884583 : f32
    %39 = vector.broadcast %cst_16 : f32 to vector<8x128xf32>
    %40 = arith.mulf %39, %38 : vector<8x128xf32>
    %41 = math.tanh %40 : vector<8x128xf32>
    %cst_17 = arith.constant 1.000000e+00 : f32
    %42 = vector.broadcast %cst_17 : f32 to vector<8x128xf32>
    %43 = arith.addf %42, %41 : vector<8x128xf32>
    %44 = arith.mulf %33, %43 : vector<8x128xf32>
    %45 = arith.truncf %44 : vector<8x128xf32> to vector<8x128xbf16>
    %c0_18 = arith.constant 0 : index
    %c0_19 = arith.constant 0 : index
    %46 = vector.load %arg6[%c0_18, %c0_19] : memref<128x32xbf16, #tpu.memory_space<vmem>>, vector<128x32xbf16>
    %cst_20 = arith.constant dense<0.000000e+00> : vector<8x32xf32>
    %47 = tpu.matmul %45, %46, %cst_20 {dimension_numbers = #tpu.dot_dimension_numbers<[1], [0], [0], [1], [0, 0, 1, 1], [], []>} : vector<8x128xbf16>, vector<128x32xbf16>, vector<8x32xf32> -> vector<8x32xf32>
    %c0_21 = arith.constant 0 : index
    %c0_22 = arith.constant 0 : index
    %48 = vector.load %arg7[%c0_21, %c0_22] : memref<1x32xf32, #tpu.memory_space<vmem>>, vector<1x32xf32>
    %49 = vector.broadcast %48 : vector<1x32xf32> to vector<8x32xf32>
    %50 = arith.addf %47, %49 : vector<8x32xf32>
    %51 = arith.addf %1, %50 : vector<8x32xf32>
    %52 = arith.truncf %51 : vector<8x32xf32> to vector<8x32xbf16>
    %c0_23 = arith.constant 0 : index
    %c0_24 = arith.constant 0 : index
    %53 = vector.load %arg10[%c0_23, %c0_24] : memref<8x32xbf16, #tpu.memory_space<vmem>>, vector<8x32xbf16>
    tpu.vector_store %arg10[%c0_23, %c0_24], %52 {strides = array<i32>} : memref<8x32xbf16, #tpu.memory_space<vmem>>, vector<8x32xbf16>,
    return
  }
  func.func @transform_0(%arg0: i32) -> (i32, i32) {
    %c0_i32 = arith.constant 0 : i32
    %c0_i32_0 = arith.constant 0 : i32
    return %arg0, %c0_i32 : i32, i32
  }
  func.func @transform_1(%arg0: i32) -> (i32, i32) {
    %c0_i32 = arith.constant 0 : i32
    %c0_i32_0 = arith.constant 0 : i32
    %c0_i32_1 = arith.constant 0 : i32
    return %c0_i32, %c0_i32_0 : i32, i32
  }
  func.func @transform_2(%arg0: i32) -> (i32, i32) {
    %c0_i32 = arith.constant 0 : i32
    %c0_i32_0 = arith.constant 0 : i32
    %c0_i32_1 = arith.constant 0 : i32
    return %c0_i32, %c0_i32_0 : i32, i32
  }
  func.func @transform_3(%arg0: i32) -> (i32, i32) {
    %c0_i32 = arith.constant 0 : i32
    %c0_i32_0 = arith.constant 0 : i32
    %c0_i32_1 = arith.constant 0 : i32
    return %c0_i32, %c0_i32_0 : i32, i32
  }
  func.func @transform_4(%arg0: i32) -> (i32, i32) {
    %c0_i32 = arith.constant 0 : i32
    %c0_i32_0 = arith.constant 0 : i32
    %c0_i32_1 = arith.constant 0 : i32
    return %c0_i32, %c0_i32_0 : i32, i32
  }
  func.func @transform_5(%arg0: i32) -> (i32, i32) {
    %c0_i32 = arith.constant 0 : i32
    %c0_i32_0 = arith.constant 0 : i32
    %c0_i32_1 = arith.constant 0 : i32
    return %c0_i32, %c0_i32_0 : i32, i32
  }
  func.func @transform_6(%arg0: i32) -> (i32, i32) {
    %c0_i32 = arith.constant 0 : i32
    %c0_i32_0 = arith.constant 0 : i32
    %c0_i32_1 = arith.constant 0 : i32
    return %c0_i32, %c0_i32_0 : i32, i32
  }
  func.func @transform_7(%arg0: i32) -> (i32, i32) {
    %c0_i32 = arith.constant 0 : i32
    %c0_i32_0 = arith.constant 0 : i32
    %c0_i32_1 = arith.constant 0 : i32
    return %c0_i32, %c0_i32_0 : i32, i32
  }
  func.func @transform_8(%arg0: i32) -> (i32, i32) {
    %c0_i32 = arith.constant 0 : i32
    %c0_i32_0 = arith.constant 0 : i32
    %c0_i32_1 = arith.constant 0 : i32
    return %c0_i32, %c0_i32_0 : i32, i32
  }
  func.func @transform_9(%arg0: i32) -> (i32, i32) {
    %c0_i32 = arith.constant 0 : i32
    %c0_i32_0 = arith.constant 0 : i32
    return %arg0, %c0_i32 : i32, i32
  }
}

module attributes {stable_mosaic.version = 11 : i64} {
  func.func @_mlp_block_kernel(%arg0: i32, %arg1: memref<8x32xbf16, #tpu.memory_space<vmem>>, %arg2: memref<1x32xf32, #tpu.memory_space<vmem>>, %arg3: memref<1x32xf32, #tpu.memory_space<vmem>>, %arg4: memref<32x128xbf16, #tpu.memory_space<vmem>>, %arg5: memref<1x128xf32, #tpu.memory_space<vmem>>, %arg6: memref<128x32xbf16, #tpu.memory_space<vmem>>, %arg7: memref<1x32xf32, #tpu.memory_space<vmem>>, %arg8: memref<1x32xf32, #tpu.memory_space<vmem>>, %arg9: memref<1x32xf32, #tpu.memory_space<vmem>>, %arg10: memref<8x32xbf16, #tpu.memory_space<vmem>>) attributes {dimension_semantics = [#tpu.dimension_semantics<parallel>], iteration_bounds = array<i64: 2>, scalar_prefetch = 0 : i64, scratch_operands = 0 : i64, tpu.core_type = #tpu.core_type<tc>, window_params = [{transform_indices = @transform_0, window_bounds = array<i64: 8, 32>}, {pipeline_mode = #tpu.pipeline_mode<synchronous>, transform_indices = @transform_1, window_bounds = array<i64: 1, 32>}, {pipeline_mode = #tpu.pipeline_mode<synchronous>, transform_indices = @transform_2, window_bounds = array<i64: 1, 32>}, {pipeline_mode = #tpu.pipeline_mode<synchronous>, transform_indices = @transform_3, window_bounds = array<i64: 32, 128>}, {pipeline_mode = #tpu.pipeline_mode<synchronous>, transform_indices = @transform_4, window_bounds = array<i64: 1, 128>}, {pipeline_mode = #tpu.pipeline_mode<synchronous>, transform_indices = @transform_5, window_bounds = array<i64: 128, 32>}, {pipeline_mode = #tpu.pipeline_mode<synchronous>, transform_indices = @transform_6, window_bounds = array<i64: 1, 32>}, {pipeline_mode = #tpu.pipeline_mode<synchronous>, transform_indices = @transform_7, window_bounds = array<i64: 1, 32>}, {pipeline_mode = #tpu.pipeline_mode<synchronous>, transform_indices = @transform_8, window_bounds = array<i64: 1, 32>}, {transform_indices = @transform_9, window_bounds = array<i64: 8, 32>}]} {
    %c0 = arith.constant 0 : index
    %c0_0 = arith.constant 0 : index
    %0 = vector.load %arg1[%c0, %c0_0] : memref<8x32xbf16, #tpu.memory_space<vmem>>, vector<8x32xbf16>
    %1 = arith.extf %0 : vector<8x32xbf16> to vector<8x32xf32>
    %c0_1 = arith.constant 0 : index
    %c0_2 = arith.constant 0 : index
    %2 = vector.load %arg2[%c0_1, %c0_2] : memref<1x32xf32, #tpu.memory_space<vmem>>, vector<1x32xf32>
    %c0_3 = arith.constant 0 : index
    %c0_4 = arith.constant 0 : index
    %3 = vector.load %arg3[%c0_3, %c0_4] : memref<1x32xf32, #tpu.memory_space<vmem>>, vector<1x32xf32>
    %cst = arith.constant dense<0.000000e+00> : vector<8xf32>
    %4 = vector.multi_reduction <add>, %1, %cst [1] : vector<8x32xf32> to vector<8xf32>
    %5 = vector.shape_cast %4 : vector<8xf32> to vector<8x1xf32>
    %cst_5 = arith.constant 3.200000e+01 : f32
    %6 = vector.broadcast %cst_5 : f32 to vector<8x1xf32>
    %7 = arith.divf %5, %6 : vector<8x1xf32>
    %8 = vector.broadcast %7 : vector<8x1xf32> to vector<8x32xf32>
    %9 = arith.subf %1, %8 : vector<8x32xf32>
    %10 = arith.mulf %9, %9 : vector<8x32xf32>
    %cst_6 = arith.constant dense<0.000000e+00> : vector<8xf32>
    %11 = vector.multi_reduction <add>, %10, %cst_6 [1] : vector<8x32xf32> to vector<8xf32>
    %12 = vector.shape_cast %11 : vector<8xf32> to vector<8x1xf32>
    %cst_7 = arith.constant 3.200000e+01 : f32
    %13 = vector.broadcast %cst_7 : f32 to vector<8x1xf32>
    %14 = arith.divf %12, %13 : vector<8x1xf32>
    %15 = vector.broadcast %7 : vector<8x1xf32> to vector<8x32xf32>
    %16 = arith.subf %1, %15 : vector<8x32xf32>
    %cst_8 = arith.constant 9.99999974E-6 : f32
    %17 = vector.broadcast %cst_8 : f32 to vector<8x1xf32>
    %18 = arith.addf %14, %17 : vector<8x1xf32>
    %19 = math.rsqrt %18 : vector<8x1xf32>
    %20 = vector.broadcast %19 : vector<8x1xf32> to vector<8x32xf32>
    %21 = arith.mulf %16, %20 : vector<8x32xf32>
    %22 = vector.broadcast %2 : vector<1x32xf32> to vector<8x32xf32>
    %23 = arith.mulf %21, %22 : vector<8x32xf32>
    %24 = vector.broadcast %3 : vector<1x32xf32> to vector<8x32xf32>
    %25 = arith.addf %23, %24 : vector<8x32xf32>
    %26 = arith.truncf %25 : vector<8x32xf32> to vector<8x32xbf16>
    %c0_9 = arith.constant 0 : index
    %c0_10 = arith.constant 0 : index
    %27 = vector.load %arg4[%c0_9, %c0_10] : memref<32x128xbf16, #tpu.memory_space<vmem>>, vector<32x128xbf16>
    %cst_11 = arith.constant dense<0.000000e+00> : vector<8x128xf32>
    %28 = tpu.matmul %26, %27, %cst_11 {dimension_numbers = #tpu.dot_dimension_numbers<[1], [0], [0], [1], [0, 0, 1, 1], [], []>} : vector<8x32xbf16>, vector<32x128xbf16>, vector<8x128xf32> -> vector<8x128xf32>
    %c0_12 = arith.constant 0 : index
    %c0_13 = arith.constant 0 : index
    %29 = vector.load %arg5[%c0_12, %c0_13] : memref<1x128xf32, #tpu.memory_space<vmem>>, vector<1x128xf32>
    %30 = vector.broadcast %29 : vector<1x128xf32> to vector<8x128xf32>
    %31 = arith.addf %28, %30 : vector<8x128xf32>
    %cst_14 = arith.constant 5.000000e-01 : f32
    %32 = vector.broadcast %cst_14 : f32 to vector<8x128xf32>
    %33 = arith.mulf %32, %31 : vector<8x128xf32>
    %cst_15 = arith.constant 4.471500e-02 : f32
    %34 = vector.broadcast %cst_15 : f32 to vector<8x128xf32>
    %35 = arith.mulf %34, %31 : vector<8x128xf32>
    %36 = arith.mulf %35, %31 : vector<8x128xf32>
    %37 = arith.mulf %36, %31 : vector<8x128xf32>
    %38 = arith.addf %31, %37 : vector<8x128xf32>
    %cst_16 = arith.constant 0.797884583 : f32
    %39 = vector.broadcast %cst_16 : f32 to vector<8x128xf32>
    %40 = arith.mulf %39, %38 : vector<8x128xf32>
    %41 = math.tanh %40 : vector<8x128xf32>
    %cst_17 = arith.constant 1.000000e+00 : f32
    %42 = vector.broadcast %cst_17 : f32 to vector<8x128xf32>
    %43 = arith.addf %42, %41 : vector<8x128xf32>
    %44 = arith.mulf %33, %43 : vector<8x128xf32>
    %45 = arith.truncf %44 : vector<8x128xf32> to vector<8x128xbf16>
    %c0_18 = arith.constant 0 : index
    %c0_19 = arith.constant 0 : index
    %46 = vector.load %arg6[%c0_18, %c0_19] : memref<128x32xbf16, #tpu.memory_space<vmem>>, vector<128x32xbf16>
    %cst_20 = arith.constant dense<0.000000e+00> : vector<8x32xf32>
    %47 = tpu.matmul %45, %46, %cst_20 {dimension_numbers = #tpu.dot_dimension_numbers<[1], [0], [0], [1], [0, 0, 1, 1], [], []>} : vector<8x128xbf16>, vector<128x32xbf16>, vector<8x32xf32> -> vector<8x32xf32>
    %c0_21 = arith.constant 0 : index
    %c0_22 = arith.constant 0 : index
    %48 = vector.load %arg7[%c0_21, %c0_22] : memref<1x32xf32, #tpu.memory_space<vmem>>, vector<1x32xf32>
    %49 = vector.broadcast %48 : vector<1x32xf32> to vector<8x32xf32>
    %50 = arith.addf %47, %49 : vector<8x32xf32>
    %51 = arith.addf %1, %50 : vector<8x32xf32>
    %c0_23 = arith.constant 0 : index
    %c0_24 = arith.constant 0 : index
    %52 = vector.load %arg8[%c0_23, %c0_24] : memref<1x32xf32, #tpu.memory_space<vmem>>, vector<1x32xf32>
    %c0_25 = arith.constant 0 : index
    %c0_26 = arith.constant 0 : index
    %53 = vector.load %arg9[%c0_25, %c0_26] : memref<1x32xf32, #tpu.memory_space<vmem>>, vector<1x32xf32>
    %cst_27 = arith.constant dense<0.000000e+00> : vector<8xf32>
    %54 = vector.multi_reduction <add>, %51, %cst_27 [1] : vector<8x32xf32> to vector<8xf32>
    %55 = vector.shape_cast %54 : vector<8xf32> to vector<8x1xf32>
    %cst_28 = arith.constant 3.200000e+01 : f32
    %56 = vector.broadcast %cst_28 : f32 to vector<8x1xf32>
    %57 = arith.divf %55, %56 : vector<8x1xf32>
    %58 = vector.broadcast %57 : vector<8x1xf32> to vector<8x32xf32>
    %59 = arith.subf %51, %58 : vector<8x32xf32>
    %60 = arith.mulf %59, %59 : vector<8x32xf32>
    %cst_29 = arith.constant dense<0.000000e+00> : vector<8xf32>
    %61 = vector.multi_reduction <add>, %60, %cst_29 [1] : vector<8x32xf32> to vector<8xf32>
    %62 = vector.shape_cast %61 : vector<8xf32> to vector<8x1xf32>
    %cst_30 = arith.constant 3.200000e+01 : f32
    %63 = vector.broadcast %cst_30 : f32 to vector<8x1xf32>
    %64 = arith.divf %62, %63 : vector<8x1xf32>
    %65 = vector.broadcast %57 : vector<8x1xf32> to vector<8x32xf32>
    %66 = arith.subf %51, %65 : vector<8x32xf32>
    %cst_31 = arith.constant 9.99999974E-6 : f32
    %67 = vector.broadcast %cst_31 : f32 to vector<8x1xf32>
    %68 = arith.addf %64, %67 : vector<8x1xf32>
    %69 = math.rsqrt %68 : vector<8x1xf32>
    %70 = vector.broadcast %69 : vector<8x1xf32> to vector<8x32xf32>
    %71 = arith.mulf %66, %70 : vector<8x32xf32>
    %72 = vector.broadcast %52 : vector<1x32xf32> to vector<8x32xf32>
    %73 = arith.mulf %71, %72 : vector<8x32xf32>
    %74 = vector.broadcast %53 : vector<1x32xf32> to vector<8x32xf32>
    %75 = arith.addf %73, %74 : vector<8x32xf32>
    %76 = arith.truncf %75 : vector<8x32xf32> to vector<8x32xbf16>
    %c0_32 = arith.constant 0 : index
    %c0_33 = arith.constant 0 : index
    %77 = vector.load %arg10[%c0_32, %c0_33] : memref<8x32xbf16, #tpu.memory_space<vmem>>, vector<8x32xbf16>
    tpu.vector_store %arg10[%c0_32, %c0_33], %76 {strides = array<i32>} : memref<8x32xbf16, #tpu.memory_space<vmem>>, vector<8x32xbf16>,
    return
  }
  func.func @transform_0(%arg0: i32) -> (i32, i32) {
    %c0_i32 = arith.constant 0 : i32
    %c0_i32_0 = arith.constant 0 : i32
    return %arg0, %c0_i32 : i32, i32
  }
  func.func @transform_1(%arg0: i32) -> (i32, i32) {
    %c0_i32 = arith.constant 0 : i32
    %c0_i32_0 = arith.constant 0 : i32
    %c0_i32_1 = arith.constant 0 : i32
    return %c0_i32, %c0_i32_0 : i32, i32
  }
  func.func @transform_2(%arg0: i32) -> (i32, i32) {
    %c0_i32 = arith.constant 0 : i32
    %c0_i32_0 = arith.constant 0 : i32
    %c0_i32_1 = arith.constant 0 : i32
    return %c0_i32, %c0_i32_0 : i32, i32
  }
  func.func @transform_3(%arg0: i32) -> (i32, i32) {
    %c0_i32 = arith.constant 0 : i32
    %c0_i32_0 = arith.constant 0 : i32
    %c0_i32_1 = arith.constant 0 : i32
    return %c0_i32, %c0_i32_0 : i32, i32
  }
  func.func @transform_4(%arg0: i32) -> (i32, i32) {
    %c0_i32 = arith.constant 0 : i32
    %c0_i32_0 = arith.constant 0 : i32
    %c0_i32_1 = arith.constant 0 : i32
    return %c0_i32, %c0_i32_0 : i32, i32
  }
  func.func @transform_5(%arg0: i32) -> (i32, i32) {
    %c0_i32 = arith.constant 0 : i32
    %c0_i32_0 = arith.constant 0 : i32
    %c0_i32_1 = arith.constant 0 : i32
    return %c0_i32, %c0_i32_0 : i32, i32
  }
  func.func @transform_6(%arg0: i32) -> (i32, i32) {
    %c0_i32 = arith.constant 0 : i32
    %c0_i32_0 = arith.constant 0 : i32
    %c0_i32_1 = arith.constant 0 : i32
    return %c0_i32, %c0_i32_0 : i32, i32
  }
  func.func @transform_7(%arg0: i32) -> (i32, i32) {
    %c0_i32 = arith.constant 0 : i32
    %c0_i32_0 = arith.constant 0 : i32
    %c0_i32_1 = arith.constant 0 : i32
    return %c0_i32, %c0_i32_0 : i32, i32
  }
  func.func @transform_8(%arg0: i32) -> (i32, i32) {
    %c0_i32 = arith.constant 0 : i32
    %c0_i32_0 = arith.constant 0 : i32
    %c0_i32_1 = arith.constant 0 : i32
    return %c0_i32, %c0_i32_0 : i32, i32
  }
  func.func @transform_9(%arg0: i32) -> (i32, i32) {
    %c0_i32 = arith.constant 0 : i32
    %c0_i32_0 = arith.constant 0 : i32
    return %arg0, %c0_i32 : i32, i32
  }
}

module attributes {stable_mosaic.version = 11 : i64} {
  func.func @_flash_attn_kernel(%arg0: i32, %arg1: i32, %arg2: i32, %arg3: memref<1x8x32xbf16, #tpu.memory_space<vmem>>, %arg4: memref<1x8x32xbf16, #tpu.memory_space<vmem>>, %arg5: memref<1x8x32xbf16, #tpu.memory_space<vmem>>, %arg6: memref<1x8x32xbf16, #tpu.memory_space<vmem>>, %arg7: memref<1x1x8xf32, #tpu.memory_space<vmem>>, %arg8: memref<32x32xbf16, #tpu.memory_space<vmem>>, %arg9: memref<1x32xf32, #tpu.memory_space<vmem>>, %arg10: memref<1x8x32xbf16, #tpu.memory_space<vmem>>, %arg11: memref<4x8x1xf32, #tpu.memory_space<vmem>>, %arg12: memref<4x8x1xf32, #tpu.memory_space<vmem>>, %arg13: memref<4x8x8xf32, #tpu.memory_space<vmem>>) attributes {dimension_semantics = [#tpu.dimension_semantics<parallel>, #tpu.dimension_semantics<parallel>, #tpu.dimension_semantics<arbitrary>], iteration_bounds = array<i64: 2, 1, 1>, scalar_prefetch = 0 : i64, scratch_operands = 3 : i64, tpu.core_type = #tpu.core_type<tc>, window_params = [{transform_indices = @transform_0, window_bounds = array<i64: 1, 8, 32>}, {transform_indices = @transform_1, window_bounds = array<i64: 1, 8, 32>}, {transform_indices = @transform_2, window_bounds = array<i64: 1, 8, 32>}, {transform_indices = @transform_3, window_bounds = array<i64: 1, 8, 32>}, {transform_indices = @transform_4, window_bounds = array<i64: 1, 1, 8>}, {pipeline_mode = #tpu.pipeline_mode<synchronous>, transform_indices = @transform_5, window_bounds = array<i64: 32, 32>}, {pipeline_mode = #tpu.pipeline_mode<synchronous>, transform_indices = @transform_6, window_bounds = array<i64: 1, 32>}, {transform_indices = @transform_7, window_bounds = array<i64: 1, 8, 32>}]} {
    %c0_i32 = arith.constant 0 : i32
    %0 = arith.cmpi eq, %arg2, %c0_i32 : i32
    %1 = arith.extui %0 : i1 to i32
    %c0_i32_0 = arith.constant 0 : i32
    %2 = arith.cmpi ne, %1, %c0_i32_0 : i32
    scf.if %2 {
      %cst_104 = arith.constant -1.000000e+30 : f32
      %179 = vector.broadcast %cst_104 : f32 to vector<4x8x1xf32>
      %c0_105 = arith.constant 0 : index
      %c0_106 = arith.constant 0 : index
      %c0_107 = arith.constant 0 : index
      %180 = vector.load %arg11[%c0_105, %c0_106, %c0_107] : memref<4x8x1xf32, #tpu.memory_space<vmem>>, vector<4x8x1xf32>
      tpu.vector_store %arg11[%c0_105, %c0_106, %c0_107], %179 {strides = array<i32>} : memref<4x8x1xf32, #tpu.memory_space<vmem>>, vector<4x8x1xf32>,
      %cst_108 = arith.constant 0.000000e+00 : f32
      %181 = vector.broadcast %cst_108 : f32 to vector<4x8x1xf32>
      %c0_109 = arith.constant 0 : index
      %c0_110 = arith.constant 0 : index
      %c0_111 = arith.constant 0 : index
      %182 = vector.load %arg12[%c0_109, %c0_110, %c0_111] : memref<4x8x1xf32, #tpu.memory_space<vmem>>, vector<4x8x1xf32>
      tpu.vector_store %arg12[%c0_109, %c0_110, %c0_111], %181 {strides = array<i32>} : memref<4x8x1xf32, #tpu.memory_space<vmem>>, vector<4x8x1xf32>,
      %cst_112 = arith.constant 0.000000e+00 : f32
      %183 = vector.broadcast %cst_112 : f32 to vector<4x8x8xf32>
      %c0_113 = arith.constant 0 : index
      %c0_114 = arith.constant 0 : index
      %c0_115 = arith.constant 0 : index
      %184 = vector.load %arg13[%c0_113, %c0_114, %c0_115] : memref<4x8x8xf32, #tpu.memory_space<vmem>>, vector<4x8x8xf32>
      tpu.vector_store %arg13[%c0_113, %c0_114, %c0_115], %183 {strides = array<i32>} : memref<4x8x8xf32, #tpu.memory_space<vmem>>, vector<4x8x8xf32>,
    } else {
    }
    %c0 = arith.constant 0 : index
    %c0_1 = arith.constant 0 : index
    %c0_2 = arith.constant 0 : index
    %3 = vector.load %arg4[%c0, %c0_1, %c0_2] : memref<1x8x32xbf16, #tpu.memory_space<vmem>>, vector<1x8x32xbf16>
    %4 = vector.shape_cast %3 : vector<1x8x32xbf16> to vector<8x32xbf16>
    %c0_3 = arith.constant 0 : index
    %c0_4 = arith.constant 0 : index
    %c0_5 = arith.constant 0 : index
    %5 = vector.load %arg5[%c0_3, %c0_4, %c0_5] : memref<1x8x32xbf16, #tpu.memory_space<vmem>>, vector<1x8x32xbf16>
    %6 = vector.shape_cast %5 : vector<1x8x32xbf16> to vector<8x32xbf16>
    %c0_6 = arith.constant 0 : index
    %c0_7 = arith.constant 0 : index
    %c0_8 = arith.constant 0 : index
    %7 = vector.load %arg6[%c0_6, %c0_7, %c0_8] : memref<1x8x32xbf16, #tpu.memory_space<vmem>>, vector<1x8x32xbf16>
    %8 = vector.shape_cast %7 : vector<1x8x32xbf16> to vector<8x32xbf16>
    %9 = tpu.iota {dimensions = array<i32: 0>} : vector<8x8xi32>
    %c8_i32 = arith.constant 8 : i32
    %10 = arith.muli %arg1, %c8_i32 : i32
    %11 = vector.broadcast %10 : i32 to vector<8x8xi32>
    %12 = arith.addi %9, %11 : vector<8x8xi32>
    %13 = tpu.iota {dimensions = array<i32: 1>} : vector<8x8xi32>
    %c8_i32_9 = arith.constant 8 : i32
    %14 = arith.muli %arg2, %c8_i32_9 : i32
    %15 = vector.broadcast %14 : i32 to vector<8x8xi32>
    %16 = arith.addi %13, %15 : vector<8x8xi32>
    %17 = arith.cmpi sle, %16, %12 : vector<8x8xi32>
    %c0_10 = arith.constant 0 : index
    %c0_11 = arith.constant 0 : index
    %c0_12 = arith.constant 0 : index
    %18 = vector.load %arg7[%c0_10, %c0_11, %c0_12] : memref<1x1x8xf32, #tpu.memory_space<vmem>>, vector<1x1x8xf32>
    %19 = vector.shape_cast %18 : vector<1x1x8xf32> to vector<1x8xf32>
    %cst = arith.constant 5.000000e-01 : f32
    %20 = vector.broadcast %cst : f32 to vector<1x8xf32>
    %21 = arith.cmpf ogt, %19, %20 : vector<1x8xf32>
    %22 = vector.broadcast %21 : vector<1x8xi1> to vector<8x8xi1>
    %23 = arith.andi %17, %22 : vector<8x8xi1>
    %24 = vector.extract_strided_slice %4 {offsets = [0, 0], sizes = [8, 8], strides = [1, 1]} : vector<8x32xbf16> to vector<8x8xbf16>
    %25 = vector.extract_strided_slice %6 {offsets = [0, 0], sizes = [8, 8], strides = [1, 1]} : vector<8x32xbf16> to vector<8x8xbf16>
    %26 = vector.extract_strided_slice %8 {offsets = [0, 0], sizes = [8, 8], strides = [1, 1]} : vector<8x32xbf16> to vector<8x8xbf16>
    %cst_13 = arith.constant dense<0.000000e+00> : vector<8x8xf32>
    %27 = tpu.matmul %24, %25, %cst_13 {dimension_numbers = #tpu.dot_dimension_numbers<[1], [1], [0], [0], [0, 0, 1, 0], [], []>} : vector<8x8xbf16>, vector<8x8xbf16>, vector<8x8xf32> -> vector<8x8xf32>
    %cst_14 = arith.constant -1.000000e+09 : f32
    %28 = vector.broadcast %cst_14 : f32 to vector<8x8xf32>
    %29 = arith.select %23, %27, %28 : vector<8x8xi1>, vector<8x8xf32>
    %c0_15 = arith.constant 0 : index
    %c0_16 = arith.constant 0 : index
    %c0_17 = arith.constant 0 : index
    %30 = vector.load %arg11[%c0_15, %c0_16, %c0_17] : memref<4x8x1xf32, #tpu.memory_space<vmem>>, vector<1x8x1xf32>
    %31 = vector.shape_cast %30 : vector<1x8x1xf32> to vector<8x1xf32>
    %cst_18 = arith.constant dense<0xFF800000> : vector<8xf32>
    %32 = vector.multi_reduction <maximumf>, %29, %cst_18 [1] : vector<8x8xf32> to vector<8xf32>
    %33 = vector.shape_cast %32 : vector<8xf32> to vector<8x1xf32>
    %34 = arith.maximumf %31, %33 : vector<8x1xf32>
    %35 = arith.subf %31, %34 : vector<8x1xf32>
    %36 = math.exp %35 : vector<8x1xf32>
    %37 = vector.broadcast %34 : vector<8x1xf32> to vector<8x8xf32>
    %38 = arith.subf %29, %37 : vector<8x8xf32>
    %39 = math.exp %38 : vector<8x8xf32>
    %c0_19 = arith.constant 0 : index
    %c0_20 = arith.constant 0 : index
    %c0_21 = arith.constant 0 : index
    %40 = vector.load %arg12[%c0_19, %c0_20, %c0_21] : memref<4x8x1xf32, #tpu.memory_space<vmem>>, vector<1x8x1xf32>
    %41 = vector.shape_cast %40 : vector<1x8x1xf32> to vector<8x1xf32>
    %42 = arith.mulf %36, %41 : vector<8x1xf32>
    %cst_22 = arith.constant dense<0.000000e+00> : vector<8xf32>
    %43 = vector.multi_reduction <add>, %39, %cst_22 [1] : vector<8x8xf32> to vector<8xf32>
    %44 = vector.shape_cast %43 : vector<8xf32> to vector<8x1xf32>
    %45 = arith.addf %42, %44 : vector<8x1xf32>
    %c0_23 = arith.constant 0 : index
    %c0_24 = arith.constant 0 : index
    %c0_25 = arith.constant 0 : index
    %46 = vector.load %arg12[%c0_23, %c0_24, %c0_25] : memref<4x8x1xf32, #tpu.memory_space<vmem>>, vector<1x8x1xf32>
    %47 = vector.shape_cast %46 : vector<1x8x1xf32> to vector<8x1xf32>
    %48 = vector.shape_cast %45 : vector<8x1xf32> to vector<1x8x1xf32>
    tpu.vector_store %arg12[%c0_23, %c0_24, %c0_25], %48 {strides = array<i32>} : memref<4x8x1xf32, #tpu.memory_space<vmem>>, vector<1x8x1xf32>,
    %c0_26 = arith.constant 0 : index
    %c0_27 = arith.constant 0 : index
    %c0_28 = arith.constant 0 : index
    %49 = vector.load %arg13[%c0_26, %c0_27, %c0_28] : memref<4x8x8xf32, #tpu.memory_space<vmem>>, vector<1x8x8xf32>
    %50 = vector.shape_cast %49 : vector<1x8x8xf32> to vector<8x8xf32>
    %51 = vector.broadcast %36 : vector<8x1xf32> to vector<8x8xf32>
    %52 = arith.mulf %51, %50 : vector<8x8xf32>
    %53 = arith.truncf %39 : vector<8x8xf32> to vector<8x8xbf16>
    %cst_29 = arith.constant dense<0.000000e+00> : vector<8x8xf32>
    %54 = tpu.matmul %53, %26, %cst_29 {dimension_numbers = #tpu.dot_dimension_numbers<[1], [0], [0], [1], [0, 0, 1, 1], [], []>} : vector<8x8xbf16>, vector<8x8xbf16>, vector<8x8xf32> -> vector<8x8xf32>
    %55 = arith.addf %52, %54 : vector<8x8xf32>
    %c0_30 = arith.constant 0 : index
    %c0_31 = arith.constant 0 : index
    %c0_32 = arith.constant 0 : index
    %56 = vector.load %arg13[%c0_30, %c0_31, %c0_32] : memref<4x8x8xf32, #tpu.memory_space<vmem>>, vector<1x8x8xf32>
    %57 = vector.shape_cast %56 : vector<1x8x8xf32> to vector<8x8xf32>
    %58 = vector.shape_cast %55 : vector<8x8xf32> to vector<1x8x8xf32>
    tpu.vector_store %arg13[%c0_30, %c0_31, %c0_32], %58 {strides = array<i32>} : memref<4x8x8xf32, #tpu.memory_space<vmem>>, vector<1x8x8xf32>,
    %c0_33 = arith.constant 0 : index
    %c0_34 = arith.constant 0 : index
    %c0_35 = arith.constant 0 : index
    %59 = vector.load %arg11[%c0_33, %c0_34, %c0_35] : memref<4x8x1xf32, #tpu.memory_space<vmem>>, vector<1x8x1xf32>
    %60 = vector.shape_cast %59 : vector<1x8x1xf32> to vector<8x1xf32>
    %61 = vector.shape_cast %34 : vector<8x1xf32> to vector<1x8x1xf32>
    tpu.vector_store %arg11[%c0_33, %c0_34, %c0_35], %61 {strides = array<i32>} : memref<4x8x1xf32, #tpu.memory_space<vmem>>, vector<1x8x1xf32>,
    %62 = vector.extract_strided_slice %4 {offsets = [0, 8], sizes = [8, 8], strides = [1, 1]} : vector<8x32xbf16> to vector<8x8xbf16>
    %63 = vector.extract_strided_slice %6 {offsets = [0, 8], sizes = [8, 8], strides = [1, 1]} : vector<8x32xbf16> to vector<8x8xbf16>
    %64 = vector.extract_strided_slice %8 {offsets = [0, 8], sizes = [8, 8], strides = [1, 1]} : vector<8x32xbf16> to vector<8x8xbf16>
    %cst_36 = arith.constant dense<0.000000e+00> : vector<8x8xf32>
    %65 = tpu.matmul %62, %63, %cst_36 {dimension_numbers = #tpu.dot_dimension_numbers<[1], [1], [0], [0], [0, 0, 1, 0], [], []>} : vector<8x8xbf16>, vector<8x8xbf16>, vector<8x8xf32> -> vector<8x8xf32>
    %cst_37 = arith.constant -1.000000e+09 : f32
    %66 = vector.broadcast %cst_37 : f32 to vector<8x8xf32>
    %67 = arith.select %23, %65, %66 : vector<8x8xi1>, vector<8x8xf32>
    %c1 = arith.constant 1 : index
    %c0_38 = arith.constant 0 : index
    %c0_39 = arith.constant 0 : index
    %68 = vector.load %arg11[%c1, %c0_38, %c0_39] : memref<4x8x1xf32, #tpu.memory_space<vmem>>, vector<1x8x1xf32>
    %69 = vector.shape_cast %68 : vector<1x8x1xf32> to vector<8x1xf32>
    %cst_40 = arith.constant dense<0xFF800000> : vector<8xf32>
    %70 = vector.multi_reduction <maximumf>, %67, %cst_40 [1] : vector<8x8xf32> to vector<8xf32>
    %71 = vector.shape_cast %70 : vector<8xf32> to vector<8x1xf32>
    %72 = arith.maximumf %69, %71 : vector<8x1xf32>
    %73 = arith.subf %69, %72 : vector<8x1xf32>
    %74 = math.exp %73 : vector<8x1xf32>
    %75 = vector.broadcast %72 : vector<8x1xf32> to vector<8x8xf32>
    %76 = arith.subf %67, %75 : vector<8x8xf32>
    %77 = math.exp %76 : vector<8x8xf32>
    %c1_41 = arith.constant 1 : index
    %c0_42 = arith.constant 0 : index
    %c0_43 = arith.constant 0 : index
    %78 = vector.load %arg12[%c1_41, %c0_42, %c0_43] : memref<4x8x1xf32, #tpu.memory_space<vmem>>, vector<1x8x1xf32>
    %79 = vector.shape_cast %78 : vector<1x8x1xf32> to vector<8x1xf32>
    %80 = arith.mulf %74, %79 : vector<8x1xf32>
    %cst_44 = arith.constant dense<0.000000e+00> : vector<8xf32>
    %81 = vector.multi_reduction <add>, %77, %cst_44 [1] : vector<8x8xf32> to vector<8xf32>
    %82 = vector.shape_cast %81 : vector<8xf32> to vector<8x1xf32>
    %83 = arith.addf %80, %82 : vector<8x1xf32>
    %c1_45 = arith.constant 1 : index
    %c0_46 = arith.constant 0 : index
    %c0_47 = arith.constant 0 : index
    %84 = vector.load %arg12[%c1_45, %c0_46, %c0_47] : memref<4x8x1xf32, #tpu.memory_space<vmem>>, vector<1x8x1xf32>
    %85 = vector.shape_cast %84 : vector<1x8x1xf32> to vector<8x1xf32>
    %86 = vector.shape_cast %83 : vector<8x1xf32> to vector<1x8x1xf32>
    tpu.vector_store %arg12[%c1_45, %c0_46, %c0_47], %86 {strides = array<i32>} : memref<4x8x1xf32, #tpu.memory_space<vmem>>, vector<1x8x1xf32>,
    %c1_48 = arith.constant 1 : index
    %c0_49 = arith.constant 0 : index
    %c0_50 = arith.constant 0 : index
    %87 = vector.load %arg13[%c1_48, %c0_49, %c0_50] : memref<4x8x8xf32, #tpu.memory_space<vmem>>, vector<1x8x8xf32>
    %88 = vector.shape_cast %87 : vector<1x8x8xf32> to vector<8x8xf32>
    %89 = vector.broadcast %74 : vector<8x1xf32> to vector<8x8xf32>
    %90 = arith.mulf %89, %88 : vector<8x8xf32>
    %91 = arith.truncf %77 : vector<8x8xf32> to vector<8x8xbf16>
    %cst_51 = arith.constant dense<0.000000e+00> : vector<8x8xf32>
    %92 = tpu.matmul %91, %64, %cst_51 {dimension_numbers = #tpu.dot_dimension_numbers<[1], [0], [0], [1], [0, 0, 1, 1], [], []>} : vector<8x8xbf16>, vector<8x8xbf16>, vector<8x8xf32> -> vector<8x8xf32>
    %93 = arith.addf %90, %92 : vector<8x8xf32>
    %c1_52 = arith.constant 1 : index
    %c0_53 = arith.constant 0 : index
    %c0_54 = arith.constant 0 : index
    %94 = vector.load %arg13[%c1_52, %c0_53, %c0_54] : memref<4x8x8xf32, #tpu.memory_space<vmem>>, vector<1x8x8xf32>
    %95 = vector.shape_cast %94 : vector<1x8x8xf32> to vector<8x8xf32>
    %96 = vector.shape_cast %93 : vector<8x8xf32> to vector<1x8x8xf32>
    tpu.vector_store %arg13[%c1_52, %c0_53, %c0_54], %96 {strides = array<i32>} : memref<4x8x8xf32, #tpu.memory_space<vmem>>, vector<1x8x8xf32>,
    %c1_55 = arith.constant 1 : index
    %c0_56 = arith.constant 0 : index
    %c0_57 = arith.constant 0 : index
    %97 = vector.load %arg11[%c1_55, %c0_56, %c0_57] : memref<4x8x1xf32, #tpu.memory_space<vmem>>, vector<1x8x1xf32>
    %98 = vector.shape_cast %97 : vector<1x8x1xf32> to vector<8x1xf32>
    %99 = vector.shape_cast %72 : vector<8x1xf32> to vector<1x8x1xf32>
    tpu.vector_store %arg11[%c1_55, %c0_56, %c0_57], %99 {strides = array<i32>} : memref<4x8x1xf32, #tpu.memory_space<vmem>>, vector<1x8x1xf32>,
    %100 = vector.extract_strided_slice %4 {offsets = [0, 16], sizes = [8, 8], strides = [1, 1]} : vector<8x32xbf16> to vector<8x8xbf16>
    %101 = vector.extract_strided_slice %6 {offsets = [0, 16], sizes = [8, 8], strides = [1, 1]} : vector<8x32xbf16> to vector<8x8xbf16>
    %102 = vector.extract_strided_slice %8 {offsets = [0, 16], sizes = [8, 8], strides = [1, 1]} : vector<8x32xbf16> to vector<8x8xbf16>
    %cst_58 = arith.constant dense<0.000000e+00> : vector<8x8xf32>
    %103 = tpu.matmul %100, %101, %cst_58 {dimension_numbers = #tpu.dot_dimension_numbers<[1], [1], [0], [0], [0, 0, 1, 0], [], []>} : vector<8x8xbf16>, vector<8x8xbf16>, vector<8x8xf32> -> vector<8x8xf32>
    %cst_59 = arith.constant -1.000000e+09 : f32
    %104 = vector.broadcast %cst_59 : f32 to vector<8x8xf32>
    %105 = arith.select %23, %103, %104 : vector<8x8xi1>, vector<8x8xf32>
    %c2 = arith.constant 2 : index
    %c0_60 = arith.constant 0 : index
    %c0_61 = arith.constant 0 : index
    %106 = vector.load %arg11[%c2, %c0_60, %c0_61] : memref<4x8x1xf32, #tpu.memory_space<vmem>>, vector<1x8x1xf32>
    %107 = vector.shape_cast %106 : vector<1x8x1xf32> to vector<8x1xf32>
    %cst_62 = arith.constant dense<0xFF800000> : vector<8xf32>
    %108 = vector.multi_reduction <maximumf>, %105, %cst_62 [1] : vector<8x8xf32> to vector<8xf32>
    %109 = vector.shape_cast %108 : vector<8xf32> to vector<8x1xf32>
    %110 = arith.maximumf %107, %109 : vector<8x1xf32>
    %111 = arith.subf %107, %110 : vector<8x1xf32>
    %112 = math.exp %111 : vector<8x1xf32>
    %113 = vector.broadcast %110 : vector<8x1xf32> to vector<8x8xf32>
    %114 = arith.subf %105, %113 : vector<8x8xf32>
    %115 = math.exp %114 : vector<8x8xf32>
    %c2_63 = arith.constant 2 : index
    %c0_64 = arith.constant 0 : index
    %c0_65 = arith.constant 0 : index
    %116 = vector.load %arg12[%c2_63, %c0_64, %c0_65] : memref<4x8x1xf32, #tpu.memory_space<vmem>>, vector<1x8x1xf32>
    %117 = vector.shape_cast %116 : vector<1x8x1xf32> to vector<8x1xf32>
    %118 = arith.mulf %112, %117 : vector<8x1xf32>
    %cst_66 = arith.constant dense<0.000000e+00> : vector<8xf32>
    %119 = vector.multi_reduction <add>, %115, %cst_66 [1] : vector<8x8xf32> to vector<8xf32>
    %120 = vector.shape_cast %119 : vector<8xf32> to vector<8x1xf32>
    %121 = arith.addf %118, %120 : vector<8x1xf32>
    %c2_67 = arith.constant 2 : index
    %c0_68 = arith.constant 0 : index
    %c0_69 = arith.constant 0 : index
    %122 = vector.load %arg12[%c2_67, %c0_68, %c0_69] : memref<4x8x1xf32, #tpu.memory_space<vmem>>, vector<1x8x1xf32>
    %123 = vector.shape_cast %122 : vector<1x8x1xf32> to vector<8x1xf32>
    %124 = vector.shape_cast %121 : vector<8x1xf32> to vector<1x8x1xf32>
    tpu.vector_store %arg12[%c2_67, %c0_68, %c0_69], %124 {strides = array<i32>} : memref<4x8x1xf32, #tpu.memory_space<vmem>>, vector<1x8x1xf32>,
    %c2_70 = arith.constant 2 : index
    %c0_71 = arith.constant 0 : index
    %c0_72 = arith.constant 0 : index
    %125 = vector.load %arg13[%c2_70, %c0_71, %c0_72] : memref<4x8x8xf32, #tpu.memory_space<vmem>>, vector<1x8x8xf32>
    %126 = vector.shape_cast %125 : vector<1x8x8xf32> to vector<8x8xf32>
    %127 = vector.broadcast %112 : vector<8x1xf32> to vector<8x8xf32>
    %128 = arith.mulf %127, %126 : vector<8x8xf32>
    %129 = arith.truncf %115 : vector<8x8xf32> to vector<8x8xbf16>
    %cst_73 = arith.constant dense<0.000000e+00> : vector<8x8xf32>
    %130 = tpu.matmul %129, %102, %cst_73 {dimension_numbers = #tpu.dot_dimension_numbers<[1], [0], [0], [1], [0, 0, 1, 1], [], []>} : vector<8x8xbf16>, vector<8x8xbf16>, vector<8x8xf32> -> vector<8x8xf32>
    %131 = arith.addf %128, %130 : vector<8x8xf32>
    %c2_74 = arith.constant 2 : index
    %c0_75 = arith.constant 0 : index
    %c0_76 = arith.constant 0 : index
    %132 = vector.load %arg13[%c2_74, %c0_75, %c0_76] : memref<4x8x8xf32, #tpu.memory_space<vmem>>, vector<1x8x8xf32>
    %133 = vector.shape_cast %132 : vector<1x8x8xf32> to vector<8x8xf32>
    %134 = vector.shape_cast %131 : vector<8x8xf32> to vector<1x8x8xf32>
    tpu.vector_store %arg13[%c2_74, %c0_75, %c0_76], %134 {strides = array<i32>} : memref<4x8x8xf32, #tpu.memory_space<vmem>>, vector<1x8x8xf32>,
    %c2_77 = arith.constant 2 : index
    %c0_78 = arith.constant 0 : index
    %c0_79 = arith.constant 0 : index
    %135 = vector.load %arg11[%c2_77, %c0_78, %c0_79] : memref<4x8x1xf32, #tpu.memory_space<vmem>>, vector<1x8x1xf32>
    %136 = vector.shape_cast %135 : vector<1x8x1xf32> to vector<8x1xf32>
    %137 = vector.shape_cast %110 : vector<8x1xf32> to vector<1x8x1xf32>
    tpu.vector_store %arg11[%c2_77, %c0_78, %c0_79], %137 {strides = array<i32>} : memref<4x8x1xf32, #tpu.memory_space<vmem>>, vector<1x8x1xf32>,
    %138 = vector.extract_strided_slice %4 {offsets = [0, 24], sizes = [8, 8], strides = [1, 1]} : vector<8x32xbf16> to vector<8x8xbf16>
    %139 = vector.extract_strided_slice %6 {offsets = [0, 24], sizes = [8, 8], strides = [1, 1]} : vector<8x32xbf16> to vector<8x8xbf16>
    %140 = vector.extract_strided_slice %8 {offsets = [0, 24], sizes = [8, 8], strides = [1, 1]} : vector<8x32xbf16> to vector<8x8xbf16>
    %cst_80 = arith.constant dense<0.000000e+00> : vector<8x8xf32>
    %141 = tpu.matmul %138, %139, %cst_80 {dimension_numbers = #tpu.dot_dimension_numbers<[1], [1], [0], [0], [0, 0, 1, 0], [], []>} : vector<8x8xbf16>, vector<8x8xbf16>, vector<8x8xf32> -> vector<8x8xf32>
    %cst_81 = arith.constant -1.000000e+09 : f32
    %142 = vector.broadcast %cst_81 : f32 to vector<8x8xf32>
    %143 = arith.select %23, %141, %142 : vector<8x8xi1>, vector<8x8xf32>
    %c3 = arith.constant 3 : index
    %c0_82 = arith.constant 0 : index
    %c0_83 = arith.constant 0 : index
    %144 = vector.load %arg11[%c3, %c0_82, %c0_83] : memref<4x8x1xf32, #tpu.memory_space<vmem>>, vector<1x8x1xf32>
    %145 = vector.shape_cast %144 : vector<1x8x1xf32> to vector<8x1xf32>
    %cst_84 = arith.constant dense<0xFF800000> : vector<8xf32>
    %146 = vector.multi_reduction <maximumf>, %143, %cst_84 [1] : vector<8x8xf32> to vector<8xf32>
    %147 = vector.shape_cast %146 : vector<8xf32> to vector<8x1xf32>
    %148 = arith.maximumf %145, %147 : vector<8x1xf32>
    %149 = arith.subf %145, %148 : vector<8x1xf32>
    %150 = math.exp %149 : vector<8x1xf32>
    %151 = vector.broadcast %148 : vector<8x1xf32> to vector<8x8xf32>
    %152 = arith.subf %143, %151 : vector<8x8xf32>
    %153 = math.exp %152 : vector<8x8xf32>
    %c3_85 = arith.constant 3 : index
    %c0_86 = arith.constant 0 : index
    %c0_87 = arith.constant 0 : index
    %154 = vector.load %arg12[%c3_85, %c0_86, %c0_87] : memref<4x8x1xf32, #tpu.memory_space<vmem>>, vector<1x8x1xf32>
    %155 = vector.shape_cast %154 : vector<1x8x1xf32> to vector<8x1xf32>
    %156 = arith.mulf %150, %155 : vector<8x1xf32>
    %cst_88 = arith.constant dense<0.000000e+00> : vector<8xf32>
    %157 = vector.multi_reduction <add>, %153, %cst_88 [1] : vector<8x8xf32> to vector<8xf32>
    %158 = vector.shape_cast %157 : vector<8xf32> to vector<8x1xf32>
    %159 = arith.addf %156, %158 : vector<8x1xf32>
    %c3_89 = arith.constant 3 : index
    %c0_90 = arith.constant 0 : index
    %c0_91 = arith.constant 0 : index
    %160 = vector.load %arg12[%c3_89, %c0_90, %c0_91] : memref<4x8x1xf32, #tpu.memory_space<vmem>>, vector<1x8x1xf32>
    %161 = vector.shape_cast %160 : vector<1x8x1xf32> to vector<8x1xf32>
    %162 = vector.shape_cast %159 : vector<8x1xf32> to vector<1x8x1xf32>
    tpu.vector_store %arg12[%c3_89, %c0_90, %c0_91], %162 {strides = array<i32>} : memref<4x8x1xf32, #tpu.memory_space<vmem>>, vector<1x8x1xf32>,
    %c3_92 = arith.constant 3 : index
    %c0_93 = arith.constant 0 : index
    %c0_94 = arith.constant 0 : index
    %163 = vector.load %arg13[%c3_92, %c0_93, %c0_94] : memref<4x8x8xf32, #tpu.memory_space<vmem>>, vector<1x8x8xf32>
    %164 = vector.shape_cast %163 : vector<1x8x8xf32> to vector<8x8xf32>
    %165 = vector.broadcast %150 : vector<8x1xf32> to vector<8x8xf32>
    %166 = arith.mulf %165, %164 : vector<8x8xf32>
    %167 = arith.truncf %153 : vector<8x8xf32> to vector<8x8xbf16>
    %cst_95 = arith.constant dense<0.000000e+00> : vector<8x8xf32>
    %168 = tpu.matmul %167, %140, %cst_95 {dimension_numbers = #tpu.dot_dimension_numbers<[1], [0], [0], [1], [0, 0, 1, 1], [], []>} : vector<8x8xbf16>, vector<8x8xbf16>, vector<8x8xf32> -> vector<8x8xf32>
    %169 = arith.addf %166, %168 : vector<8x8xf32>
    %c3_96 = arith.constant 3 : index
    %c0_97 = arith.constant 0 : index
    %c0_98 = arith.constant 0 : index
    %170 = vector.load %arg13[%c3_96, %c0_97, %c0_98] : memref<4x8x8xf32, #tpu.memory_space<vmem>>, vector<1x8x8xf32>
    %171 = vector.shape_cast %170 : vector<1x8x8xf32> to vector<8x8xf32>
    %172 = vector.shape_cast %169 : vector<8x8xf32> to vector<1x8x8xf32>
    tpu.vector_store %arg13[%c3_96, %c0_97, %c0_98], %172 {strides = array<i32>} : memref<4x8x8xf32, #tpu.memory_space<vmem>>, vector<1x8x8xf32>,
    %c3_99 = arith.constant 3 : index
    %c0_100 = arith.constant 0 : index
    %c0_101 = arith.constant 0 : index
    %173 = vector.load %arg11[%c3_99, %c0_100, %c0_101] : memref<4x8x1xf32, #tpu.memory_space<vmem>>, vector<1x8x1xf32>
    %174 = vector.shape_cast %173 : vector<1x8x1xf32> to vector<8x1xf32>
    %175 = vector.shape_cast %148 : vector<8x1xf32> to vector<1x8x1xf32>
    tpu.vector_store %arg11[%c3_99, %c0_100, %c0_101], %175 {strides = array<i32>} : memref<4x8x1xf32, #tpu.memory_space<vmem>>, vector<1x8x1xf32>,
    %c0_i32_102 = arith.constant 0 : i32
    %176 = arith.cmpi eq, %arg2, %c0_i32_102 : i32
    %177 = arith.extui %176 : i1 to i32
    %c0_i32_103 = arith.constant 0 : i32
    %178 = arith.cmpi ne, %177, %c0_i32_103 : i32
    scf.if %178 {
      %c0_104 = arith.constant 0 : index
      %c0_105 = arith.constant 0 : index
      %c0_106 = arith.constant 0 : index
      %179 = vector.load %arg13[%c0_104, %c0_105, %c0_106] : memref<4x8x8xf32, #tpu.memory_space<vmem>>, vector<1x8x8xf32>
      %180 = vector.shape_cast %179 : vector<1x8x8xf32> to vector<8x8xf32>
      %c0_107 = arith.constant 0 : index
      %c0_108 = arith.constant 0 : index
      %c0_109 = arith.constant 0 : index
      %181 = vector.load %arg12[%c0_107, %c0_108, %c0_109] : memref<4x8x1xf32, #tpu.memory_space<vmem>>, vector<1x8x1xf32>
      %182 = vector.shape_cast %181 : vector<1x8x1xf32> to vector<8x1xf32>
      %183 = tpu.reciprocal %182 {approx = true} : vector<8x1xf32> -> vector<8x1xf32>
      %184 = vector.broadcast %183 : vector<8x1xf32> to vector<8x8xf32>
      %185 = arith.mulf %180, %184 : vector<8x8xf32>
      %186 = arith.truncf %185 : vector<8x8xf32> to vector<8x8xbf16>
      %c1_110 = arith.constant 1 : index
      %c0_111 = arith.constant 0 : index
      %c0_112 = arith.constant 0 : index
      %187 = vector.load %arg13[%c1_110, %c0_111, %c0_112] : memref<4x8x8xf32, #tpu.memory_space<vmem>>, vector<1x8x8xf32>
      %188 = vector.shape_cast %187 : vector<1x8x8xf32> to vector<8x8xf32>
      %c1_113 = arith.constant 1 : index
      %c0_114 = arith.constant 0 : index
      %c0_115 = arith.constant 0 : index
      %189 = vector.load %arg12[%c1_113, %c0_114, %c0_115] : memref<4x8x1xf32, #tpu.memory_space<vmem>>, vector<1x8x1xf32>
      %190 = vector.shape_cast %189 : vector<1x8x1xf32> to vector<8x1xf32>
      %191 = tpu.reciprocal %190 {approx = true} : vector<8x1xf32> -> vector<8x1xf32>
      %192 = vector.broadcast %191 : vector<8x1xf32> to vector<8x8xf32>
      %193 = arith.mulf %188, %192 : vector<8x8xf32>
      %194 = arith.truncf %193 : vector<8x8xf32> to vector<8x8xbf16>
      %c2_116 = arith.constant 2 : index
      %c0_117 = arith.constant 0 : index
      %c0_118 = arith.constant 0 : index
      %195 = vector.load %arg13[%c2_116, %c0_117, %c0_118] : memref<4x8x8xf32, #tpu.memory_space<vmem>>, vector<1x8x8xf32>
      %196 = vector.shape_cast %195 : vector<1x8x8xf32> to vector<8x8xf32>
      %c2_119 = arith.constant 2 : index
      %c0_120 = arith.constant 0 : index
      %c0_121 = arith.constant 0 : index
      %197 = vector.load %arg12[%c2_119, %c0_120, %c0_121] : memref<4x8x1xf32, #tpu.memory_space<vmem>>, vector<1x8x1xf32>
      %198 = vector.shape_cast %197 : vector<1x8x1xf32> to vector<8x1xf32>
      %199 = tpu.reciprocal %198 {approx = true} : vector<8x1xf32> -> vector<8x1xf32>
      %200 = vector.broadcast %199 : vector<8x1xf32> to vector<8x8xf32>
      %201 = arith.mulf %196, %200 : vector<8x8xf32>
      %202 = arith.truncf %201 : vector<8x8xf32> to vector<8x8xbf16>
      %c3_122 = arith.constant 3 : index
      %c0_123 = arith.constant 0 : index
      %c0_124 = arith.constant 0 : index
      %203 = vector.load %arg13[%c3_122, %c0_123, %c0_124] : memref<4x8x8xf32, #tpu.memory_space<vmem>>, vector<1x8x8xf32>
      %204 = vector.shape_cast %203 : vector<1x8x8xf32> to vector<8x8xf32>
      %c3_125 = arith.constant 3 : index
      %c0_126 = arith.constant 0 : index
      %c0_127 = arith.constant 0 : index
      %205 = vector.load %arg12[%c3_125, %c0_126, %c0_127] : memref<4x8x1xf32, #tpu.memory_space<vmem>>, vector<1x8x1xf32>
      %206 = vector.shape_cast %205 : vector<1x8x1xf32> to vector<8x1xf32>
      %207 = tpu.reciprocal %206 {approx = true} : vector<8x1xf32> -> vector<8x1xf32>
      %208 = vector.broadcast %207 : vector<8x1xf32> to vector<8x8xf32>
      %209 = arith.mulf %204, %208 : vector<8x8xf32>
      %210 = arith.truncf %209 : vector<8x8xf32> to vector<8x8xbf16>
      %211 = tpu.concatenate %186, %194, %202, %210 in 1 : vector<8x8xbf16>, vector<8x8xbf16>, vector<8x8xbf16>, vector<8x8xbf16> -> vector<8x32xbf16>
      %c0_128 = arith.constant 0 : index
      %c0_129 = arith.constant 0 : index
      %212 = vector.load %arg8[%c0_128, %c0_129] : memref<32x32xbf16, #tpu.memory_space<vmem>>, vector<32x32xbf16>
      %cst_130 = arith.constant dense<0.000000e+00> : vector<8x32xf32>
      %213 = tpu.matmul %211, %212, %cst_130 {dimension_numbers = #tpu.dot_dimension_numbers<[1], [0], [0], [1], [0, 0, 1, 1], [], []>} : vector<8x32xbf16>, vector<32x32xbf16>, vector<8x32xf32> -> vector<8x32xf32>
      %c0_131 = arith.constant 0 : index
      %c0_132 = arith.constant 0 : index
      %214 = vector.load %arg9[%c0_131, %c0_132] : memref<1x32xf32, #tpu.memory_space<vmem>>, vector<1x32xf32>
      %215 = vector.broadcast %214 : vector<1x32xf32> to vector<8x32xf32>
      %216 = arith.addf %213, %215 : vector<8x32xf32>
      %c0_133 = arith.constant 0 : index
      %c0_134 = arith.constant 0 : index
      %c0_135 = arith.constant 0 : index
      %217 = vector.load %arg3[%c0_133, %c0_134, %c0_135] : memref<1x8x32xbf16, #tpu.memory_space<vmem>>, vector<1x8x32xbf16>
      %218 = vector.shape_cast %217 : vector<1x8x32xbf16> to vector<8x32xbf16>
      %219 = arith.extf %218 : vector<8x32xbf16> to vector<8x32xf32>
      %220 = arith.addf %219, %216 : vector<8x32xf32>
      %221 = arith.truncf %220 : vector<8x32xf32> to vector<8x32xbf16>
      %c0_136 = arith.constant 0 : index
      %c0_137 = arith.constant 0 : index
      %c0_138 = arith.constant 0 : index
      %222 = vector.load %arg10[%c0_136, %c0_137, %c0_138] : memref<1x8x32xbf16, #tpu.memory_space<vmem>>, vector<1x8x32xbf16>
      %223 = vector.shape_cast %222 : vector<1x8x32xbf16> to vector<8x32xbf16>
      %224 = vector.shape_cast %221 : vector<8x32xbf16> to vector<1x8x32xbf16>
      tpu.vector_store %arg10[%c0_136, %c0_137, %c0_138], %224 {strides = array<i32>} : memref<1x8x32xbf16, #tpu.memory_space<vmem>>, vector<1x8x32xbf16>,
    } else {
    }
    return
  }
  func.func @transform_0(%arg0: i32, %arg1: i32, %arg2: i32) -> (i32, i32, i32) {
    %c0_i32 = arith.constant 0 : i32
    %c0_i32_0 = arith.constant 0 : i32
    return %arg0, %arg1, %c0_i32 : i32, i32, i32
  }
  func.func @transform_1(%arg0: i32, %arg1: i32, %arg2: i32) -> (i32, i32, i32) {
    %c0_i32 = arith.constant 0 : i32
    %c0_i32_0 = arith.constant 0 : i32
    return %arg0, %arg1, %c0_i32 : i32, i32, i32
  }
  func.func @transform_2(%arg0: i32, %arg1: i32, %arg2: i32) -> (i32, i32, i32) {
    %c0_i32 = arith.constant 0 : i32
    %c0_i32_0 = arith.constant 0 : i32
    return %arg0, %arg2, %c0_i32 : i32, i32, i32
  }
  func.func @transform_3(%arg0: i32, %arg1: i32, %arg2: i32) -> (i32, i32, i32) {
    %c0_i32 = arith.constant 0 : i32
    %c0_i32_0 = arith.constant 0 : i32
    return %arg0, %arg2, %c0_i32 : i32, i32, i32
  }
  func.func @transform_4(%arg0: i32, %arg1: i32, %arg2: i32) -> (i32, i32, i32) {
    %c0_i32 = arith.constant 0 : i32
    %c0_i32_0 = arith.constant 0 : i32
    return %arg0, %c0_i32, %arg2 : i32, i32, i32
  }
  func.func @transform_5(%arg0: i32, %arg1: i32, %arg2: i32) -> (i32, i32) {
    %c0_i32 = arith.constant 0 : i32
    %c0_i32_0 = arith.constant 0 : i32
    %c0_i32_1 = arith.constant 0 : i32
    return %c0_i32, %c0_i32_0 : i32, i32
  }
  func.func @transform_6(%arg0: i32, %arg1: i32, %arg2: i32) -> (i32, i32) {
    %c0_i32 = arith.constant 0 : i32
    %c0_i32_0 = arith.constant 0 : i32
    %c0_i32_1 = arith.constant 0 : i32
    return %c0_i32, %c0_i32_0 : i32, i32
  }
  func.func @transform_7(%arg0: i32, %arg1: i32, %arg2: i32) -> (i32, i32, i32) {
    %c0_i32 = arith.constant 0 : i32
    %c0_i32_0 = arith.constant 0 : i32
    return %arg0, %arg1, %c0_i32 : i32, i32, i32
  }
}

module attributes {stable_mosaic.version = 11 : i64} {
  func.func @_head_kernel(%arg0: i32, %arg1: memref<2x128xbf16, #tpu.memory_space<vmem>>, %arg2: memref<128x128xbf16, #tpu.memory_space<vmem>>, %arg3: memref<1x128xf32, #tpu.memory_space<vmem>>, %arg4: memref<2x128xf32, #tpu.memory_space<vmem>>) attributes {dimension_semantics = [#tpu.dimension_semantics<arbitrary>], iteration_bounds = array<i64: 2>, scalar_prefetch = 0 : i64, scratch_operands = 0 : i64, tpu.core_type = #tpu.core_type<tc>, window_params = [{transform_indices = @transform_0, window_bounds = array<i64: 2, 128>}, {transform_indices = @transform_1, window_bounds = array<i64: 128, 128>}, {pipeline_mode = #tpu.pipeline_mode<synchronous>, transform_indices = @transform_2, window_bounds = array<i64: 1, 128>}, {pipeline_mode = #tpu.pipeline_mode<synchronous>, transform_indices = @transform_3, window_bounds = array<i64: 2, 128>}]} {
    %c0_i32 = arith.constant 0 : i32
    %0 = arith.cmpi eq, %arg0, %c0_i32 : i32
    %1 = arith.extui %0 : i1 to i32
    %c0_i32_0 = arith.constant 0 : i32
    %2 = arith.cmpi ne, %1, %c0_i32_0 : i32
    scf.if %2 {
      %cst_9 = arith.constant 0.000000e+00 : f32
      %12 = vector.broadcast %cst_9 : f32 to vector<2x128xf32>
      %c0_10 = arith.constant 0 : index
      %c0_11 = arith.constant 0 : index
      %13 = vector.load %arg4[%c0_10, %c0_11] : memref<2x128xf32, #tpu.memory_space<vmem>>, vector<2x128xf32>
      tpu.vector_store %arg4[%c0_10, %c0_11], %12 {strides = array<i32>} : memref<2x128xf32, #tpu.memory_space<vmem>>, vector<2x128xf32>,
    } else {
    }
    %c0 = arith.constant 0 : index
    %c0_1 = arith.constant 0 : index
    %3 = vector.load %arg4[%c0, %c0_1] : memref<2x128xf32, #tpu.memory_space<vmem>>, vector<2x128xf32>
    %c0_2 = arith.constant 0 : index
    %c0_3 = arith.constant 0 : index
    %4 = vector.load %arg1[%c0_2, %c0_3] : memref<2x128xbf16, #tpu.memory_space<vmem>>, vector<2x128xbf16>
    %c0_4 = arith.constant 0 : index
    %c0_5 = arith.constant 0 : index
    %5 = vector.load %arg2[%c0_4, %c0_5] : memref<128x128xbf16, #tpu.memory_space<vmem>>, vector<128x128xbf16>
    %cst = arith.constant dense<0.000000e+00> : vector<2x128xf32>
    %6 = tpu.matmul %4, %5, %cst {dimension_numbers = #tpu.dot_dimension_numbers<[1], [0], [0], [1], [0, 0, 1, 1], [], []>} : vector<2x128xbf16>, vector<128x128xbf16>, vector<2x128xf32> -> vector<2x128xf32>
    %7 = arith.addf %3, %6 : vector<2x128xf32>
    %c0_6 = arith.constant 0 : index
    %c0_7 = arith.constant 0 : index
    %8 = vector.load %arg4[%c0_6, %c0_7] : memref<2x128xf32, #tpu.memory_space<vmem>>, vector<2x128xf32>
    tpu.vector_store %arg4[%c0_6, %c0_7], %7 {strides = array<i32>} : memref<2x128xf32, #tpu.memory_space<vmem>>, vector<2x128xf32>,
    %c1_i32 = arith.constant 1 : i32
    %9 = arith.cmpi eq, %arg0, %c1_i32 : i32
    %10 = arith.extui %9 : i1 to i32
    %c0_i32_8 = arith.constant 0 : i32
    %11 = arith.cmpi ne, %10, %c0_i32_8 : i32
    scf.if %11 {
      %c0_9 = arith.constant 0 : index
      %c0_10 = arith.constant 0 : index
      %12 = vector.load %arg4[%c0_9, %c0_10] : memref<2x128xf32, #tpu.memory_space<vmem>>, vector<2x128xf32>
      %c0_11 = arith.constant 0 : index
      %c0_12 = arith.constant 0 : index
      %13 = vector.load %arg3[%c0_11, %c0_12] : memref<1x128xf32, #tpu.memory_space<vmem>>, vector<1x128xf32>
      %14 = vector.broadcast %13 : vector<1x128xf32> to vector<2x128xf32>
      %15 = arith.addf %12, %14 : vector<2x128xf32>
      %c0_13 = arith.constant 0 : index
      %c0_14 = arith.constant 0 : index
      %16 = vector.load %arg4[%c0_13, %c0_14] : memref<2x128xf32, #tpu.memory_space<vmem>>, vector<2x128xf32>
      tpu.vector_store %arg4[%c0_13, %c0_14], %15 {strides = array<i32>} : memref<2x128xf32, #tpu.memory_space<vmem>>, vector<2x128xf32>,
    } else {
    }
    return
  }
  func.func @transform_0(%arg0: i32) -> (i32, i32) {
    %c0_i32 = arith.constant 0 : i32
    %c0_i32_0 = arith.constant 0 : i32
    return %c0_i32, %arg0 : i32, i32
  }
  func.func @transform_1(%arg0: i32) -> (i32, i32) {
    %c0_i32 = arith.constant 0 : i32
    %c0_i32_0 = arith.constant 0 : i32
    return %arg0, %c0_i32 : i32, i32
  }
  func.func @transform_2(%arg0: i32) -> (i32, i32) {
    %c0_i32 = arith.constant 0 : i32
    %c0_i32_0 = arith.constant 0 : i32
    %c0_i32_1 = arith.constant 0 : i32
    return %c0_i32, %c0_i32_0 : i32, i32
  }
  func.func @transform_3(%arg0: i32) -> (i32, i32) {
    %c0_i32 = arith.constant 0 : i32
    %c0_i32_0 = arith.constant 0 : i32
    %c0_i32_1 = arith.constant 0 : i32
    return %c0_i32, %c0_i32_0 : i32, i32
  }
}

</mosaic_0001>

<llo_original>
// kernel: gpt2_classifier_forward.12
$region0: #{gpt2_classifier_forward.12}
  #allocation0 [shape = 'u32[]', space=smem, size = 0x4, offset = 0x4, fixed_abs, tag = 'smem constant byte address 0x4 - core index']
  #allocation1 [shape = 'u32[72,128]{1,0:T(1,128)}', space=vmem, size = 0x9000, scoped, tag = 'internal scratch']
  %s0 = inlined_call_operand.vmem [shape: bf16[16,32], index: 0, kind: input, shape index: {}]
  %s1 = inlined_call_operand.vmem [shape: f32[1,32], index: 1, kind: input, shape index: {}]
  %s2 = inlined_call_operand.vmem [shape: f32[1,32], index: 2, kind: input, shape index: {}]
  %s3 = inlined_call_operand.vmem [shape: bf16[32,128], index: 3, kind: input, shape index: {}]
  %s4 = inlined_call_operand.vmem [shape: f32[1,128], index: 4, kind: input, shape index: {}]
  %s5 = inlined_call_operand.vmem [shape: bf16[128,32], index: 5, kind: input, shape index: {}]
  %s6 = inlined_call_operand.vmem [shape: f32[1,32], index: 6, kind: input, shape index: {}]
  %s7 = inlined_call_operand.vmem [shape: f32[1,32], index: 7, kind: input, shape index: {}]
  %s8 = inlined_call_operand.vmem [shape: f32[1,32], index: 8, kind: input, shape index: {}]
  %s9 = inlined_call_operand.vmem [shape: bf16[16,32], index: 9, kind: output, shape index: {}]
  %s10 = sld [smem:[#allocation0]]
  $region69: #{gpt2_classifier_forward.12} parent=0
    _
  %s12 = ssub.s32 1, %s10
  %s13 = scalar_select 0, %s12, %s10
  loop: start=0, step=1, limit=4
  $region2: #{gpt2_classifier_forward.12} parent=0 // loop_pre_header
    _
  $region3: #{gpt2_classifier_forward.12} parent=0 // loop_header
    %s15 = sphi 0, %s19
    %p16 = scmp.ge.s32.totalorder %s15, 4
    %s25 = sphi 0, %s27
    %s28 = sphi 0, %s25
    %s29 = sphi 0, %s28
    %s45 = sphi 0, %s29
    %s49 = sphi 0, %s49
    %s51 = sphi 0, %s49
    %s52 = sphi 0, %s51
    %s66 = sphi 0, %s52
    %s70 = sphi 0, %s70
    %s72 = sphi 0, %s70
    %s73 = sphi 0, %s72
    %s87 = sphi 0, %s73
    %s91 = sphi 0, %s91
    %s93 = sphi 0, %s91
    %s94 = sphi 0, %s93
    %s108 = sphi 0, %s94
    %s112 = sphi 0, %s112
    %s114 = sphi 0, %s112
    %s115 = sphi 0, %s114
    %s129 = sphi 0, %s115
    %s133 = sphi 0, %s133
    %s135 = sphi 0, %s133
    %s136 = sphi 0, %s135
    %s150 = sphi 0, %s136
    %s154 = sphi 0, %s154
    %s156 = sphi 0, %s154
    %s157 = sphi 0, %s156
    %s171 = sphi 0, %s157
    %s175 = sphi 0, %s175
    %s177 = sphi 0, %s175
    %s178 = sphi 0, %s177
    %s192 = sphi 0, %s178
    %s196 = sphi 0, %s196
    %s198 = sphi 0, %s196
    %s199 = sphi 0, %s198
    %s213 = sphi 0, %s199
    %s219 = sphi 0, %s221
    %s222 = sphi 0, %s219
    %s223 = sphi 0, %s222
    %s239 = sphi 0, %s223
  $region4: #{gpt2_classifier_forward.12} parent=0 // loop_header_branch
    %18 = sbr.rel (%p16) target = $region8
  $region5: #{gpt2_classifier_forward.12} parent=0 // loop_body
    %s20 = ssub.s32 %s15, 1
    %s21 = ssub.s32 %s15, 2
    %s22 = sadd.s32 %s15, 1
    %s23 = ssub.s32 %s15, %s22
    %p24 = scmp.eq.s32.totalorder %s23, 0
    %s26 = sadd.s32 %s25, 1
    %s27 = scalar_select %p24, %s25, %s26
    %p30 = pneg %p24
    %p31 = scmp.eq.s32.totalorder %s15, 1
    %p32 = por %p30, %p31
    %p33 = scmp.ne.s32.totalorder %s25, %s28
    %p34 = scmp.eq.s32.totalorder %s15, 0
    %p35 = por %p33, %p34
    %p36 = scmp.ne.s32.totalorder %s25, %s28
    %p37 = scmp.eq.s32.totalorder %s20, 1
    %p38 = por %p36, %p37
    %p39 = scmp.ne.s32.totalorder %s28, %s29
    %p40 = scmp.eq.s32.totalorder %s20, 0
    %p41 = por %p39, %p40
    %p42 = scmp.ne.s32.totalorder %s28, %s29
    %p43 = scmp.eq.s32.totalorder %s21, 1
    %p44 = por %p42, %p43
    %p46 = scmp.ne.s32.totalorder %s29, %s45
    %p47 = scmp.eq.s32.totalorder %s21, 0
    %p48 = por %p46, %p47
    %s50 = sadd.s32 %s49, 1
    %p53 = scmp.eq.s32.totalorder %s15, 1
    %p54 = scmp.ne.s32.totalorder %s49, %s51
    %p55 = scmp.eq.s32.totalorder %s15, 0
    %p56 = por %p54, %p55
    %p57 = scmp.ne.s32.totalorder %s49, %s51
    %p58 = scmp.eq.s32.totalorder %s20, 1
    %p59 = por %p57, %p58
    %p60 = scmp.ne.s32.totalorder %s51, %s52
    %p61 = scmp.eq.s32.totalorder %s20, 0
    %p62 = por %p60, %p61
    %p63 = scmp.ne.s32.totalorder %s51, %s52
    %p64 = scmp.eq.s32.totalorder %s21, 1
    %p65 = por %p63, %p64
    %p67 = scmp.ne.s32.totalorder %s52, %s66
    %p68 = scmp.eq.s32.totalorder %s21, 0
    %p69 = por %p67, %p68
    %s71 = sadd.s32 %s70, 1
    %p74 = scmp.eq.s32.totalorder %s15, 1
    %p75 = scmp.ne.s32.totalorder %s70, %s72
    %p76 = scmp.eq.s32.totalorder %s15, 0
    %p77 = por %p75, %p76
    %p78 = scmp.ne.s32.totalorder %s70, %s72
    %p79 = scmp.eq.s32.totalorder %s20, 1
    %p80 = por %p78, %p79
    %p81 = scmp.ne.s32.totalorder %s72, %s73
    %p82 = scmp.eq.s32.totalorder %s20, 0
    %p83 = por %p81, %p82
    %p84 = scmp.ne.s32.totalorder %s72, %s73
    %p85 = scmp.eq.s32.totalorder %s21, 1
    %p86 = por %p84, %p85
    %p88 = scmp.ne.s32.totalorder %s73, %s87
    %p89 = scmp.eq.s32.totalorder %s21, 0
    %p90 = por %p88, %p89
    %s92 = sadd.s32 %s91, 1
    %p95 = scmp.eq.s32.totalorder %s15, 1
    %p96 = scmp.ne.s32.totalorder %s91, %s93
    %p97 = scmp.eq.s32.totalorder %s15, 0
    %p98 = por %p96, %p97
    %p99 = scmp.ne.s32.totalorder %s91, %s93
    %p100 = scmp.eq.s32.totalorder %s20, 1
    %p101 = por %p99, %p100
    %p102 = scmp.ne.s32.totalorder %s93, %s94
    %p103 = scmp.eq.s32.totalorder %s20, 0
    %p104 = por %p102, %p103
    %p105 = scmp.ne.s32.totalorder %s93, %s94
    %p106 = scmp.eq.s32.totalorder %s21, 1
    %p107 = por %p105, %p106
    %p109 = scmp.ne.s32.totalorder %s94, %s108
    %p110 = scmp.eq.s32.totalorder %s21, 0
    %p111 = por %p109, %p110
    %s113 = sadd.s32 %s112, 1
    %p116 = scmp.eq.s32.totalorder %s15, 1
    %p117 = scmp.ne.s32.totalorder %s112, %s114
    %p118 = scmp.eq.s32.totalorder %s15, 0
    %p119 = por %p117, %p118
    %p120 = scmp.ne.s32.totalorder %s112, %s114
    %p121 = scmp.eq.s32.totalorder %s20, 1
    %p122 = por %p120, %p121
    %p123 = scmp.ne.s32.totalorder %s114, %s115
    %p124 = scmp.eq.s32.totalorder %s20, 0
    %p125 = por %p123, %p124
    %p126 = scmp.ne.s32.totalorder %s114, %s115
    %p127 = scmp.eq.s32.totalorder %s21, 1
    %p128 = por %p126, %p127
    %p130 = scmp.ne.s32.totalorder %s115, %s129
    %p131 = scmp.eq.s32.totalorder %s21, 0
    %p132 = por %p130, %p131
    %s134 = sadd.s32 %s133, 1
    %p137 = scmp.eq.s32.totalorder %s15, 1
    %p138 = scmp.ne.s32.totalorder %s133, %s135
    %p139 = scmp.eq.s32.totalorder %s15, 0
    %p140 = por %p138, %p139
    %p141 = scmp.ne.s32.totalorder %s133, %s135
    %p142 = scmp.eq.s32.totalorder %s20, 1
    %p143 = por %p141, %p142
    %p144 = scmp.ne.s32.totalorder %s135, %s136
    %p145 = scmp.eq.s32.totalorder %s20, 0
    %p146 = por %p144, %p145
    %p147 = scmp.ne.s32.totalorder %s135, %s136
    %p148 = scmp.eq.s32.totalorder %s21, 1
    %p149 = por %p147, %p148
    %p151 = scmp.ne.s32.totalorder %s136, %s150
    %p152 = scmp.eq.s32.totalorder %s21, 0
    %p153 = por %p151, %p152
    %s155 = sadd.s32 %s154, 1
    %p158 = scmp.eq.s32.totalorder %s15, 1
    %p159 = scmp.ne.s32.totalorder %s154, %s156
    %p160 = scmp.eq.s32.totalorder %s15, 0
    %p161 = por %p159, %p160
    %p162 = scmp.ne.s32.totalorder %s154, %s156
    %p163 = scmp.eq.s32.totalorder %s20, 1
    %p164 = por %p162, %p163
    %p165 = scmp.ne.s32.totalorder %s156, %s157
    %p166 = scmp.eq.s32.totalorder %s20, 0
    %p167 = por %p165, %p166
    %p168 = scmp.ne.s32.totalorder %s156, %s157
    %p169 = scmp.eq.s32.totalorder %s21, 1
    %p170 = por %p168, %p169
    %p172 = scmp.ne.s32.totalorder %s157, %s171
    %p173 = scmp.eq.s32.totalorder %s21, 0
    %p174 = por %p172, %p173
    %s176 = sadd.s32 %s175, 1
    %p179 = scmp.eq.s32.totalorder %s15, 1
    %p180 = scmp.ne.s32.totalorder %s175, %s177
    %p181 = scmp.eq.s32.totalorder %s15, 0
    %p182 = por %p180, %p181
    %p183 = scmp.ne.s32.totalorder %s175, %s177
    %p184 = scmp.eq.s32.totalorder %s20, 1
    %p185 = por %p183, %p184
    %p186 = scmp.ne.s32.totalorder %s177, %s178
    %p187 = scmp.eq.s32.totalorder %s20, 0
    %p188 = por %p186, %p187
    %p189 = scmp.ne.s32.totalorder %s177, %s178
    %p190 = scmp.eq.s32.totalorder %s21, 1
    %p191 = por %p189, %p190
    %p193 = scmp.ne.s32.totalorder %s178, %s192
    %p194 = scmp.eq.s32.totalorder %s21, 0
    %p195 = por %p193, %p194
    %s197 = sadd.s32 %s196, 1
    %p200 = scmp.eq.s32.totalorder %s15, 1
    %p201 = scmp.ne.s32.totalorder %s196, %s198
    %p202 = scmp.eq.s32.totalorder %s15, 0
    %p203 = por %p201, %p202
    %p204 = scmp.ne.s32.totalorder %s196, %s198
    %p205 = scmp.eq.s32.totalorder %s20, 1
    %p206 = por %p204, %p205
    %p207 = scmp.ne.s32.totalorder %s198, %s199
    %p208 = scmp.eq.s32.totalorder %s20, 0
    %p209 = por %p207, %p208
    %p210 = scmp.ne.s32.totalorder %s198, %s199
    %p211 = scmp.eq.s32.totalorder %s21, 1
    %p212 = por %p210, %p211
    %p214 = scmp.ne.s32.totalorder %s199, %s213
    %p215 = scmp.eq.s32.totalorder %s21, 0
    %p216 = por %p214, %p215
    %s217 = ssub.s32 %s15, %s22
    %p218 = scmp.eq.s32.totalorder %s217, 0
    %s220 = sadd.s32 %s219, 1
    %s221 = scalar_select %p218, %s219, %s220
    %p224 = pneg %p218
    %p225 = scmp.eq.s32.totalorder %s15, 1
    %p226 = por %p224, %p225
    %p227 = scmp.ne.s32.totalorder %s219, %s222
    %p228 = scmp.eq.s32.totalorder %s15, 0
    %p229 = por %p227, %p228
    %p230 = scmp.ne.s32.totalorder %s219, %s222
    %p231 = scmp.eq.s32.totalorder %s20, 1
    %p232 = por %p230, %p231
    %p233 = scmp.ne.s32.totalorder %s222, %s223
    %p234 = scmp.eq.s32.totalorder %s20, 0
    %p235 = por %p233, %p234
    %p236 = scmp.ne.s32.totalorder %s222, %s223
    %p237 = scmp.eq.s32.totalorder %s21, 1
    %p238 = por %p236, %p237
    %p240 = scmp.ne.s32.totalorder %s223, %s239
    %p241 = scmp.eq.s32.totalorder %s21, 0
    %p242 = por %p240, %p241
    %p243 = scmp.le.s32.totalorder 1, %s15
    %p244 = scmp.lt.s32.totalorder %s15, 3
    %p245 = pnand %p243, %p244
    %p246 = pneg %p245
    // Predicated region
    $region9: #{gpt2_classifier_forward.12} parent=5 // pred_check
      _
    $region10: #{gpt2_classifier_forward.12} parent=5 // pred_check_branch
      %248 = sbr.rel (%p245) target = $region12
    $region11: #{gpt2_classifier_forward.12} parent=5 // pred_region
      %s249 = ssub.s32 %s15, 1
      // Predicated region
      $region13: #{gpt2_classifier_forward.12} parent=11 // pred_check
        %p250 = pneg %p62
      $region14: #{gpt2_classifier_forward.12} parent=11 // pred_check_branch
        %252 = sbr.rel (%p250) target = $region16
      $region15: #{gpt2_classifier_forward.12} parent=11 // pred_region
        _
      $region16: #{gpt2_classifier_forward.12} parent=11 // pred_fallthru
        _
      // Predicated region
      $region17: #{gpt2_classifier_forward.12} parent=11 // pred_check
        %p253 = pneg %p83
      $region18: #{gpt2_classifier_forward.12} parent=11 // pred_check_branch
        %255 = sbr.rel (%p253) target = $region20
      $region19: #{gpt2_classifier_forward.12} parent=11 // pred_region
        _
      $region20: #{gpt2_classifier_forward.12} parent=11 // pred_fallthru
        _
      // Predicated region
      $region21: #{gpt2_classifier_forward.12} parent=11 // pred_check
        %p256 = pneg %p104
      $region22: #{gpt2_classifier_forward.12} parent=11 // pred_check_branch
        %258 = sbr.rel (%p256) target = $region24
      $region23: #{gpt2_classifier_forward.12} parent=11 // pred_region
        _
      $region24: #{gpt2_classifier_forward.12} parent=11 // pred_fallthru
        _
      // Predicated region
      $region25: #{gpt2_classifier_forward.12} parent=11 // pred_check
        %p259 = pneg %p125
      $region26: #{gpt2_classifier_forward.12} parent=11 // pred_check_branch
        %261 = sbr.rel (%p259) target = $region28
      $region27: #{gpt2_classifier_forward.12} parent=11 // pred_region
        _
      $region28: #{gpt2_classifier_forward.12} parent=11 // pred_fallthru
        _
      // Predicated region
      $region29: #{gpt2_classifier_forward.12} parent=11 // pred_check
        %p262 = pneg %p146
      $region30: #{gpt2_classifier_forward.12} parent=11 // pred_check_branch
        %264 = sbr.rel (%p262) target = $region32
      $region31: #{gpt2_classifier_forward.12} parent=11 // pred_region
        _
      $region32: #{gpt2_classifier_forward.12} parent=11 // pred_fallthru
        _
      // Predicated region
      $region33: #{gpt2_classifier_forward.12} parent=11 // pred_check
        %p265 = pneg %p167
      $region34: #{gpt2_classifier_forward.12} parent=11 // pred_check_branch
        %267 = sbr.rel (%p265) target = $region36
      $region35: #{gpt2_classifier_forward.12} parent=11 // pred_region
        _
      $region36: #{gpt2_classifier_forward.12} parent=11 // pred_fallthru
        _
      // Predicated region
      $region37: #{gpt2_classifier_forward.12} parent=11 // pred_check
        %p268 = pneg %p188
      $region38: #{gpt2_classifier_forward.12} parent=11 // pred_check_branch
        %270 = sbr.rel (%p268) target = $region40
      $region39: #{gpt2_classifier_forward.12} parent=11 // pred_region
        _
      $region40: #{gpt2_classifier_forward.12} parent=11 // pred_fallthru
        _
      // Predicated region
      $region41: #{gpt2_classifier_forward.12} parent=11 // pred_check
        %p271 = pneg %p209
      $region42: #{gpt2_classifier_forward.12} parent=11 // pred_check_branch
        %273 = sbr.rel (%p271) target = $region44
      $region43: #{gpt2_classifier_forward.12} parent=11 // pred_region
        _
      $region44: #{gpt2_classifier_forward.12} parent=11 // pred_fallthru
        _
    $region12: #{gpt2_classifier_forward.12} parent=5 // pred_fallthru
      _
    %p274 = scmp.lt.s32.totalorder %s15, 2
    // Predicated region
    $region45: #{gpt2_classifier_forward.12} parent=5 // pred_check
      %p275 = pneg %p274
    $region46: #{gpt2_classifier_forward.12} parent=5 // pred_check_branch
      %277 = sbr.rel (%p275) target = $region48
    $region47: #{gpt2_classifier_forward.12} parent=5 // pred_region
      // Predicated region
      $region49: #{gpt2_classifier_forward.12} parent=47 // pred_check
        %p278 = pneg %p35
      $region50: #{gpt2_classifier_forward.12} parent=47 // pred_check_branch
        %280 = sbr.rel (%p278) target = $region52
      $region51: #{gpt2_classifier_forward.12} parent=47 // pred_region
        %p281 = scmp.lt.s32.totalorder %s15, 1
        %s282 = scalar_select %p281, %s15, 1
        %s283 = smul.addr %s282, 4
        %s284 = scalar_lea.vmem %s0, %s283
      $region52: #{gpt2_classifier_forward.12} parent=47 // pred_fallthru
        _
    $region48: #{gpt2_classifier_forward.12} parent=5 // pred_fallthru
      _
    %p285 = scmp.le.s32.totalorder 1, %s15
    %p286 = scmp.lt.s32.totalorder %s15, 3
    %p287 = pnand %p285, %p286
    %p288 = pneg %p287
    // Predicated region
    $region53: #{gpt2_classifier_forward.12} parent=5 // pred_check
      _
    $region54: #{gpt2_classifier_forward.12} parent=5 // pred_check_branch
      %290 = sbr.rel (%p287) target = $region56
    $region55: #{gpt2_classifier_forward.12} parent=5 // pred_region
      %s291 = ssub.s32 %s15, 1
      %p292 = scmp.lt.s32.totalorder %s20, 1
      %s293 = scalar_select %p292, %s20, 1
      %s294 = smul.addr %s293, 4
      %s295 = scalar_lea.vmem %s0, %s294
      %p296 = pneg %p41
      %p297 = pneg %p38
      %p298 = pneg %p62
      %p299 = pneg %p59
      %p300 = pneg %p83
      %p301 = pneg %p80
      %p302 = pneg %p104
      %p303 = pneg %p101
      %p304 = pneg %p125
      %p305 = pneg %p122
      %p306 = pneg %p146
      %p307 = pneg %p143
      %p308 = pneg %p167
      %p309 = pneg %p164
      %p310 = pneg %p188
      %p311 = pneg %p185
      %p312 = pneg %p209
      %p313 = pneg %p206
      %p314 = pneg %p235
      %p315 = pneg %p232
      %p316 = scmp.lt.s32.totalorder %s20, 1
      %s317 = scalar_select %p316, %s20, 1
      %s318 = smul.addr %s317, 4
      %s319 = scalar_lea.vmem %s9, %s318
      %p320 = scmp.lt.s32.totalorder %s20, 1
      %s321 = scalar_select %p320, %s20, 1
      %s322 = smul.addr %s321, 4
      %s323 = scalar_lea.vmem %s0, %s322
      %p324 = scmp.lt.s32.totalorder %s20, 1
      %s325 = scalar_select %p324, %s20, 1
      %s326 = smul.addr %s325, 4
      %s327 = scalar_lea.vmem %s9, %s326
      %v329 = vld [vmem:[%s323] sm:$0xf]
      %v330 = vunpack.c.l.bf16 %v329
      %v331 = vld [vmem:[%s1] sm:$0x1]
      %v332 = vld [vmem:[%s2] sm:$0x1]
      %vm333 = vcmask 261120
      %v334 = vsel %vm333, %v330, 0.0
      %335 = vadd.xlane.f32.xlu0 %v334
      %v336 = vpop.xlane.xlu0 %335
      %v337 = vrcp.pop 32.0
      %v338 = vmul.f32 32.0, %v337
      %v339 = vsub.f32 1.0, %v338
      %v340 = vmul.f32 %v337, %v339
      %v341 = vadd.f32 %v337, %v340
      %vm342 = vweird.f32 %v337
      %v343 = vsel %vm342, %v337, %v341
      %v344 = vmul.f32 %v336, %v343
      %v345 = vsub.f32 %v330, %v344
      %v346 = vmul.f32 %v345, %v345
      %v347 = vsel %vm333, %v346, 0.0
      %348 = vadd.xlane.f32.xlu0 %v347
      %v349 = vpop.xlane.xlu0 %348
      %v350 = vmul.f32 %v349, %v343
      %v351 = vadd.f32 %v350, 1e-05
      %v352 = vrsqrt.pop %v351
      %v353 = vmul.f32 %v352, %v351
      %v354 = vmul.f32 %v353, %v352
      %v355 = vmul.f32 0.5, %v354
      %v356 = vsub.f32 1.5, %v355
      %v357 = vmul.f32 %v352, %v356
      %vm358 = vweird.f32 %v351
      %vm359 = vweird.f32 %v352
      %vm360 = vmor %vm358, %vm359
      %v361 = vsel %vm360, %v352, %v357
      %v362 = vmul.f32 %v345, %v361
      %v364 = vperm.slane %v331, 0
      %v366 = vmul.f32 %v362, %v364
      %v368 = vperm.slane %v332, 0
      %v370 = vadd.f32 %v366, %v368
      %v371 = vpack.c.bf16 %v370, %v370
      %v372 = vld [vmem:[%s3] sm:$0xf]
      %v373 = vld [vmem:[%s3 + $0x4] sm:$0xf]
      %v374 = vld [vmem:[%s3 + $0x8] sm:$0xf]
      %v375 = vld [vmem:[%s3 + $0xc] sm:$0xf]
      %v376 = vld [vmem:[%s4] sm:$0x1]
      %v378 = vperm.slane %v376, 0
      %v384 = vunpack.c.l.b16 %v372
      %v385 = vunpack.c.l.b16 %v373
      %v386 = vunpack.c.l.b16 %v374
      %v387 = vunpack.c.l.b16 %v375
      %v388 = vpack.c.b16 %v385, %v384
      %v389 = vpack.c.b16 %v387, %v386
      %v393 = vsel %vm333, %v371, 0
      %395 = vmatpush.bf16.msra.mxu0 0
      %396 = vmatpush.bf16.msra.mxu0 0
      %397 = vmatpush.bf16.msra.mxu0 0
      %398 = vmatpush.bf16.msra.mxu0 0
      %399 = vmatpush.bf16.msra.mxu0 0
      %400 = vmatpush.bf16.msra.mxu0 0
      %401 = vmatpush.bf16.msra.mxu0 %v389
      %402 = vmatpush.bf16.msra.mxu0 %v388
      %403 = vmatmul.bf16.gmra.mxu0 %v393
      %v404 = vpop.f32.mrf.mxu0
      %v405 = vadd.f32 %v378, %v404
      %v406 = vpop.f32.mrf.mxu0
      %407 = vdwg.mxu0
      %v408 = vmul.f32 %v405, 0.5
      %v409 = vmul.f32 %v405, 0.044715
      %v410 = vmul.f32 %v409, %v405
      %v411 = vmul.f32 %v410, %v405
      %v412 = vadd.f32 %v405, %v411
      %v413 = vmul.f32 %v412, 0.7978846
      %v414 = vtanh.pop %v413
      %v415 = vadd.f32 %v414, 1.0
      %v416 = vmul.f32 %v408, %v415
      %v417 = vpack.c.bf16 %v416, %v416
      %v418 = vld [vmem:[%s5] sm:$0xf]
      %v419 = vld [vmem:[%s5 + $0x4] sm:$0xf]
      %v420 = vld [vmem:[%s5 + $0x8] sm:$0xf]
      %v421 = vld [vmem:[%s5 + $0xc] sm:$0xf]
      %v422 = vld [vmem:[%s5 + $0x10] sm:$0xf]
      %v423 = vld [vmem:[%s5 + $0x14] sm:$0xf]
      %v424 = vld [vmem:[%s5 + $0x18] sm:$0xf]
      %v425 = vld [vmem:[%s5 + $0x1c] sm:$0xf]
      %v426 = vld [vmem:[%s5 + $0x20] sm:$0xf]
      %v427 = vld [vmem:[%s5 + $0x24] sm:$0xf]
      %v428 = vld [vmem:[%s5 + $0x28] sm:$0xf]
      %v429 = vld [vmem:[%s5 + $0x2c] sm:$0xf]
      %v430 = vld [vmem:[%s5 + $0x30] sm:$0xf]
      %v431 = vld [vmem:[%s5 + $0x34] sm:$0xf]
      %v432 = vld [vmem:[%s5 + $0x38] sm:$0xf]
      %v433 = vld [vmem:[%s5 + $0x3c] sm:$0xf]
      %v434 = vld [vmem:[%s6] sm:$0x1]
      %v436 = vperm.slane %v434, 0
      %v454 = vunpack.c.l.b16 %v418
      %v455 = vunpack.c.l.b16 %v419
      %v456 = vunpack.c.l.b16 %v420
      %v457 = vunpack.c.l.b16 %v421
      %v458 = vunpack.c.l.b16 %v422
      %v459 = vunpack.c.l.b16 %v423
      %v460 = vunpack.c.l.b16 %v424
      %v461 = vunpack.c.l.b16 %v425
      %v462 = vunpack.c.l.b16 %v426
      %v463 = vunpack.c.l.b16 %v427
      %v464 = vunpack.c.l.b16 %v428
      %v465 = vunpack.c.l.b16 %v429
      %v466 = vunpack.c.l.b16 %v430
      %v467 = vunpack.c.l.b16 %v431
      %v468 = vunpack.c.l.b16 %v432
      %v469 = vunpack.c.l.b16 %v433
      %v470 = vpack.c.b16 %v455, %v454
      %v471 = vpack.c.b16 %v457, %v456
      %v472 = vpack.c.b16 %v459, %v458
      %v473 = vpack.c.b16 %v461, %v460
      %v474 = vpack.c.b16 %v463, %v462
      %v475 = vpack.c.b16 %v465, %v464
      %v476 = vpack.c.b16 %v467, %v466
      %v477 = vpack.c.b16 %v469, %v468
      %486 = vmatpush.bf16.msra.mxu0 %v477
      %487 = vmatpush.bf16.msra.mxu0 %v476
      %488 = vmatpush.bf16.msra.mxu0 %v475
      %489 = vmatpush.bf16.msra.mxu0 %v474
      %490 = vmatpush.bf16.msra.mxu0 %v473
      %491 = vmatpush.bf16.msra.mxu0 %v472
      %492 = vmatpush.bf16.msra.mxu0 %v471
      %493 = vmatpush.bf16.msra.mxu0 %v470
      %494 = vmatmul.bf16.gmra.mxu0 %v417
      %v495 = vpop.f32.mrf.mxu0
      %v496 = vadd.f32 %v436, %v495
      %v497 = vpop.f32.mrf.mxu0
      %498 = vdwg.mxu0
      %v499 = vadd.f32 %v330, %v496
      %v500 = vld [vmem:[%s7] sm:$0x1]
      %v501 = vld [vmem:[%s8] sm:$0x1]
      %v502 = vsel %vm333, %v499, 0.0
      %503 = vadd.xlane.f32.xlu0 %v502
      %v504 = vpop.xlane.xlu0 %503
      %v505 = vmul.f32 %v504, %v343
      %v506 = vsub.f32 %v499, %v505
      %v507 = vmul.f32 %v506, %v506
      %v508 = vsel %vm333, %v507, 0.0
      %509 = vadd.xlane.f32.xlu0 %v508
      %v510 = vpop.xlane.xlu0 %509
      %v511 = vmul.f32 %v510, %v343
      %v512 = vadd.f32 %v511, 1e-05
      %v513 = vrsqrt.pop %v512
      %v514 = vmul.f32 %v513, %v512
      %v515 = vmul.f32 %v514, %v513
      %v516 = vmul.f32 0.5, %v515
      %v517 = vsub.f32 1.5, %v516
      %v518 = vmul.f32 %v513, %v517
      %vm519 = vweird.f32 %v512
      %vm520 = vweird.f32 %v513
      %vm521 = vmor %vm519, %vm520
      %v522 = vsel %vm521, %v513, %v518
      %v523 = vmul.f32 %v506, %v522
      %v525 = vperm.slane %v500, 0
      %v527 = vmul.f32 %v523, %v525
      %v529 = vperm.slane %v501, 0
      %v531 = vadd.f32 %v527, %v529
      %v532 = vpack.c.bf16 %v531, %v531
      %vm533 = vcmask 257024
      %534 = vst.msk [vmem:[%s327] sm:$0xf] %vm533, %v532
      %p535 = scmp.lt.s32.totalorder %s20, 1
      %s536 = scalar_select %p535, %s20, 1
      %s537 = smul.addr %s536, 4
      %s538 = scalar_lea.vmem %s9, %s537
      // Predicated region
      $region57: #{gpt2_classifier_forward.12} parent=55 // pred_check
        %p539 = pneg %p232
      $region58: #{gpt2_classifier_forward.12} parent=55 // pred_check_branch
        %541 = sbr.rel (%p539) target = $region60
      $region59: #{gpt2_classifier_forward.12} parent=55 // pred_region
        _
      $region60: #{gpt2_classifier_forward.12} parent=55 // pred_fallthru
        _
    $region56: #{gpt2_classifier_forward.12} parent=5 // pred_fallthru
      _
    %p542 = scmp.le.s32.totalorder 2, %s15
    // Predicated region
    $region61: #{gpt2_classifier_forward.12} parent=5 // pred_check
      %p543 = pneg %p542
    $region62: #{gpt2_classifier_forward.12} parent=5 // pred_check_branch
      %545 = sbr.rel (%p543) target = $region64
    $region63: #{gpt2_classifier_forward.12} parent=5 // pred_region
      %s546 = ssub.s32 %s15, 2
      // Predicated region
      $region65: #{gpt2_classifier_forward.12} parent=63 // pred_check
        %p547 = pneg %p238
      $region66: #{gpt2_classifier_forward.12} parent=63 // pred_check_branch
        %549 = sbr.rel (%p547) target = $region68
      $region67: #{gpt2_classifier_forward.12} parent=63 // pred_region
        %p550 = scmp.lt.s32.totalorder %s21, 1
        %s551 = scalar_select %p550, %s21, 1
        %s552 = smul.addr %s551, 4
        %s553 = scalar_lea.vmem %s9, %s552
      $region68: #{gpt2_classifier_forward.12} parent=63 // pred_fallthru
        _
    $region64: #{gpt2_classifier_forward.12} parent=5 // pred_fallthru
      _
  $region6: #{gpt2_classifier_forward.12} parent=0 // loop_footer
    %s19 = sadd.s32 1, %s15
  $region7: #{gpt2_classifier_forward.12} parent=0 // loop_footer_branch
    %14 = sbr.rel target = $region3
  $region8: #{gpt2_classifier_forward.12} parent=0 // loop_exit
    _

// kernel: gpt2_classifier_forward.7
$region0: #{gpt2_classifier_forward.7}
  #allocation0 [shape = 'u32[]', space=smem, size = 0x4, offset = 0x4, fixed_abs, tag = 'smem constant byte address 0x4 - core index']
  #allocation1 [shape = 'u32[72,128]{1,0:T(1,128)}', space=vmem, size = 0x9000, scoped, tag = 'internal scratch']
  %s0 = inlined_call_operand.vmem [shape: bf16[16,32], index: 0, kind: input, shape index: {}]
  %s1 = inlined_call_operand.vmem [shape: f32[1,32], index: 1, kind: input, shape index: {}]
  %s2 = inlined_call_operand.vmem [shape: f32[1,32], index: 2, kind: input, shape index: {}]
  %s3 = inlined_call_operand.vmem [shape: bf16[32,96], index: 3, kind: input, shape index: {}]
  %s4 = inlined_call_operand.vmem [shape: f32[1,96], index: 4, kind: input, shape index: {}]
  %s5 = inlined_call_operand.vmem [shape: bf16[16,32], index: 5, kind: output, shape index: {0}]
  %s6 = inlined_call_operand.vmem [shape: bf16[16,32], index: 6, kind: output, shape index: {1}]
  %s7 = inlined_call_operand.vmem [shape: bf16[16,32], index: 7, kind: output, shape index: {2}]
  %8 = xla_tuple %s5, %s6, %s7
  %s9 = sld [smem:[#allocation0]]
  $region69: #{gpt2_classifier_forward.7} parent=0
    _
  %s11 = ssub.s32 1, %s9
  %s12 = scalar_select 0, %s11, %s9
  loop: start=0, step=1, limit=4
  $region2: #{gpt2_classifier_forward.7} parent=0 // loop_pre_header
    _
  $region3: #{gpt2_classifier_forward.7} parent=0 // loop_header
    %s14 = sphi 0, %s18
    %p15 = scmp.ge.s32.totalorder %s14, 4
    %s24 = sphi 0, %s26
    %s27 = sphi 0, %s24
    %s28 = sphi 0, %s27
    %s44 = sphi 0, %s28
    %s48 = sphi 0, %s48
    %s50 = sphi 0, %s48
    %s51 = sphi 0, %s50
    %s65 = sphi 0, %s51
    %s69 = sphi 0, %s69
    %s71 = sphi 0, %s69
    %s72 = sphi 0, %s71
    %s86 = sphi 0, %s72
    %s90 = sphi 0, %s90
    %s92 = sphi 0, %s90
    %s93 = sphi 0, %s92
    %s107 = sphi 0, %s93
    %s111 = sphi 0, %s111
    %s113 = sphi 0, %s111
    %s114 = sphi 0, %s113
    %s128 = sphi 0, %s114
    %s134 = sphi 0, %s136
    %s137 = sphi 0, %s134
    %s138 = sphi 0, %s137
    %s154 = sphi 0, %s138
    %s160 = sphi 0, %s162
    %s163 = sphi 0, %s160
    %s164 = sphi 0, %s163
    %s180 = sphi 0, %s164
    %s186 = sphi 0, %s188
    %s189 = sphi 0, %s186
    %s190 = sphi 0, %s189
    %s206 = sphi 0, %s190
  $region4: #{gpt2_classifier_forward.7} parent=0 // loop_header_branch
    %17 = sbr.rel (%p15) target = $region8
  $region5: #{gpt2_classifier_forward.7} parent=0 // loop_body
    %s19 = ssub.s32 %s14, 1
    %s20 = ssub.s32 %s14, 2
    %s21 = sadd.s32 %s14, 1
    %s22 = ssub.s32 %s14, %s21
    %p23 = scmp.eq.s32.totalorder %s22, 0
    %s25 = sadd.s32 %s24, 1
    %s26 = scalar_select %p23, %s24, %s25
    %p29 = pneg %p23
    %p30 = scmp.eq.s32.totalorder %s14, 1
    %p31 = por %p29, %p30
    %p32 = scmp.ne.s32.totalorder %s24, %s27
    %p33 = scmp.eq.s32.totalorder %s14, 0
    %p34 = por %p32, %p33
    %p35 = scmp.ne.s32.totalorder %s24, %s27
    %p36 = scmp.eq.s32.totalorder %s19, 1
    %p37 = por %p35, %p36
    %p38 = scmp.ne.s32.totalorder %s27, %s28
    %p39 = scmp.eq.s32.totalorder %s19, 0
    %p40 = por %p38, %p39
    %p41 = scmp.ne.s32.totalorder %s27, %s28
    %p42 = scmp.eq.s32.totalorder %s20, 1
    %p43 = por %p41, %p42
    %p45 = scmp.ne.s32.totalorder %s28, %s44
    %p46 = scmp.eq.s32.totalorder %s20, 0
    %p47 = por %p45, %p46
    %s49 = sadd.s32 %s48, 1
    %p52 = scmp.eq.s32.totalorder %s14, 1
    %p53 = scmp.ne.s32.totalorder %s48, %s50
    %p54 = scmp.eq.s32.totalorder %s14, 0
    %p55 = por %p53, %p54
    %p56 = scmp.ne.s32.totalorder %s48, %s50
    %p57 = scmp.eq.s32.totalorder %s19, 1
    %p58 = por %p56, %p57
    %p59 = scmp.ne.s32.totalorder %s50, %s51
    %p60 = scmp.eq.s32.totalorder %s19, 0
    %p61 = por %p59, %p60
    %p62 = scmp.ne.s32.totalorder %s50, %s51
    %p63 = scmp.eq.s32.totalorder %s20, 1
    %p64 = por %p62, %p63
    %p66 = scmp.ne.s32.totalorder %s51, %s65
    %p67 = scmp.eq.s32.totalorder %s20, 0
    %p68 = por %p66, %p67
    %s70 = sadd.s32 %s69, 1
    %p73 = scmp.eq.s32.totalorder %s14, 1
    %p74 = scmp.ne.s32.totalorder %s69, %s71
    %p75 = scmp.eq.s32.totalorder %s14, 0
    %p76 = por %p74, %p75
    %p77 = scmp.ne.s32.totalorder %s69, %s71
    %p78 = scmp.eq.s32.totalorder %s19, 1
    %p79 = por %p77, %p78
    %p80 = scmp.ne.s32.totalorder %s71, %s72
    %p81 = scmp.eq.s32.totalorder %s19, 0
    %p82 = por %p80, %p81
    %p83 = scmp.ne.s32.totalorder %s71, %s72
    %p84 = scmp.eq.s32.totalorder %s20, 1
    %p85 = por %p83, %p84
    %p87 = scmp.ne.s32.totalorder %s72, %s86
    %p88 = scmp.eq.s32.totalorder %s20, 0
    %p89 = por %p87, %p88
    %s91 = sadd.s32 %s90, 1
    %p94 = scmp.eq.s32.totalorder %s14, 1
    %p95 = scmp.ne.s32.totalorder %s90, %s92
    %p96 = scmp.eq.s32.totalorder %s14, 0
    %p97 = por %p95, %p96
    %p98 = scmp.ne.s32.totalorder %s90, %s92
    %p99 = scmp.eq.s32.totalorder %s19, 1
    %p100 = por %p98, %p99
    %p101 = scmp.ne.s32.totalorder %s92, %s93
    %p102 = scmp.eq.s32.totalorder %s19, 0
    %p103 = por %p101, %p102
    %p104 = scmp.ne.s32.totalorder %s92, %s93
    %p105 = scmp.eq.s32.totalorder %s20, 1
    %p106 = por %p104, %p105
    %p108 = scmp.ne.s32.totalorder %s93, %s107
    %p109 = scmp.eq.s32.totalorder %s20, 0
    %p110 = por %p108, %p109
    %s112 = sadd.s32 %s111, 1
    %p115 = scmp.eq.s32.totalorder %s14, 1
    %p116 = scmp.ne.s32.totalorder %s111, %s113
    %p117 = scmp.eq.s32.totalorder %s14, 0
    %p118 = por %p116, %p117
    %p119 = scmp.ne.s32.totalorder %s111, %s113
    %p120 = scmp.eq.s32.totalorder %s19, 1
    %p121 = por %p119, %p120
    %p122 = scmp.ne.s32.totalorder %s113, %s114
    %p123 = scmp.eq.s32.totalorder %s19, 0
    %p124 = por %p122, %p123
    %p125 = scmp.ne.s32.totalorder %s113, %s114
    %p126 = scmp.eq.s32.totalorder %s20, 1
    %p127 = por %p125, %p126
    %p129 = scmp.ne.s32.totalorder %s114, %s128
    %p130 = scmp.eq.s32.totalorder %s20, 0
    %p131 = por %p129, %p130
    %s132 = ssub.s32 %s14, %s21
    %p133 = scmp.eq.s32.totalorder %s132, 0
    %s135 = sadd.s32 %s134, 1
    %s136 = scalar_select %p133, %s134, %s135
    %p139 = pneg %p133
    %p140 = scmp.eq.s32.totalorder %s14, 1
    %p141 = por %p139, %p140
    %p142 = scmp.ne.s32.totalorder %s134, %s137
    %p143 = scmp.eq.s32.totalorder %s14, 0
    %p144 = por %p142, %p143
    %p145 = scmp.ne.s32.totalorder %s134, %s137
    %p146 = scmp.eq.s32.totalorder %s19, 1
    %p147 = por %p145, %p146
    %p148 = scmp.ne.s32.totalorder %s137, %s138
    %p149 = scmp.eq.s32.totalorder %s19, 0
    %p150 = por %p148, %p149
    %p151 = scmp.ne.s32.totalorder %s137, %s138
    %p152 = scmp.eq.s32.totalorder %s20, 1
    %p153 = por %p151, %p152
    %p155 = scmp.ne.s32.totalorder %s138, %s154
    %p156 = scmp.eq.s32.totalorder %s20, 0
    %p157 = por %p155, %p156
    %s158 = ssub.s32 %s14, %s21
    %p159 = scmp.eq.s32.totalorder %s158, 0
    %s161 = sadd.s32 %s160, 1
    %s162 = scalar_select %p159, %s160, %s161
    %p165 = pneg %p159
    %p166 = scmp.eq.s32.totalorder %s14, 1
    %p167 = por %p165, %p166
    %p168 = scmp.ne.s32.totalorder %s160, %s163
    %p169 = scmp.eq.s32.totalorder %s14, 0
    %p170 = por %p168, %p169
    %p171 = scmp.ne.s32.totalorder %s160, %s163
    %p172 = scmp.eq.s32.totalorder %s19, 1
    %p173 = por %p171, %p172
    %p174 = scmp.ne.s32.totalorder %s163, %s164
    %p175 = scmp.eq.s32.totalorder %s19, 0
    %p176 = por %p174, %p175
    %p177 = scmp.ne.s32.totalorder %s163, %s164
    %p178 = scmp.eq.s32.totalorder %s20, 1
    %p179 = por %p177, %p178
    %p181 = scmp.ne.s32.totalorder %s164, %s180
    %p182 = scmp.eq.s32.totalorder %s20, 0
    %p183 = por %p181, %p182
    %s184 = ssub.s32 %s14, %s21
    %p185 = scmp.eq.s32.totalorder %s184, 0
    %s187 = sadd.s32 %s186, 1
    %s188 = scalar_select %p185, %s186, %s187
    %p191 = pneg %p185
    %p192 = scmp.eq.s32.totalorder %s14, 1
    %p193 = por %p191, %p192
    %p194 = scmp.ne.s32.totalorder %s186, %s189
    %p195 = scmp.eq.s32.totalorder %s14, 0
    %p196 = por %p194, %p195
    %p197 = scmp.ne.s32.totalorder %s186, %s189
    %p198 = scmp.eq.s32.totalorder %s19, 1
    %p199 = por %p197, %p198
    %p200 = scmp.ne.s32.totalorder %s189, %s190
    %p201 = scmp.eq.s32.totalorder %s19, 0
    %p202 = por %p200, %p201
    %p203 = scmp.ne.s32.totalorder %s189, %s190
    %p204 = scmp.eq.s32.totalorder %s20, 1
    %p205 = por %p203, %p204
    %p207 = scmp.ne.s32.totalorder %s190, %s206
    %p208 = scmp.eq.s32.totalorder %s20, 0
    %p209 = por %p207, %p208
    %p210 = scmp.le.s32.totalorder 1, %s14
    %p211 = scmp.lt.s32.totalorder %s14, 3
    %p212 = pnand %p210, %p211
    %p213 = pneg %p212
    // Predicated region
    $region9: #{gpt2_classifier_forward.7} parent=5 // pred_check
      _
    $region10: #{gpt2_classifier_forward.7} parent=5 // pred_check_branch
      %215 = sbr.rel (%p212) target = $region12
    $region11: #{gpt2_classifier_forward.7} parent=5 // pred_region
      %s216 = ssub.s32 %s14, 1
      // Predicated region
      $region13: #{gpt2_classifier_forward.7} parent=11 // pred_check
        %p217 = pneg %p61
      $region14: #{gpt2_classifier_forward.7} parent=11 // pred_check_branch
        %219 = sbr.rel (%p217) target = $region16
      $region15: #{gpt2_classifier_forward.7} parent=11 // pred_region
        _
      $region16: #{gpt2_classifier_forward.7} parent=11 // pred_fallthru
        _
      // Predicated region
      $region17: #{gpt2_classifier_forward.7} parent=11 // pred_check
        %p220 = pneg %p82
      $region18: #{gpt2_classifier_forward.7} parent=11 // pred_check_branch
        %222 = sbr.rel (%p220) target = $region20
      $region19: #{gpt2_classifier_forward.7} parent=11 // pred_region
        _
      $region20: #{gpt2_classifier_forward.7} parent=11 // pred_fallthru
        _
      // Predicated region
      $region21: #{gpt2_classifier_forward.7} parent=11 // pred_check
        %p223 = pneg %p103
      $region22: #{gpt2_classifier_forward.7} parent=11 // pred_check_branch
        %225 = sbr.rel (%p223) target = $region24
      $region23: #{gpt2_classifier_forward.7} parent=11 // pred_region
        _
      $region24: #{gpt2_classifier_forward.7} parent=11 // pred_fallthru
        _
      // Predicated region
      $region25: #{gpt2_classifier_forward.7} parent=11 // pred_check
        %p226 = pneg %p124
      $region26: #{gpt2_classifier_forward.7} parent=11 // pred_check_branch
        %228 = sbr.rel (%p226) target = $region28
      $region27: #{gpt2_classifier_forward.7} parent=11 // pred_region
        _
      $region28: #{gpt2_classifier_forward.7} parent=11 // pred_fallthru
        _
    $region12: #{gpt2_classifier_forward.7} parent=5 // pred_fallthru
      _
    %p229 = scmp.lt.s32.totalorder %s14, 2
    // Predicated region
    $region29: #{gpt2_classifier_forward.7} parent=5 // pred_check
      %p230 = pneg %p229
    $region30: #{gpt2_classifier_forward.7} parent=5 // pred_check_branch
      %232 = sbr.rel (%p230) target = $region32
    $region31: #{gpt2_classifier_forward.7} parent=5 // pred_region
      // Predicated region
      $region33: #{gpt2_classifier_forward.7} parent=31 // pred_check
        %p233 = pneg %p34
      $region34: #{gpt2_classifier_forward.7} parent=31 // pred_check_branch
        %235 = sbr.rel (%p233) target = $region36
      $region35: #{gpt2_classifier_forward.7} parent=31 // pred_region
        %p236 = scmp.lt.s32.totalorder %s14, 1
        %s237 = scalar_select %p236, %s14, 1
        %s238 = smul.addr %s237, 4
        %s239 = scalar_lea.vmem %s0, %s238
      $region36: #{gpt2_classifier_forward.7} parent=31 // pred_fallthru
        _
    $region32: #{gpt2_classifier_forward.7} parent=5 // pred_fallthru
      _
    %p240 = scmp.le.s32.totalorder 1, %s14
    %p241 = scmp.lt.s32.totalorder %s14, 3
    %p242 = pnand %p240, %p241
    %p243 = pneg %p242
    // Predicated region
    $region37: #{gpt2_classifier_forward.7} parent=5 // pred_check
      _
    $region38: #{gpt2_classifier_forward.7} parent=5 // pred_check_branch
      %245 = sbr.rel (%p242) target = $region40
    $region39: #{gpt2_classifier_forward.7} parent=5 // pred_region
      %s246 = ssub.s32 %s14, 1
      %p247 = scmp.lt.s32.totalorder %s19, 1
      %s248 = scalar_select %p247, %s19, 1
      %s249 = smul.addr %s248, 4
      %s250 = scalar_lea.vmem %s0, %s249
      %p251 = pneg %p40
      %p252 = pneg %p37
      %p253 = pneg %p61
      %p254 = pneg %p58
      %p255 = pneg %p82
      %p256 = pneg %p79
      %p257 = pneg %p103
      %p258 = pneg %p100
      %p259 = pneg %p124
      %p260 = pneg %p121
      %p261 = pneg %p150
      %p262 = pneg %p147
      %p263 = scmp.lt.s32.totalorder %s19, 1
      %s264 = scalar_select %p263, %s19, 1
      %s265 = smul.addr %s264, 4
      %s266 = scalar_lea.vmem %s5, %s265
      %p267 = pneg %p176
      %p268 = pneg %p173
      %p269 = scmp.lt.s32.totalorder %s19, 1
      %s270 = scalar_select %p269, %s19, 1
      %s271 = smul.addr %s270, 4
      %s272 = scalar_lea.vmem %s6, %s271
      %p273 = pneg %p202
      %p274 = pneg %p199
      %p275 = scmp.lt.s32.totalorder %s19, 1
      %s276 = scalar_select %p275, %s19, 1
      %s277 = smul.addr %s276, 4
      %s278 = scalar_lea.vmem %s7, %s277
      %p279 = scmp.lt.s32.totalorder %s19, 1
      %s280 = scalar_select %p279, %s19, 1
      %s281 = smul.addr %s280, 4
      %s282 = scalar_lea.vmem %s0, %s281
      %p283 = scmp.lt.s32.totalorder %s19, 1
      %s284 = scalar_select %p283, %s19, 1
      %s285 = smul.addr %s284, 4
      %s286 = scalar_lea.vmem %s5, %s285
      %p287 = scmp.lt.s32.totalorder %s19, 1
      %s288 = scalar_select %p287, %s19, 1
      %s289 = smul.addr %s288, 4
      %s290 = scalar_lea.vmem %s6, %s289
      %p291 = scmp.lt.s32.totalorder %s19, 1
      %s292 = scalar_select %p291, %s19, 1
      %s293 = smul.addr %s292, 4
      %s294 = scalar_lea.vmem %s7, %s293
      %v296 = vld [vmem:[%s282] sm:$0xf]
      %v297 = vunpack.c.l.bf16 %v296
      %v298 = vld [vmem:[%s1] sm:$0x1]
      %v299 = vld [vmem:[%s2] sm:$0x1]
      %vm300 = vcmask 261120
      %v301 = vsel %vm300, %v297, 0.0
      %302 = vadd.xlane.f32.xlu0 %v301
      %v303 = vpop.xlane.xlu0 %302
      %v304 = vrcp.pop 32.0
      %v305 = vmul.f32 32.0, %v304
      %v306 = vsub.f32 1.0, %v305
      %v307 = vmul.f32 %v304, %v306
      %v308 = vadd.f32 %v304, %v307
      %vm309 = vweird.f32 %v304
      %v310 = vsel %vm309, %v304, %v308
      %v311 = vmul.f32 %v303, %v310
      %v312 = vsub.f32 %v297, %v311
      %v313 = vmul.f32 %v312, %v312
      %v314 = vsel %vm300, %v313, 0.0
      %315 = vadd.xlane.f32.xlu0 %v314
      %v316 = vpop.xlane.xlu0 %315
      %v317 = vmul.f32 %v316, %v310
      %v318 = vadd.f32 %v317, 1e-05
      %v319 = vrsqrt.pop %v318
      %v320 = vmul.f32 %v319, %v318
      %v321 = vmul.f32 %v320, %v319
      %v322 = vmul.f32 0.5, %v321
      %v323 = vsub.f32 1.5, %v322
      %v324 = vmul.f32 %v319, %v323
      %vm325 = vweird.f32 %v318
      %vm326 = vweird.f32 %v319
      %vm327 = vmor %vm325, %vm326
      %v328 = vsel %vm327, %v319, %v324
      %v329 = vmul.f32 %v312, %v328
      %v331 = vperm.slane %v298, 0
      %v333 = vmul.f32 %v329, %v331
      %v335 = vperm.slane %v299, 0
      %v337 = vadd.f32 %v333, %v335
      %v338 = vpack.c.bf16 %v337, %v337
      %v339 = vld [vmem:[%s3] sm:$0xf]
      %v340 = vld [vmem:[%s3 + $0x4] sm:$0xf]
      %v341 = vld [vmem:[%s3 + $0x8] sm:$0xf]
      %v342 = vld [vmem:[%s3 + $0xc] sm:$0xf]
      %v343 = vld [vmem:[%s4] sm:$0x1]
      %v345 = vperm.slane %v343, 0
      %v351 = vunpack.c.l.b16 %v339
      %v352 = vunpack.c.l.b16 %v340
      %v353 = vunpack.c.l.b16 %v341
      %v354 = vunpack.c.l.b16 %v342
      %v355 = vpack.c.b16 %v352, %v351
      %v356 = vpack.c.b16 %v354, %v353
      %v360 = vsel %vm300, %v338, 0
      %362 = vmatpush.bf16.msra.mxu0 0
      %363 = vmatpush.bf16.msra.mxu0 0
      %364 = vmatpush.bf16.msra.mxu0 0
      %365 = vmatpush.bf16.msra.mxu0 0
      %366 = vmatpush.bf16.msra.mxu0 0
      %367 = vmatpush.bf16.msra.mxu0 0
      %368 = vmatpush.bf16.msra.mxu0 %v356
      %369 = vmatpush.bf16.msra.mxu0 %v355
      %370 = vmatmul.bf16.gmra.mxu0 %v360
      %v371 = vpop.f32.mrf.mxu0
      %v372 = vadd.f32 %v345, %v371
      %v373 = vpop.f32.mrf.mxu0
      %374 = vdwg.mxu0
      %v375 = vmul.f32 %v372, 0.35355338
      %v376 = vpack.c.bf16 %v375, %v375
      %vm377 = vcmask 257024
      %378 = vst.msk [vmem:[%s286] sm:$0xf] %vm377, %v376
      %v379 = vpack.c.bf16 %v372, %v372
      %381 = vrot.lane.b32.xlu0 %v379, 96
      %v382 = vpop.permute.xlu0 %381
      %384 = vst.msk [vmem:[%s290] sm:$0xf] %vm377, %v382
      %385 = vrot.lane.b32.xlu0 %v379, 64
      %v386 = vpop.permute.xlu0 %385
      %388 = vst.msk [vmem:[%s294] sm:$0xf] %vm377, %v386
      %p389 = scmp.lt.s32.totalorder %s19, 1
      %s390 = scalar_select %p389, %s19, 1
      %s391 = smul.addr %s390, 4
      %s392 = scalar_lea.vmem %s5, %s391
      %p393 = scmp.lt.s32.totalorder %s19, 1
      %s394 = scalar_select %p393, %s19, 1
      %s395 = smul.addr %s394, 4
      %s396 = scalar_lea.vmem %s6, %s395
      %p397 = scmp.lt.s32.totalorder %s19, 1
      %s398 = scalar_select %p397, %s19, 1
      %s399 = smul.addr %s398, 4
      %s400 = scalar_lea.vmem %s7, %s399
      // Predicated region
      $region41: #{gpt2_classifier_forward.7} parent=39 // pred_check
        %p401 = pneg %p147
      $region42: #{gpt2_classifier_forward.7} parent=39 // pred_check_branch
        %403 = sbr.rel (%p401) target = $region44
      $region43: #{gpt2_classifier_forward.7} parent=39 // pred_region
        _
      $region44: #{gpt2_classifier_forward.7} parent=39 // pred_fallthru
        _
      // Predicated region
      $region45: #{gpt2_classifier_forward.7} parent=39 // pred_check
        %p404 = pneg %p173
      $region46: #{gpt2_classifier_forward.7} parent=39 // pred_check_branch
        %406 = sbr.rel (%p404) target = $region48
      $region47: #{gpt2_classifier_forward.7} parent=39 // pred_region
        _
      $region48: #{gpt2_classifier_forward.7} parent=39 // pred_fallthru
        _
      // Predicated region
      $region49: #{gpt2_classifier_forward.7} parent=39 // pred_check
        %p407 = pneg %p199
      $region50: #{gpt2_classifier_forward.7} parent=39 // pred_check_branch
        %409 = sbr.rel (%p407) target = $region52
      $region51: #{gpt2_classifier_forward.7} parent=39 // pred_region
        _
      $region52: #{gpt2_classifier_forward.7} parent=39 // pred_fallthru
        _
    $region40: #{gpt2_classifier_forward.7} parent=5 // pred_fallthru
      _
    %p410 = scmp.le.s32.totalorder 2, %s14
    // Predicated region
    $region53: #{gpt2_classifier_forward.7} parent=5 // pred_check
      %p411 = pneg %p410
    $region54: #{gpt2_classifier_forward.7} parent=5 // pred_check_branch
      %413 = sbr.rel (%p411) target = $region56
    $region55: #{gpt2_classifier_forward.7} parent=5 // pred_region
      %s414 = ssub.s32 %s14, 2
      // Predicated region
      $region57: #{gpt2_classifier_forward.7} parent=55 // pred_check
        %p415 = pneg %p153
      $region58: #{gpt2_classifier_forward.7} parent=55 // pred_check_branch
        %417 = sbr.rel (%p415) target = $region60
      $region59: #{gpt2_classifier_forward.7} parent=55 // pred_region
        %p418 = scmp.lt.s32.totalorder %s20, 1
        %s419 = scalar_select %p418, %s20, 1
        %s420 = smul.addr %s419, 4
        %s421 = scalar_lea.vmem %s5, %s420
      $region60: #{gpt2_classifier_forward.7} parent=55 // pred_fallthru
        _
      // Predicated region
      $region61: #{gpt2_classifier_forward.7} parent=55 // pred_check
        %p422 = pneg %p179
      $region62: #{gpt2_classifier_forward.7} parent=55 // pred_check_branch
        %424 = sbr.rel (%p422) target = $region64
      $region63: #{gpt2_classifier_forward.7} parent=55 // pred_region
        %p425 = scmp.lt.s32.totalorder %s20, 1
        %s426 = scalar_select %p425, %s20, 1
        %s427 = smul.addr %s426, 4
        %s428 = scalar_lea.vmem %s6, %s427
      $region64: #{gpt2_classifier_forward.7} parent=55 // pred_fallthru
        _
      // Predicated region
      $region65: #{gpt2_classifier_forward.7} parent=55 // pred_check
        %p429 = pneg %p205
      $region66: #{gpt2_classifier_forward.7} parent=55 // pred_check_branch
        %431 = sbr.rel (%p429) target = $region68
      $region67: #{gpt2_classifier_forward.7} parent=55 // pred_region
        %p432 = scmp.lt.s32.totalorder %s20, 1
        %s433 = scalar_select %p432, %s20, 1
        %s434 = smul.addr %s433, 4
        %s435 = scalar_lea.vmem %s7, %s434
      $region68: #{gpt2_classifier_forward.7} parent=55 // pred_fallthru
        _
    $region56: #{gpt2_classifier_forward.7} parent=5 // pred_fallthru
      _
  $region6: #{gpt2_classifier_forward.7} parent=0 // loop_footer
    %s18 = sadd.s32 1, %s14
  $region7: #{gpt2_classifier_forward.7} parent=0 // loop_footer_branch
    %13 = sbr.rel target = $region3
  $region8: #{gpt2_classifier_forward.7} parent=0 // loop_exit
    _

// kernel: gpt2_classifier_forward.9
$region0: #{gpt2_classifier_forward.9}
  #allocation0 [shape = 'u32[]', space=smem, size = 0x4, offset = 0x4, fixed_abs, tag = 'smem constant byte address 0x4 - core index']
  #allocation1 [shape = 'u32[72,128]{1,0:T(1,128)}', space=vmem, size = 0x9000, scoped, tag = 'internal scratch']
  %s0 = inlined_call_operand.vmem [shape: bf16[16,32], index: 0, kind: input, shape index: {}]
  %s1 = inlined_call_operand.vmem [shape: f32[1,32], index: 1, kind: input, shape index: {}]
  %s2 = inlined_call_operand.vmem [shape: f32[1,32], index: 2, kind: input, shape index: {}]
  %s3 = inlined_call_operand.vmem [shape: bf16[32,128], index: 3, kind: input, shape index: {}]
  %s4 = inlined_call_operand.vmem [shape: f32[1,128], index: 4, kind: input, shape index: {}]
  %s5 = inlined_call_operand.vmem [shape: bf16[128,32], index: 5, kind: input, shape index: {}]
  %s6 = inlined_call_operand.vmem [shape: f32[1,32], index: 6, kind: input, shape index: {}]
  %s7 = inlined_call_operand.vmem [shape: f32[1,32], index: 7, kind: input, shape index: {}]
  %s8 = inlined_call_operand.vmem [shape: f32[1,32], index: 8, kind: input, shape index: {}]
  %s9 = inlined_call_operand.vmem [shape: bf16[16,32], index: 9, kind: output, shape index: {}]
  %s10 = sld [smem:[#allocation0]]
  $region69: #{gpt2_classifier_forward.9} parent=0
    _
  %s12 = ssub.s32 1, %s10
  %s13 = scalar_select 0, %s12, %s10
  loop: start=0, step=1, limit=4
  $region2: #{gpt2_classifier_forward.9} parent=0 // loop_pre_header
    _
  $region3: #{gpt2_classifier_forward.9} parent=0 // loop_header
    %s15 = sphi 0, %s19
    %p16 = scmp.ge.s32.totalorder %s15, 4
    %s25 = sphi 0, %s27
    %s28 = sphi 0, %s25
    %s29 = sphi 0, %s28
    %s45 = sphi 0, %s29
    %s49 = sphi 0, %s49
    %s51 = sphi 0, %s49
    %s52 = sphi 0, %s51
    %s66 = sphi 0, %s52
    %s70 = sphi 0, %s70
    %s72 = sphi 0, %s70
    %s73 = sphi 0, %s72
    %s87 = sphi 0, %s73
    %s91 = sphi 0, %s91
    %s93 = sphi 0, %s91
    %s94 = sphi 0, %s93
    %s108 = sphi 0, %s94
    %s112 = sphi 0, %s112
    %s114 = sphi 0, %s112
    %s115 = sphi 0, %s114
    %s129 = sphi 0, %s115
    %s133 = sphi 0, %s133
    %s135 = sphi 0, %s133
    %s136 = sphi 0, %s135
    %s150 = sphi 0, %s136
    %s154 = sphi 0, %s154
    %s156 = sphi 0, %s154
    %s157 = sphi 0, %s156
    %s171 = sphi 0, %s157
    %s175 = sphi 0, %s175
    %s177 = sphi 0, %s175
    %s178 = sphi 0, %s177
    %s192 = sphi 0, %s178
    %s196 = sphi 0, %s196
    %s198 = sphi 0, %s196
    %s199 = sphi 0, %s198
    %s213 = sphi 0, %s199
    %s219 = sphi 0, %s221
    %s222 = sphi 0, %s219
    %s223 = sphi 0, %s222
    %s239 = sphi 0, %s223
  $region4: #{gpt2_classifier_forward.9} parent=0 // loop_header_branch
    %18 = sbr.rel (%p16) target = $region8
  $region5: #{gpt2_classifier_forward.9} parent=0 // loop_body
    %s20 = ssub.s32 %s15, 1
    %s21 = ssub.s32 %s15, 2
    %s22 = sadd.s32 %s15, 1
    %s23 = ssub.s32 %s15, %s22
    %p24 = scmp.eq.s32.totalorder %s23, 0
    %s26 = sadd.s32 %s25, 1
    %s27 = scalar_select %p24, %s25, %s26
    %p30 = pneg %p24
    %p31 = scmp.eq.s32.totalorder %s15, 1
    %p32 = por %p30, %p31
    %p33 = scmp.ne.s32.totalorder %s25, %s28
    %p34 = scmp.eq.s32.totalorder %s15, 0
    %p35 = por %p33, %p34
    %p36 = scmp.ne.s32.totalorder %s25, %s28
    %p37 = scmp.eq.s32.totalorder %s20, 1
    %p38 = por %p36, %p37
    %p39 = scmp.ne.s32.totalorder %s28, %s29
    %p40 = scmp.eq.s32.totalorder %s20, 0
    %p41 = por %p39, %p40
    %p42 = scmp.ne.s32.totalorder %s28, %s29
    %p43 = scmp.eq.s32.totalorder %s21, 1
    %p44 = por %p42, %p43
    %p46 = scmp.ne.s32.totalorder %s29, %s45
    %p47 = scmp.eq.s32.totalorder %s21, 0
    %p48 = por %p46, %p47
    %s50 = sadd.s32 %s49, 1
    %p53 = scmp.eq.s32.totalorder %s15, 1
    %p54 = scmp.ne.s32.totalorder %s49, %s51
    %p55 = scmp.eq.s32.totalorder %s15, 0
    %p56 = por %p54, %p55
    %p57 = scmp.ne.s32.totalorder %s49, %s51
    %p58 = scmp.eq.s32.totalorder %s20, 1
    %p59 = por %p57, %p58
    %p60 = scmp.ne.s32.totalorder %s51, %s52
    %p61 = scmp.eq.s32.totalorder %s20, 0
    %p62 = por %p60, %p61
    %p63 = scmp.ne.s32.totalorder %s51, %s52
    %p64 = scmp.eq.s32.totalorder %s21, 1
    %p65 = por %p63, %p64
    %p67 = scmp.ne.s32.totalorder %s52, %s66
    %p68 = scmp.eq.s32.totalorder %s21, 0
    %p69 = por %p67, %p68
    %s71 = sadd.s32 %s70, 1
    %p74 = scmp.eq.s32.totalorder %s15, 1
    %p75 = scmp.ne.s32.totalorder %s70, %s72
    %p76 = scmp.eq.s32.totalorder %s15, 0
    %p77 = por %p75, %p76
    %p78 = scmp.ne.s32.totalorder %s70, %s72
    %p79 = scmp.eq.s32.totalorder %s20, 1
    %p80 = por %p78, %p79
    %p81 = scmp.ne.s32.totalorder %s72, %s73
    %p82 = scmp.eq.s32.totalorder %s20, 0
    %p83 = por %p81, %p82
    %p84 = scmp.ne.s32.totalorder %s72, %s73
    %p85 = scmp.eq.s32.totalorder %s21, 1
    %p86 = por %p84, %p85
    %p88 = scmp.ne.s32.totalorder %s73, %s87
    %p89 = scmp.eq.s32.totalorder %s21, 0
    %p90 = por %p88, %p89
    %s92 = sadd.s32 %s91, 1
    %p95 = scmp.eq.s32.totalorder %s15, 1
    %p96 = scmp.ne.s32.totalorder %s91, %s93
    %p97 = scmp.eq.s32.totalorder %s15, 0
    %p98 = por %p96, %p97
    %p99 = scmp.ne.s32.totalorder %s91, %s93
    %p100 = scmp.eq.s32.totalorder %s20, 1
    %p101 = por %p99, %p100
    %p102 = scmp.ne.s32.totalorder %s93, %s94
    %p103 = scmp.eq.s32.totalorder %s20, 0
    %p104 = por %p102, %p103
    %p105 = scmp.ne.s32.totalorder %s93, %s94
    %p106 = scmp.eq.s32.totalorder %s21, 1
    %p107 = por %p105, %p106
    %p109 = scmp.ne.s32.totalorder %s94, %s108
    %p110 = scmp.eq.s32.totalorder %s21, 0
    %p111 = por %p109, %p110
    %s113 = sadd.s32 %s112, 1
    %p116 = scmp.eq.s32.totalorder %s15, 1
    %p117 = scmp.ne.s32.totalorder %s112, %s114
    %p118 = scmp.eq.s32.totalorder %s15, 0
    %p119 = por %p117, %p118
    %p120 = scmp.ne.s32.totalorder %s112, %s114
    %p121 = scmp.eq.s32.totalorder %s20, 1
    %p122 = por %p120, %p121
    %p123 = scmp.ne.s32.totalorder %s114, %s115
    %p124 = scmp.eq.s32.totalorder %s20, 0
    %p125 = por %p123, %p124
    %p126 = scmp.ne.s32.totalorder %s114, %s115
    %p127 = scmp.eq.s32.totalorder %s21, 1
    %p128 = por %p126, %p127
    %p130 = scmp.ne.s32.totalorder %s115, %s129
    %p131 = scmp.eq.s32.totalorder %s21, 0
    %p132 = por %p130, %p131
    %s134 = sadd.s32 %s133, 1
    %p137 = scmp.eq.s32.totalorder %s15, 1
    %p138 = scmp.ne.s32.totalorder %s133, %s135
    %p139 = scmp.eq.s32.totalorder %s15, 0
    %p140 = por %p138, %p139
    %p141 = scmp.ne.s32.totalorder %s133, %s135
    %p142 = scmp.eq.s32.totalorder %s20, 1
    %p143 = por %p141, %p142
    %p144 = scmp.ne.s32.totalorder %s135, %s136
    %p145 = scmp.eq.s32.totalorder %s20, 0
    %p146 = por %p144, %p145
    %p147 = scmp.ne.s32.totalorder %s135, %s136
    %p148 = scmp.eq.s32.totalorder %s21, 1
    %p149 = por %p147, %p148
    %p151 = scmp.ne.s32.totalorder %s136, %s150
    %p152 = scmp.eq.s32.totalorder %s21, 0
    %p153 = por %p151, %p152
    %s155 = sadd.s32 %s154, 1
    %p158 = scmp.eq.s32.totalorder %s15, 1
    %p159 = scmp.ne.s32.totalorder %s154, %s156
    %p160 = scmp.eq.s32.totalorder %s15, 0
    %p161 = por %p159, %p160
    %p162 = scmp.ne.s32.totalorder %s154, %s156
    %p163 = scmp.eq.s32.totalorder %s20, 1
    %p164 = por %p162, %p163
    %p165 = scmp.ne.s32.totalorder %s156, %s157
    %p166 = scmp.eq.s32.totalorder %s20, 0
    %p167 = por %p165, %p166
    %p168 = scmp.ne.s32.totalorder %s156, %s157
    %p169 = scmp.eq.s32.totalorder %s21, 1
    %p170 = por %p168, %p169
    %p172 = scmp.ne.s32.totalorder %s157, %s171
    %p173 = scmp.eq.s32.totalorder %s21, 0
    %p174 = por %p172, %p173
    %s176 = sadd.s32 %s175, 1
    %p179 = scmp.eq.s32.totalorder %s15, 1
    %p180 = scmp.ne.s32.totalorder %s175, %s177
    %p181 = scmp.eq.s32.totalorder %s15, 0
    %p182 = por %p180, %p181
    %p183 = scmp.ne.s32.totalorder %s175, %s177
    %p184 = scmp.eq.s32.totalorder %s20, 1
    %p185 = por %p183, %p184
    %p186 = scmp.ne.s32.totalorder %s177, %s178
    %p187 = scmp.eq.s32.totalorder %s20, 0
    %p188 = por %p186, %p187
    %p189 = scmp.ne.s32.totalorder %s177, %s178
    %p190 = scmp.eq.s32.totalorder %s21, 1
    %p191 = por %p189, %p190
    %p193 = scmp.ne.s32.totalorder %s178, %s192
    %p194 = scmp.eq.s32.totalorder %s21, 0
    %p195 = por %p193, %p194
    %s197 = sadd.s32 %s196, 1
    %p200 = scmp.eq.s32.totalorder %s15, 1
    %p201 = scmp.ne.s32.totalorder %s196, %s198
    %p202 = scmp.eq.s32.totalorder %s15, 0
    %p203 = por %p201, %p202
    %p204 = scmp.ne.s32.totalorder %s196, %s198
    %p205 = scmp.eq.s32.totalorder %s20, 1
    %p206 = por %p204, %p205
    %p207 = scmp.ne.s32.totalorder %s198, %s199
    %p208 = scmp.eq.s32.totalorder %s20, 0
    %p209 = por %p207, %p208
    %p210 = scmp.ne.s32.totalorder %s198, %s199
    %p211 = scmp.eq.s32.totalorder %s21, 1
    %p212 = por %p210, %p211
    %p214 = scmp.ne.s32.totalorder %s199, %s213
    %p215 = scmp.eq.s32.totalorder %s21, 0
    %p216 = por %p214, %p215
    %s217 = ssub.s32 %s15, %s22
    %p218 = scmp.eq.s32.totalorder %s217, 0
    %s220 = sadd.s32 %s219, 1
    %s221 = scalar_select %p218, %s219, %s220
    %p224 = pneg %p218
    %p225 = scmp.eq.s32.totalorder %s15, 1
    %p226 = por %p224, %p225
    %p227 = scmp.ne.s32.totalorder %s219, %s222
    %p228 = scmp.eq.s32.totalorder %s15, 0
    %p229 = por %p227, %p228
    %p230 = scmp.ne.s32.totalorder %s219, %s222
    %p231 = scmp.eq.s32.totalorder %s20, 1
    %p232 = por %p230, %p231
    %p233 = scmp.ne.s32.totalorder %s222, %s223
    %p234 = scmp.eq.s32.totalorder %s20, 0
    %p235 = por %p233, %p234
    %p236 = scmp.ne.s32.totalorder %s222, %s223
    %p237 = scmp.eq.s32.totalorder %s21, 1
    %p238 = por %p236, %p237
    %p240 = scmp.ne.s32.totalorder %s223, %s239
    %p241 = scmp.eq.s32.totalorder %s21, 0
    %p242 = por %p240, %p241
    %p243 = scmp.le.s32.totalorder 1, %s15
    %p244 = scmp.lt.s32.totalorder %s15, 3
    %p245 = pnand %p243, %p244
    %p246 = pneg %p245
    // Predicated region
    $region9: #{gpt2_classifier_forward.9} parent=5 // pred_check
      _
    $region10: #{gpt2_classifier_forward.9} parent=5 // pred_check_branch
      %248 = sbr.rel (%p245) target = $region12
    $region11: #{gpt2_classifier_forward.9} parent=5 // pred_region
      %s249 = ssub.s32 %s15, 1
      // Predicated region
      $region13: #{gpt2_classifier_forward.9} parent=11 // pred_check
        %p250 = pneg %p62
      $region14: #{gpt2_classifier_forward.9} parent=11 // pred_check_branch
        %252 = sbr.rel (%p250) target = $region16
      $region15: #{gpt2_classifier_forward.9} parent=11 // pred_region
        _
      $region16: #{gpt2_classifier_forward.9} parent=11 // pred_fallthru
        _
      // Predicated region
      $region17: #{gpt2_classifier_forward.9} parent=11 // pred_check
        %p253 = pneg %p83
      $region18: #{gpt2_classifier_forward.9} parent=11 // pred_check_branch
        %255 = sbr.rel (%p253) target = $region20
      $region19: #{gpt2_classifier_forward.9} parent=11 // pred_region
        _
      $region20: #{gpt2_classifier_forward.9} parent=11 // pred_fallthru
        _
      // Predicated region
      $region21: #{gpt2_classifier_forward.9} parent=11 // pred_check
        %p256 = pneg %p104
      $region22: #{gpt2_classifier_forward.9} parent=11 // pred_check_branch
        %258 = sbr.rel (%p256) target = $region24
      $region23: #{gpt2_classifier_forward.9} parent=11 // pred_region
        _
      $region24: #{gpt2_classifier_forward.9} parent=11 // pred_fallthru
        _
      // Predicated region
      $region25: #{gpt2_classifier_forward.9} parent=11 // pred_check
        %p259 = pneg %p125
      $region26: #{gpt2_classifier_forward.9} parent=11 // pred_check_branch
        %261 = sbr.rel (%p259) target = $region28
      $region27: #{gpt2_classifier_forward.9} parent=11 // pred_region
        _
      $region28: #{gpt2_classifier_forward.9} parent=11 // pred_fallthru
        _
      // Predicated region
      $region29: #{gpt2_classifier_forward.9} parent=11 // pred_check
        %p262 = pneg %p146
      $region30: #{gpt2_classifier_forward.9} parent=11 // pred_check_branch
        %264 = sbr.rel (%p262) target = $region32
      $region31: #{gpt2_classifier_forward.9} parent=11 // pred_region
        _
      $region32: #{gpt2_classifier_forward.9} parent=11 // pred_fallthru
        _
      // Predicated region
      $region33: #{gpt2_classifier_forward.9} parent=11 // pred_check
        %p265 = pneg %p167
      $region34: #{gpt2_classifier_forward.9} parent=11 // pred_check_branch
        %267 = sbr.rel (%p265) target = $region36
      $region35: #{gpt2_classifier_forward.9} parent=11 // pred_region
        _
      $region36: #{gpt2_classifier_forward.9} parent=11 // pred_fallthru
        _
      // Predicated region
      $region37: #{gpt2_classifier_forward.9} parent=11 // pred_check
        %p268 = pneg %p188
      $region38: #{gpt2_classifier_forward.9} parent=11 // pred_check_branch
        %270 = sbr.rel (%p268) target = $region40
      $region39: #{gpt2_classifier_forward.9} parent=11 // pred_region
        _
      $region40: #{gpt2_classifier_forward.9} parent=11 // pred_fallthru
        _
      // Predicated region
      $region41: #{gpt2_classifier_forward.9} parent=11 // pred_check
        %p271 = pneg %p209
      $region42: #{gpt2_classifier_forward.9} parent=11 // pred_check_branch
        %273 = sbr.rel (%p271) target = $region44
      $region43: #{gpt2_classifier_forward.9} parent=11 // pred_region
        _
      $region44: #{gpt2_classifier_forward.9} parent=11 // pred_fallthru
        _
    $region12: #{gpt2_classifier_forward.9} parent=5 // pred_fallthru
      _
    %p274 = scmp.lt.s32.totalorder %s15, 2
    // Predicated region
    $region45: #{gpt2_classifier_forward.9} parent=5 // pred_check
      %p275 = pneg %p274
    $region46: #{gpt2_classifier_forward.9} parent=5 // pred_check_branch
      %277 = sbr.rel (%p275) target = $region48
    $region47: #{gpt2_classifier_forward.9} parent=5 // pred_region
      // Predicated region
      $region49: #{gpt2_classifier_forward.9} parent=47 // pred_check
        %p278 = pneg %p35
      $region50: #{gpt2_classifier_forward.9} parent=47 // pred_check_branch
        %280 = sbr.rel (%p278) target = $region52
      $region51: #{gpt2_classifier_forward.9} parent=47 // pred_region
        %p281 = scmp.lt.s32.totalorder %s15, 1
        %s282 = scalar_select %p281, %s15, 1
        %s283 = smul.addr %s282, 4
        %s284 = scalar_lea.vmem %s0, %s283
      $region52: #{gpt2_classifier_forward.9} parent=47 // pred_fallthru
        _
    $region48: #{gpt2_classifier_forward.9} parent=5 // pred_fallthru
      _
    %p285 = scmp.le.s32.totalorder 1, %s15
    %p286 = scmp.lt.s32.totalorder %s15, 3
    %p287 = pnand %p285, %p286
    %p288 = pneg %p287
    // Predicated region
    $region53: #{gpt2_classifier_forward.9} parent=5 // pred_check
      _
    $region54: #{gpt2_classifier_forward.9} parent=5 // pred_check_branch
      %290 = sbr.rel (%p287) target = $region56
    $region55: #{gpt2_classifier_forward.9} parent=5 // pred_region
      %s291 = ssub.s32 %s15, 1
      %p292 = scmp.lt.s32.totalorder %s20, 1
      %s293 = scalar_select %p292, %s20, 1
      %s294 = smul.addr %s293, 4
      %s295 = scalar_lea.vmem %s0, %s294
      %p296 = pneg %p41
      %p297 = pneg %p38
      %p298 = pneg %p62
      %p299 = pneg %p59
      %p300 = pneg %p83
      %p301 = pneg %p80
      %p302 = pneg %p104
      %p303 = pneg %p101
      %p304 = pneg %p125
      %p305 = pneg %p122
      %p306 = pneg %p146
      %p307 = pneg %p143
      %p308 = pneg %p167
      %p309 = pneg %p164
      %p310 = pneg %p188
      %p311 = pneg %p185
      %p312 = pneg %p209
      %p313 = pneg %p206
      %p314 = pneg %p235
      %p315 = pneg %p232
      %p316 = scmp.lt.s32.totalorder %s20, 1
      %s317 = scalar_select %p316, %s20, 1
      %s318 = smul.addr %s317, 4
      %s319 = scalar_lea.vmem %s9, %s318
      %p320 = scmp.lt.s32.totalorder %s20, 1
      %s321 = scalar_select %p320, %s20, 1
      %s322 = smul.addr %s321, 4
      %s323 = scalar_lea.vmem %s0, %s322
      %p324 = scmp.lt.s32.totalorder %s20, 1
      %s325 = scalar_select %p324, %s20, 1
      %s326 = smul.addr %s325, 4
      %s327 = scalar_lea.vmem %s9, %s326
      %v329 = vld [vmem:[%s323] sm:$0xf]
      %v330 = vunpack.c.l.bf16 %v329
      %v331 = vld [vmem:[%s1] sm:$0x1]
      %v332 = vld [vmem:[%s2] sm:$0x1]
      %vm333 = vcmask 261120
      %v334 = vsel %vm333, %v330, 0.0
      %335 = vadd.xlane.f32.xlu0 %v334
      %v336 = vpop.xlane.xlu0 %335
      %v337 = vrcp.pop 32.0
      %v338 = vmul.f32 32.0, %v337
      %v339 = vsub.f32 1.0, %v338
      %v340 = vmul.f32 %v337, %v339
      %v341 = vadd.f32 %v337, %v340
      %vm342 = vweird.f32 %v337
      %v343 = vsel %vm342, %v337, %v341
      %v344 = vmul.f32 %v336, %v343
      %v345 = vsub.f32 %v330, %v344
      %v346 = vmul.f32 %v345, %v345
      %v347 = vsel %vm333, %v346, 0.0
      %348 = vadd.xlane.f32.xlu0 %v347
      %v349 = vpop.xlane.xlu0 %348
      %v350 = vmul.f32 %v349, %v343
      %v351 = vadd.f32 %v350, 1e-05
      %v352 = vrsqrt.pop %v351
      %v353 = vmul.f32 %v352, %v351
      %v354 = vmul.f32 %v353, %v352
      %v355 = vmul.f32 0.5, %v354
      %v356 = vsub.f32 1.5, %v355
      %v357 = vmul.f32 %v352, %v356
      %vm358 = vweird.f32 %v351
      %vm359 = vweird.f32 %v352
      %vm360 = vmor %vm358, %vm359
      %v361 = vsel %vm360, %v352, %v357
      %v362 = vmul.f32 %v345, %v361
      %v364 = vperm.slane %v331, 0
      %v366 = vmul.f32 %v362, %v364
      %v368 = vperm.slane %v332, 0
      %v370 = vadd.f32 %v366, %v368
      %v371 = vpack.c.bf16 %v370, %v370
      %v372 = vld [vmem:[%s3] sm:$0xf]
      %v373 = vld [vmem:[%s3 + $0x4] sm:$0xf]
      %v374 = vld [vmem:[%s3 + $0x8] sm:$0xf]
      %v375 = vld [vmem:[%s3 + $0xc] sm:$0xf]
      %v376 = vld [vmem:[%s4] sm:$0x1]
      %v378 = vperm.slane %v376, 0
      %v384 = vunpack.c.l.b16 %v372
      %v385 = vunpack.c.l.b16 %v373
      %v386 = vunpack.c.l.b16 %v374
      %v387 = vunpack.c.l.b16 %v375
      %v388 = vpack.c.b16 %v385, %v384
      %v389 = vpack.c.b16 %v387, %v386
      %v393 = vsel %vm333, %v371, 0
      %395 = vmatpush.bf16.msra.mxu0 0
      %396 = vmatpush.bf16.msra.mxu0 0
      %397 = vmatpush.bf16.msra.mxu0 0
      %398 = vmatpush.bf16.msra.mxu0 0
      %399 = vmatpush.bf16.msra.mxu0 0
      %400 = vmatpush.bf16.msra.mxu0 0
      %401 = vmatpush.bf16.msra.mxu0 %v389
      %402 = vmatpush.bf16.msra.mxu0 %v388
      %403 = vmatmul.bf16.gmra.mxu0 %v393
      %v404 = vpop.f32.mrf.mxu0
      %v405 = vadd.f32 %v378, %v404
      %v406 = vpop.f32.mrf.mxu0
      %407 = vdwg.mxu0
      %v408 = vmul.f32 %v405, 0.5
      %v409 = vmul.f32 %v405, 0.044715
      %v410 = vmul.f32 %v409, %v405
      %v411 = vmul.f32 %v410, %v405
      %v412 = vadd.f32 %v405, %v411
      %v413 = vmul.f32 %v412, 0.7978846
      %v414 = vtanh.pop %v413
      %v415 = vadd.f32 %v414, 1.0
      %v416 = vmul.f32 %v408, %v415
      %v417 = vpack.c.bf16 %v416, %v416
      %v418 = vld [vmem:[%s5] sm:$0xf]
      %v419 = vld [vmem:[%s5 + $0x4] sm:$0xf]
      %v420 = vld [vmem:[%s5 + $0x8] sm:$0xf]
      %v421 = vld [vmem:[%s5 + $0xc] sm:$0xf]
      %v422 = vld [vmem:[%s5 + $0x10] sm:$0xf]
      %v423 = vld [vmem:[%s5 + $0x14] sm:$0xf]
      %v424 = vld [vmem:[%s5 + $0x18] sm:$0xf]
      %v425 = vld [vmem:[%s5 + $0x1c] sm:$0xf]
      %v426 = vld [vmem:[%s5 + $0x20] sm:$0xf]
      %v427 = vld [vmem:[%s5 + $0x24] sm:$0xf]
      %v428 = vld [vmem:[%s5 + $0x28] sm:$0xf]
      %v429 = vld [vmem:[%s5 + $0x2c] sm:$0xf]
      %v430 = vld [vmem:[%s5 + $0x30] sm:$0xf]
      %v431 = vld [vmem:[%s5 + $0x34] sm:$0xf]
      %v432 = vld [vmem:[%s5 + $0x38] sm:$0xf]
      %v433 = vld [vmem:[%s5 + $0x3c] sm:$0xf]
      %v434 = vld [vmem:[%s6] sm:$0x1]
      %v436 = vperm.slane %v434, 0
      %v454 = vunpack.c.l.b16 %v418
      %v455 = vunpack.c.l.b16 %v419
      %v456 = vunpack.c.l.b16 %v420
      %v457 = vunpack.c.l.b16 %v421
      %v458 = vunpack.c.l.b16 %v422
      %v459 = vunpack.c.l.b16 %v423
      %v460 = vunpack.c.l.b16 %v424
      %v461 = vunpack.c.l.b16 %v425
      %v462 = vunpack.c.l.b16 %v426
      %v463 = vunpack.c.l.b16 %v427
      %v464 = vunpack.c.l.b16 %v428
      %v465 = vunpack.c.l.b16 %v429
      %v466 = vunpack.c.l.b16 %v430
      %v467 = vunpack.c.l.b16 %v431
      %v468 = vunpack.c.l.b16 %v432
      %v469 = vunpack.c.l.b16 %v433
      %v470 = vpack.c.b16 %v455, %v454
      %v471 = vpack.c.b16 %v457, %v456
      %v472 = vpack.c.b16 %v459, %v458
      %v473 = vpack.c.b16 %v461, %v460
      %v474 = vpack.c.b16 %v463, %v462
      %v475 = vpack.c.b16 %v465, %v464
      %v476 = vpack.c.b16 %v467, %v466
      %v477 = vpack.c.b16 %v469, %v468
      %486 = vmatpush.bf16.msra.mxu0 %v477
      %487 = vmatpush.bf16.msra.mxu0 %v476
      %488 = vmatpush.bf16.msra.mxu0 %v475
      %489 = vmatpush.bf16.msra.mxu0 %v474
      %490 = vmatpush.bf16.msra.mxu0 %v473
      %491 = vmatpush.bf16.msra.mxu0 %v472
      %492 = vmatpush.bf16.msra.mxu0 %v471
      %493 = vmatpush.bf16.msra.mxu0 %v470
      %494 = vmatmul.bf16.gmra.mxu0 %v417
      %v495 = vpop.f32.mrf.mxu0
      %v496 = vadd.f32 %v436, %v495
      %v497 = vpop.f32.mrf.mxu0
      %498 = vdwg.mxu0
      %v499 = vadd.f32 %v330, %v496
      %v500 = vpack.c.bf16 %v499, %v499
      %vm501 = vcmask 257024
      %502 = vst.msk [vmem:[%s327] sm:$0xf] %vm501, %v500
      %p503 = scmp.lt.s32.totalorder %s20, 1
      %s504 = scalar_select %p503, %s20, 1
      %s505 = smul.addr %s504, 4
      %s506 = scalar_lea.vmem %s9, %s505
      // Predicated region
      $region57: #{gpt2_classifier_forward.9} parent=55 // pred_check
        %p507 = pneg %p232
      $region58: #{gpt2_classifier_forward.9} parent=55 // pred_check_branch
        %509 = sbr.rel (%p507) target = $region60
      $region59: #{gpt2_classifier_forward.9} parent=55 // pred_region
        _
      $region60: #{gpt2_classifier_forward.9} parent=55 // pred_fallthru
        _
    $region56: #{gpt2_classifier_forward.9} parent=5 // pred_fallthru
      _
    %p510 = scmp.le.s32.totalorder 2, %s15
    // Predicated region
    $region61: #{gpt2_classifier_forward.9} parent=5 // pred_check
      %p511 = pneg %p510
    $region62: #{gpt2_classifier_forward.9} parent=5 // pred_check_branch
      %513 = sbr.rel (%p511) target = $region64
    $region63: #{gpt2_classifier_forward.9} parent=5 // pred_region
      %s514 = ssub.s32 %s15, 2
      // Predicated region
      $region65: #{gpt2_classifier_forward.9} parent=63 // pred_check
        %p515 = pneg %p238
      $region66: #{gpt2_classifier_forward.9} parent=63 // pred_check_branch
        %517 = sbr.rel (%p515) target = $region68
      $region67: #{gpt2_classifier_forward.9} parent=63 // pred_region
        %p518 = scmp.lt.s32.totalorder %s21, 1
        %s519 = scalar_select %p518, %s21, 1
        %s520 = smul.addr %s519, 4
        %s521 = scalar_lea.vmem %s9, %s520
      $region68: #{gpt2_classifier_forward.9} parent=63 // pred_fallthru
        _
    $region64: #{gpt2_classifier_forward.9} parent=5 // pred_fallthru
      _
  $region6: #{gpt2_classifier_forward.9} parent=0 // loop_footer
    %s19 = sadd.s32 1, %s15
  $region7: #{gpt2_classifier_forward.9} parent=0 // loop_footer_branch
    %14 = sbr.rel target = $region3
  $region8: #{gpt2_classifier_forward.9} parent=0 // loop_exit
    _

// kernel: gpt2_classifier_forward.8
$region0: #{gpt2_classifier_forward.8}
  #allocation0 [shape = 'u32[]', space=smem, size = 0x4, offset = 0x4, fixed_abs, tag = 'smem constant byte address 0x4 - core index']
  #allocation1 [shape = 'u32[72,128]{1,0:T(1,128)}', space=vmem, size = 0x9000, scoped, tag = 'internal scratch']
  #allocation2 [shape = 'f32[4,8,1]{2,1,0:T(8,128)}', space=vmem, size = 0x4000, scoped, tag = 'scratch operand']
  #allocation3 [shape = 'f32[4,8,1]{2,1,0:T(8,128)}', space=vmem, size = 0x4000, scoped, tag = 'scratch operand']
  #allocation4 [shape = 'f32[4,8,8]{2,1,0:T(8,128)}', space=vmem, size = 0x4000, scoped, tag = 'scratch operand']
  %s0 = inlined_call_operand.vmem [shape: bf16[2,8,32], index: 0, kind: input, shape index: {}]
  %s1 = inlined_call_operand.vmem [shape: bf16[2,8,32], index: 1, kind: input, shape index: {}]
  %s2 = inlined_call_operand.vmem [shape: bf16[2,8,32], index: 2, kind: input, shape index: {}]
  %s3 = inlined_call_operand.vmem [shape: bf16[2,8,32], index: 3, kind: input, shape index: {}]
  %s4 = inlined_call_operand.vmem [shape: f32[2,1,8], index: 4, kind: input, shape index: {}]
  %s5 = inlined_call_operand.vmem [shape: bf16[32,32], index: 5, kind: input, shape index: {}]
  %s6 = inlined_call_operand.vmem [shape: f32[1,32], index: 6, kind: input, shape index: {}]
  %s7 = inlined_call_operand.vmem [shape: bf16[2,8,32], index: 7, kind: output, shape index: {}]
  %s8 = sld [smem:[#allocation0]]
  $region69: #{gpt2_classifier_forward.8} parent=0
    _
  %s10 = ssub.s32 1, %s8
  %s11 = scalar_select 0, %s10, %s8
  loop: start=0, step=1, limit=4
  $region2: #{gpt2_classifier_forward.8} parent=0 // loop_pre_header
    _
  $region3: #{gpt2_classifier_forward.8} parent=0 // loop_header
    %s13 = sphi 0, %s17
    %p14 = scmp.ge.s32.totalorder %s13, 4
    %s20 = sphi 0, %s39
    %s21 = sphi 0, %s35
    %s22 = sphi 0, %s31
    %s23 = sphi 0, %s20
    %s24 = sphi 0, %s21
    %s25 = sphi 0, %s22
    %s26 = sphi 0, %s23
    %s27 = sphi 0, %s24
    %s28 = sphi 0, %s25
    %s44 = sphi 0, %s46
    %s47 = sphi 0, %s44
    %s48 = sphi 0, %s47
    %s64 = sphi 0, %s48
    %s72 = sphi 0, %s74
    %s75 = sphi 0, %s72
    %s76 = sphi 0, %s75
    %s92 = sphi 0, %s76
    %s100 = sphi 0, %s102
    %s103 = sphi 0, %s100
    %s104 = sphi 0, %s103
    %s120 = sphi 0, %s104
    %s128 = sphi 0, %s130
    %s131 = sphi 0, %s128
    %s132 = sphi 0, %s131
    %s148 = sphi 0, %s132
    %s156 = sphi 0, %s158
    %s159 = sphi 0, %s156
    %s160 = sphi 0, %s159
    %s176 = sphi 0, %s160
    %s180 = sphi 0, %s180
    %s182 = sphi 0, %s180
    %s183 = sphi 0, %s182
    %s197 = sphi 0, %s183
    %s201 = sphi 0, %s201
    %s203 = sphi 0, %s201
    %s204 = sphi 0, %s203
    %s218 = sphi 0, %s204
    %s226 = sphi 0, %s228
    %s229 = sphi 0, %s226
    %s230 = sphi 0, %s229
    %s246 = sphi 0, %s230
  $region4: #{gpt2_classifier_forward.8} parent=0 // loop_header_branch
    %16 = sbr.rel (%p14) target = $region8
  $region5: #{gpt2_classifier_forward.8} parent=0 // loop_body
    %s18 = ssub.s32 %s13, 1
    %s19 = ssub.s32 %s13, 2
    %s29 = sadd.s32 1, %s22
    %p30 = scmp.ge.s32.totalorder %s29, 1
    %s31 = scalar_select %p30, 0, %s29
    %s32 = sadd.s32 1, %s21
    %s33 = scalar_select %p30, %s32, %s21
    %p34 = scmp.ge.s32.totalorder %s33, 1
    %s35 = scalar_select %p34, 0, %s33
    %s36 = sadd.s32 1, %s20
    %s37 = scalar_select %p34, %s36, %s20
    %p38 = scmp.ge.s32.totalorder %s37, 2
    %s39 = scalar_select %p38, 0, %s37
    %s40 = ssub.s32 %s20, %s39
    %s41 = ssub.s32 %s21, %s35
    %s42 = sor.u32 %s40, %s41
    %p43 = scmp.eq.s32.totalorder %s42, 0
    %s45 = sadd.s32 %s44, 1
    %s46 = scalar_select %p43, %s44, %s45
    %p49 = pneg %p43
    %p50 = scmp.eq.s32.totalorder %s13, 1
    %p51 = por %p49, %p50
    %p52 = scmp.ne.s32.totalorder %s44, %s47
    %p53 = scmp.eq.s32.totalorder %s13, 0
    %p54 = por %p52, %p53
    %p55 = scmp.ne.s32.totalorder %s44, %s47
    %p56 = scmp.eq.s32.totalorder %s18, 1
    %p57 = por %p55, %p56
    %p58 = scmp.ne.s32.totalorder %s47, %s48
    %p59 = scmp.eq.s32.totalorder %s18, 0
    %p60 = por %p58, %p59
    %p61 = scmp.ne.s32.totalorder %s47, %s48
    %p62 = scmp.eq.s32.totalorder %s19, 1
    %p63 = por %p61, %p62
    %p65 = scmp.ne.s32.totalorder %s48, %s64
    %p66 = scmp.eq.s32.totalorder %s19, 0
    %p67 = por %p65, %p66
    %s68 = ssub.s32 %s20, %s39
    %s69 = ssub.s32 %s21, %s35
    %s70 = sor.u32 %s68, %s69
    %p71 = scmp.eq.s32.totalorder %s70, 0
    %s73 = sadd.s32 %s72, 1
    %s74 = scalar_select %p71, %s72, %s73
    %p77 = pneg %p71
    %p78 = scmp.eq.s32.totalorder %s13, 1
    %p79 = por %p77, %p78
    %p80 = scmp.ne.s32.totalorder %s72, %s75
    %p81 = scmp.eq.s32.totalorder %s13, 0
    %p82 = por %p80, %p81
    %p83 = scmp.ne.s32.totalorder %s72, %s75
    %p84 = scmp.eq.s32.totalorder %s18, 1
    %p85 = por %p83, %p84
    %p86 = scmp.ne.s32.totalorder %s75, %s76
    %p87 = scmp.eq.s32.totalorder %s18, 0
    %p88 = por %p86, %p87
    %p89 = scmp.ne.s32.totalorder %s75, %s76
    %p90 = scmp.eq.s32.totalorder %s19, 1
    %p91 = por %p89, %p90
    %p93 = scmp.ne.s32.totalorder %s76, %s92
    %p94 = scmp.eq.s32.totalorder %s19, 0
    %p95 = por %p93, %p94
    %s96 = ssub.s32 %s20, %s39
    %s97 = ssub.s32 %s22, %s31
    %s98 = sor.u32 %s96, %s97
    %p99 = scmp.eq.s32.totalorder %s98, 0
    %s101 = sadd.s32 %s100, 1
    %s102 = scalar_select %p99, %s100, %s101
    %p105 = pneg %p99
    %p106 = scmp.eq.s32.totalorder %s13, 1
    %p107 = por %p105, %p106
    %p108 = scmp.ne.s32.totalorder %s100, %s103
    %p109 = scmp.eq.s32.totalorder %s13, 0
    %p110 = por %p108, %p109
    %p111 = scmp.ne.s32.totalorder %s100, %s103
    %p112 = scmp.eq.s32.totalorder %s18, 1
    %p113 = por %p111, %p112
    %p114 = scmp.ne.s32.totalorder %s103, %s104
    %p115 = scmp.eq.s32.totalorder %s18, 0
    %p116 = por %p114, %p115
    %p117 = scmp.ne.s32.totalorder %s103, %s104
    %p118 = scmp.eq.s32.totalorder %s19, 1
    %p119 = por %p117, %p118
    %p121 = scmp.ne.s32.totalorder %s104, %s120
    %p122 = scmp.eq.s32.totalorder %s19, 0
    %p123 = por %p121, %p122
    %s124 = ssub.s32 %s20, %s39
    %s125 = ssub.s32 %s22, %s31
    %s126 = sor.u32 %s124, %s125
    %p127 = scmp.eq.s32.totalorder %s126, 0
    %s129 = sadd.s32 %s128, 1
    %s130 = scalar_select %p127, %s128, %s129
    %p133 = pneg %p127
    %p134 = scmp.eq.s32.totalorder %s13, 1
    %p135 = por %p133, %p134
    %p136 = scmp.ne.s32.totalorder %s128, %s131
    %p137 = scmp.eq.s32.totalorder %s13, 0
    %p138 = por %p136, %p137
    %p139 = scmp.ne.s32.totalorder %s128, %s131
    %p140 = scmp.eq.s32.totalorder %s18, 1
    %p141 = por %p139, %p140
    %p142 = scmp.ne.s32.totalorder %s131, %s132
    %p143 = scmp.eq.s32.totalorder %s18, 0
    %p144 = por %p142, %p143
    %p145 = scmp.ne.s32.totalorder %s131, %s132
    %p146 = scmp.eq.s32.totalorder %s19, 1
    %p147 = por %p145, %p146
    %p149 = scmp.ne.s32.totalorder %s132, %s148
    %p150 = scmp.eq.s32.totalorder %s19, 0
    %p151 = por %p149, %p150
    %s152 = ssub.s32 %s20, %s39
    %s153 = ssub.s32 %s22, %s31
    %s154 = sor.u32 %s152, %s153
    %p155 = scmp.eq.s32.totalorder %s154, 0
    %s157 = sadd.s32 %s156, 1
    %s158 = scalar_select %p155, %s156, %s157
    %p161 = pneg %p155
    %p162 = scmp.eq.s32.totalorder %s13, 1
    %p163 = por %p161, %p162
    %p164 = scmp.ne.s32.totalorder %s156, %s159
    %p165 = scmp.eq.s32.totalorder %s13, 0
    %p166 = por %p164, %p165
    %p167 = scmp.ne.s32.totalorder %s156, %s159
    %p168 = scmp.eq.s32.totalorder %s18, 1
    %p169 = por %p167, %p168
    %p170 = scmp.ne.s32.totalorder %s159, %s160
    %p171 = scmp.eq.s32.totalorder %s18, 0
    %p172 = por %p170, %p171
    %p173 = scmp.ne.s32.totalorder %s159, %s160
    %p174 = scmp.eq.s32.totalorder %s19, 1
    %p175 = por %p173, %p174
    %p177 = scmp.ne.s32.totalorder %s160, %s176
    %p178 = scmp.eq.s32.totalorder %s19, 0
    %p179 = por %p177, %p178
    %s181 = sadd.s32 %s180, 1
    %p184 = scmp.eq.s32.totalorder %s13, 1
    %p185 = scmp.ne.s32.totalorder %s180, %s182
    %p186 = scmp.eq.s32.totalorder %s13, 0
    %p187 = por %p185, %p186
    %p188 = scmp.ne.s32.totalorder %s180, %s182
    %p189 = scmp.eq.s32.totalorder %s18, 1
    %p190 = por %p188, %p189
    %p191 = scmp.ne.s32.totalorder %s182, %s183
    %p192 = scmp.eq.s32.totalorder %s18, 0
    %p193 = por %p191, %p192
    %p194 = scmp.ne.s32.totalorder %s182, %s183
    %p195 = scmp.eq.s32.totalorder %s19, 1
    %p196 = por %p194, %p195
    %p198 = scmp.ne.s32.totalorder %s183, %s197
    %p199 = scmp.eq.s32.totalorder %s19, 0
    %p200 = por %p198, %p199
    %s202 = sadd.s32 %s201, 1
    %p205 = scmp.eq.s32.totalorder %s13, 1
    %p206 = scmp.ne.s32.totalorder %s201, %s203
    %p207 = scmp.eq.s32.totalorder %s13, 0
    %p208 = por %p206, %p207
    %p209 = scmp.ne.s32.totalorder %s201, %s203
    %p210 = scmp.eq.s32.totalorder %s18, 1
    %p211 = por %p209, %p210
    %p212 = scmp.ne.s32.totalorder %s203, %s204
    %p213 = scmp.eq.s32.totalorder %s18, 0
    %p214 = por %p212, %p213
    %p215 = scmp.ne.s32.totalorder %s203, %s204
    %p216 = scmp.eq.s32.totalorder %s19, 1
    %p217 = por %p215, %p216
    %p219 = scmp.ne.s32.totalorder %s204, %s218
    %p220 = scmp.eq.s32.totalorder %s19, 0
    %p221 = por %p219, %p220
    %s222 = ssub.s32 %s20, %s39
    %s223 = ssub.s32 %s21, %s35
    %s224 = sor.u32 %s222, %s223
    %p225 = scmp.eq.s32.totalorder %s224, 0
    %s227 = sadd.s32 %s226, 1
    %s228 = scalar_select %p225, %s226, %s227
    %p231 = pneg %p225
    %p232 = scmp.eq.s32.totalorder %s13, 1
    %p233 = por %p231, %p232
    %p234 = scmp.ne.s32.totalorder %s226, %s229
    %p235 = scmp.eq.s32.totalorder %s13, 0
    %p236 = por %p234, %p235
    %p237 = scmp.ne.s32.totalorder %s226, %s229
    %p238 = scmp.eq.s32.totalorder %s18, 1
    %p239 = por %p237, %p238
    %p240 = scmp.ne.s32.totalorder %s229, %s230
    %p241 = scmp.eq.s32.totalorder %s18, 0
    %p242 = por %p240, %p241
    %p243 = scmp.ne.s32.totalorder %s229, %s230
    %p244 = scmp.eq.s32.totalorder %s19, 1
    %p245 = por %p243, %p244
    %p247 = scmp.ne.s32.totalorder %s230, %s246
    %p248 = scmp.eq.s32.totalorder %s19, 0
    %p249 = por %p247, %p248
    %p250 = scmp.le.s32.totalorder 1, %s13
    %p251 = scmp.lt.s32.totalorder %s13, 3
    %p252 = pnand %p250, %p251
    %p253 = pneg %p252
    // Predicated region
    $region9: #{gpt2_classifier_forward.8} parent=5 // pred_check
      _
    $region10: #{gpt2_classifier_forward.8} parent=5 // pred_check_branch
      %255 = sbr.rel (%p252) target = $region12
    $region11: #{gpt2_classifier_forward.8} parent=5 // pred_region
      %s256 = ssub.s32 %s13, 1
      // Predicated region
      $region13: #{gpt2_classifier_forward.8} parent=11 // pred_check
        %p257 = pneg %p193
      $region14: #{gpt2_classifier_forward.8} parent=11 // pred_check_branch
        %259 = sbr.rel (%p257) target = $region16
      $region15: #{gpt2_classifier_forward.8} parent=11 // pred_region
        _
      $region16: #{gpt2_classifier_forward.8} parent=11 // pred_fallthru
        _
      // Predicated region
      $region17: #{gpt2_classifier_forward.8} parent=11 // pred_check
        %p260 = pneg %p214
      $region18: #{gpt2_classifier_forward.8} parent=11 // pred_check_branch
        %262 = sbr.rel (%p260) target = $region20
      $region19: #{gpt2_classifier_forward.8} parent=11 // pred_region
        _
      $region20: #{gpt2_classifier_forward.8} parent=11 // pred_fallthru
        _
    $region12: #{gpt2_classifier_forward.8} parent=5 // pred_fallthru
      _
    %p263 = scmp.lt.s32.totalorder %s13, 2
    // Predicated region
    $region21: #{gpt2_classifier_forward.8} parent=5 // pred_check
      %p264 = pneg %p263
    $region22: #{gpt2_classifier_forward.8} parent=5 // pred_check_branch
      %266 = sbr.rel (%p264) target = $region24
    $region23: #{gpt2_classifier_forward.8} parent=5 // pred_region
      // Predicated region
      $region25: #{gpt2_classifier_forward.8} parent=23 // pred_check
        %p267 = pneg %p54
      $region26: #{gpt2_classifier_forward.8} parent=23 // pred_check_branch
        %269 = sbr.rel (%p267) target = $region28
      $region27: #{gpt2_classifier_forward.8} parent=23 // pred_region
        %p270 = scmp.lt.s32.totalorder %s20, 1
        %s271 = scalar_select %p270, %s20, 1
        %p272 = scmp.lt.s32.totalorder %s21, 0
        %s273 = scalar_select %p272, %s21, 0
        %s274 = sadd.s32 %s273, %s271
        %s275 = smul.addr %s274, 4
        %s276 = scalar_lea.vmem %s0, %s275
      $region28: #{gpt2_classifier_forward.8} parent=23 // pred_fallthru
        _
      // Predicated region
      $region29: #{gpt2_classifier_forward.8} parent=23 // pred_check
        %p277 = pneg %p82
      $region30: #{gpt2_classifier_forward.8} parent=23 // pred_check_branch
        %279 = sbr.rel (%p277) target = $region32
      $region31: #{gpt2_classifier_forward.8} parent=23 // pred_region
        %p280 = scmp.lt.s32.totalorder %s20, 1
        %s281 = scalar_select %p280, %s20, 1
        %p282 = scmp.lt.s32.totalorder %s21, 0
        %s283 = scalar_select %p282, %s21, 0
        %s284 = sadd.s32 %s283, %s281
        %s285 = smul.addr %s284, 4
        %s286 = scalar_lea.vmem %s1, %s285
      $region32: #{gpt2_classifier_forward.8} parent=23 // pred_fallthru
        _
      // Predicated region
      $region33: #{gpt2_classifier_forward.8} parent=23 // pred_check
        %p287 = pneg %p110
      $region34: #{gpt2_classifier_forward.8} parent=23 // pred_check_branch
        %289 = sbr.rel (%p287) target = $region36
      $region35: #{gpt2_classifier_forward.8} parent=23 // pred_region
        %p290 = scmp.lt.s32.totalorder %s20, 1
        %s291 = scalar_select %p290, %s20, 1
        %p292 = scmp.lt.s32.totalorder %s22, 0
        %s293 = scalar_select %p292, %s22, 0
        %s294 = sadd.s32 %s293, %s291
        %s295 = smul.addr %s294, 4
        %s296 = scalar_lea.vmem %s2, %s295
      $region36: #{gpt2_classifier_forward.8} parent=23 // pred_fallthru
        _
      // Predicated region
      $region37: #{gpt2_classifier_forward.8} parent=23 // pred_check
        %p297 = pneg %p138
      $region38: #{gpt2_classifier_forward.8} parent=23 // pred_check_branch
        %299 = sbr.rel (%p297) target = $region40
      $region39: #{gpt2_classifier_forward.8} parent=23 // pred_region
        %p300 = scmp.lt.s32.totalorder %s20, 1
        %s301 = scalar_select %p300, %s20, 1
        %p302 = scmp.lt.s32.totalorder %s22, 0
        %s303 = scalar_select %p302, %s22, 0
        %s304 = sadd.s32 %s303, %s301
        %s305 = smul.addr %s304, 4
        %s306 = scalar_lea.vmem %s3, %s305
      $region40: #{gpt2_classifier_forward.8} parent=23 // pred_fallthru
        _
      // Predicated region
      $region41: #{gpt2_classifier_forward.8} parent=23 // pred_check
        %p307 = pneg %p166
      $region42: #{gpt2_classifier_forward.8} parent=23 // pred_check_branch
        %309 = sbr.rel (%p307) target = $region44
      $region43: #{gpt2_classifier_forward.8} parent=23 // pred_region
        %p310 = scmp.lt.s32.totalorder %s20, 1
        %s311 = scalar_select %p310, %s20, 1
        %p312 = scmp.lt.s32.totalorder %s22, 0
        %s313 = scalar_select %p312, %s22, 0
        %s314 = sadd.s32 %s313, %s311
        %s315 = scalar_lea.vmem %s4, %s314
      $region44: #{gpt2_classifier_forward.8} parent=23 // pred_fallthru
        _
    $region24: #{gpt2_classifier_forward.8} parent=5 // pred_fallthru
      _
    %p316 = scmp.le.s32.totalorder 1, %s13
    %p317 = scmp.lt.s32.totalorder %s13, 3
    %p318 = pnand %p316, %p317
    %p319 = pneg %p318
    // Predicated region
    $region45: #{gpt2_classifier_forward.8} parent=5 // pred_check
      _
    $region46: #{gpt2_classifier_forward.8} parent=5 // pred_check_branch
      %321 = sbr.rel (%p318) target = $region48
    $region47: #{gpt2_classifier_forward.8} parent=5 // pred_region
      %s322 = ssub.s32 %s13, 1
      %p323 = scmp.lt.s32.totalorder %s23, 1
      %s324 = scalar_select %p323, %s23, 1
      %p325 = scmp.lt.s32.totalorder %s24, 0
      %s326 = scalar_select %p325, %s24, 0
      %s327 = sadd.s32 %s326, %s324
      %s328 = smul.addr %s327, 4
      %s329 = scalar_lea.vmem %s0, %s328
      %p330 = pneg %p60
      %p331 = pneg %p57
      %p332 = scmp.lt.s32.totalorder %s23, 1
      %s333 = scalar_select %p332, %s23, 1
      %p334 = scmp.lt.s32.totalorder %s24, 0
      %s335 = scalar_select %p334, %s24, 0
      %s336 = sadd.s32 %s335, %s333
      %s337 = smul.addr %s336, 4
      %s338 = scalar_lea.vmem %s1, %s337
      %p339 = pneg %p88
      %p340 = pneg %p85
      %p341 = scmp.lt.s32.totalorder %s23, 1
      %s342 = scalar_select %p341, %s23, 1
      %p343 = scmp.lt.s32.totalorder %s25, 0
      %s344 = scalar_select %p343, %s25, 0
      %s345 = sadd.s32 %s344, %s342
      %s346 = smul.addr %s345, 4
      %s347 = scalar_lea.vmem %s2, %s346
      %p348 = pneg %p116
      %p349 = pneg %p113
      %p350 = scmp.lt.s32.totalorder %s23, 1
      %s351 = scalar_select %p350, %s23, 1
      %p352 = scmp.lt.s32.totalorder %s25, 0
      %s353 = scalar_select %p352, %s25, 0
      %s354 = sadd.s32 %s353, %s351
      %s355 = smul.addr %s354, 4
      %s356 = scalar_lea.vmem %s3, %s355
      %p357 = pneg %p144
      %p358 = pneg %p141
      %p359 = scmp.lt.s32.totalorder %s23, 1
      %s360 = scalar_select %p359, %s23, 1
      %p361 = scmp.lt.s32.totalorder %s25, 0
      %s362 = scalar_select %p361, %s25, 0
      %s363 = sadd.s32 %s362, %s360
      %s364 = scalar_lea.vmem %s4, %s363
      %p365 = pneg %p172
      %p366 = pneg %p169
      %p367 = pneg %p193
      %p368 = pneg %p190
      %p369 = pneg %p214
      %p370 = pneg %p211
      %p371 = pneg %p242
      %p372 = pneg %p239
      %p373 = scmp.lt.s32.totalorder %s23, 1
      %s374 = scalar_select %p373, %s23, 1
      %p375 = scmp.lt.s32.totalorder %s24, 0
      %s376 = scalar_select %p375, %s24, 0
      %s377 = sadd.s32 %s376, %s374
      %s378 = smul.addr %s377, 4
      %s379 = scalar_lea.vmem %s7, %s378
      %p380 = scmp.lt.s32.totalorder %s23, 1
      %s381 = scalar_select %p380, %s23, 1
      %p382 = scmp.lt.s32.totalorder %s24, 0
      %s383 = scalar_select %p382, %s24, 0
      %s384 = sadd.s32 %s383, %s381
      %s385 = smul.addr %s384, 4
      %s386 = scalar_lea.vmem %s0, %s385
      %p387 = scmp.lt.s32.totalorder %s23, 1
      %s388 = scalar_select %p387, %s23, 1
      %p389 = scmp.lt.s32.totalorder %s24, 0
      %s390 = scalar_select %p389, %s24, 0
      %s391 = sadd.s32 %s390, %s388
      %s392 = smul.addr %s391, 4
      %s393 = scalar_lea.vmem %s1, %s392
      %p394 = scmp.lt.s32.totalorder %s23, 1
      %s395 = scalar_select %p394, %s23, 1
      %p396 = scmp.lt.s32.totalorder %s25, 0
      %s397 = scalar_select %p396, %s25, 0
      %s398 = sadd.s32 %s397, %s395
      %s399 = smul.addr %s398, 4
      %s400 = scalar_lea.vmem %s2, %s399
      %p401 = scmp.lt.s32.totalorder %s23, 1
      %s402 = scalar_select %p401, %s23, 1
      %p403 = scmp.lt.s32.totalorder %s25, 0
      %s404 = scalar_select %p403, %s25, 0
      %s405 = sadd.s32 %s404, %s402
      %s406 = smul.addr %s405, 4
      %s407 = scalar_lea.vmem %s3, %s406
      %p408 = scmp.lt.s32.totalorder %s23, 1
      %s409 = scalar_select %p408, %s23, 1
      %p410 = scmp.lt.s32.totalorder %s25, 0
      %s411 = scalar_select %p410, %s25, 0
      %s412 = sadd.s32 %s411, %s409
      %s413 = scalar_lea.vmem %s4, %s412
      %p414 = scmp.lt.s32.totalorder %s23, 1
      %s415 = scalar_select %p414, %s23, 1
      %p416 = scmp.lt.s32.totalorder %s24, 0
      %s417 = scalar_select %p416, %s24, 0
      %s418 = sadd.s32 %s417, %s415
      %s419 = smul.addr %s418, 4
      %s420 = scalar_lea.vmem %s7, %s419
      %p422 = scmp.eq.s32.totalorder %s25, 0
      // Predicated region
      $region49: #{gpt2_classifier_forward.8} parent=47 // pred_check
        %p423 = pneg %p422
      $region50: #{gpt2_classifier_forward.8} parent=47 // pred_check_branch
        %425 = sbr.rel (%p423) target = $region52
      $region51: #{gpt2_classifier_forward.8} parent=47 // pred_region
        %vm426 = vcmask 7168
        %427 = vst.msk [vmem:[#allocation2] sm:$0xff] %vm426, -1e+30
        %428 = vst.msk [vmem:[#allocation2 + $0x8] sm:$0xff] %vm426, -1e+30
        %429 = vst.msk [vmem:[#allocation2 + $0x10] sm:$0xff] %vm426, -1e+30
        %430 = vst.msk [vmem:[#allocation2 + $0x18] sm:$0xff] %vm426, -1e+30
        %431 = vst.msk [vmem:[#allocation3] sm:$0xff] %vm426, 0.0
        %432 = vst.msk [vmem:[#allocation3 + $0x8] sm:$0xff] %vm426, 0.0
        %433 = vst.msk [vmem:[#allocation3 + $0x10] sm:$0xff] %vm426, 0.0
        %434 = vst.msk [vmem:[#allocation3 + $0x18] sm:$0xff] %vm426, 0.0
        %vm435 = vcmask 64512
        %436 = vst.msk [vmem:[#allocation4] sm:$0xff] %vm435, 0.0
        %437 = vst.msk [vmem:[#allocation4 + $0x8] sm:$0xff] %vm435, 0.0
        %438 = vst.msk [vmem:[#allocation4 + $0x10] sm:$0xff] %vm435, 0.0
        %439 = vst.msk [vmem:[#allocation4 + $0x18] sm:$0xff] %vm435, 0.0
      $region52: #{gpt2_classifier_forward.8} parent=47 // pred_fallthru
        _
      %v440 = vld [vmem:[%s393] sm:$0xf]
      %v441 = vld [vmem:[%s400] sm:$0xf]
      %v442 = vld [vmem:[%s407] sm:$0xf]
      %v443 = vlaneseq
      %v444 = vshrl.u32 %v443, 7
      %s445 = smul.u32 %s24, 8
      %v446 = vstv %s445
      %v447 = vadd.s32 %v444, %v446
      %v448 = vlaneseq
      %v449 = vand.u32 %v448, 127
      %s450 = smul.u32 %s25, 8
      %v451 = vstv %s450
      %v452 = vadd.s32 %v449, %v451
      %vm453 = vcmp.le.s32.totalorder %v452, %v447
      %v454 = vld [vmem:[%s413] sm:$0x1]
      %vm455 = vcmp.gt.f32.partialorder %v454, 0.5
      %v456 = vsel %vm455, 1, 0
      %v457 = vperm.slane %v456, 0
      %vm458 = vcmp.eq.s32.totalorder %v457, 1
      %vm459 = vmand %vm453, %vm458
      %vm460 = vcmask 64512
      %v462 = vsel %vm460, %v440, 0
      %v465 = vsel %vm460, %v441, 0
      %467 = vmatpush.bf16.xpose.msra.mxu0 0
      %468 = vmatpush.bf16.xpose.msra.mxu0 0
      %469 = vmatpush.bf16.xpose.msra.mxu0 0
      %470 = vmatpush.bf16.xpose.msra.mxu0 0
      %471 = vmatpush.bf16.xpose.msra.mxu0 0
      %472 = vmatpush.bf16.xpose.msra.mxu0 0
      %473 = vmatpush.bf16.xpose.msra.mxu0 0
      %474 = vmatpush.bf16.xpose.msra.mxu0 %v465
      %475 = vmatmul.bf16.gmra.mxu0 %v462
      %v476 = vpop.f32.mrf.mxu0
      %v477 = vadd.f32 0.0, %v476
      %v478 = vpop.f32.mrf.mxu0
      %479 = vdwg.mxu0
      %v480 = vsel %vm459, %v477, -1e+09
      %v481 = vld [vmem:[#allocation2] sm:$0xff]
      %v482 = vsel %vm460, %v480, -inf
      %483 = vmax.xlane.f32.xlu0 %v482
      %v484 = vpop.xlane.xlu0 %483
      %v485 = vmax.f32 %v481, %v484
      %v486 = vsub.f32 %v481, %v485
      %v487 = vmul.f32 %v486, 1.442695
      %v488 = vpow.pop %v487
      %490 = vset.pattern.permute.xlu0 0
      %491 = vperm.xlu0 %490, %v485
      %v492 = vpop.permute.xlu0 %491
      %v494 = vsub.f32 %v480, %v492
      %v495 = vmul.f32 %v494, 1.442695
      %v496 = vpow.pop %v495
      %v497 = vld [vmem:[#allocation3] sm:$0xff]
      %v498 = vmul.f32 %v488, %v497
      %v499 = vsel %vm460, %v496, 0.0
      %500 = vadd.xlane.f32.xlu0 %v499
      %v501 = vpop.xlane.xlu0 %500
      %v502 = vadd.f32 %v498, %v501
      %vm503 = vcmask 7168
      %504 = vst.msk [vmem:[#allocation3] sm:$0xff] %vm503, %v502
      %v505 = vld [vmem:[#allocation4] sm:$0xff]
      %507 = vset.pattern.permute.xlu0 0
      %508 = vperm.xlu0 %507, %v488
      %v509 = vpop.permute.xlu0 %508
      %v511 = vmul.f32 %v509, %v505
      %v512 = vpack.c.bf16 %v496, %v496
      %v514 = vsel %vm460, %v512, 0
      %vm516 = vcmask 1043456
      %v518 = vsel %vm516, %v442, 0
      %520 = vmatpush.bf16.msra.mxu0 0
      %521 = vmatpush.bf16.msra.mxu0 0
      %522 = vmatpush.bf16.msra.mxu0 0
      %523 = vmatpush.bf16.msra.mxu0 0
      %524 = vmatpush.bf16.msra.mxu0 0
      %525 = vmatpush.bf16.msra.mxu0 0
      %526 = vmatpush.bf16.msra.mxu0 0
      %527 = vmatpush.bf16.msra.mxu0 %v518
      %528 = vmatmul.bf16.gmra.mxu0 %v514
      %v529 = vpop.f32.mrf.mxu0
      %v530 = vadd.f32 0.0, %v529
      %v531 = vpop.f32.mrf.mxu0
      %532 = vdwg.mxu0
      %v533 = vadd.f32 %v511, %v530
      %534 = vst.msk [vmem:[#allocation4] sm:$0xff] %vm460, %v533
      %535 = vst.msk [vmem:[#allocation2] sm:$0xff] %vm503, %v485
      %v537 = vunpack.c.l.b16 %v440
      %v538 = vpack.c.b16 %v537, %v537
      %539 = vrot.lane.b32.xlu0 %v538, 120
      %v540 = vpop.permute.xlu0 %539
      %v542 = vunpack.c.l.b16 %v441
      %v543 = vpack.c.b16 %v542, %v542
      %544 = vrot.lane.b32.xlu0 %v543, 120
      %v545 = vpop.permute.xlu0 %544
      %v547 = vsel %vm460, %v540, 0
      %v550 = vsel %vm460, %v545, 0
      %552 = vmatpush.bf16.xpose.msra.mxu0 0
      %553 = vmatpush.bf16.xpose.msra.mxu0 0
      %554 = vmatpush.bf16.xpose.msra.mxu0 0
      %555 = vmatpush.bf16.xpose.msra.mxu0 0
      %556 = vmatpush.bf16.xpose.msra.mxu0 0
      %557 = vmatpush.bf16.xpose.msra.mxu0 0
      %558 = vmatpush.bf16.xpose.msra.mxu0 0
      %559 = vmatpush.bf16.xpose.msra.mxu0 %v550
      %560 = vmatmul.bf16.gmra.mxu0 %v547
      %v561 = vpop.f32.mrf.mxu0
      %v562 = vadd.f32 0.0, %v561
      %v563 = vpop.f32.mrf.mxu0
      %564 = vdwg.mxu0
      %v565 = vsel %vm459, %v562, -1e+09
      %s566 = scalar_lea.vmem [#allocation2], 8
      %v567 = vld [vmem:[%s566] sm:$0xff]
      %v568 = vsel %vm460, %v565, -inf
      %569 = vmax.xlane.f32.xlu0 %v568
      %v570 = vpop.xlane.xlu0 %569
      %v571 = vmax.f32 %v567, %v570
      %v572 = vsub.f32 %v567, %v571
      %v573 = vmul.f32 %v572, 1.442695
      %v574 = vpow.pop %v573
      %576 = vset.pattern.permute.xlu0 0
      %577 = vperm.xlu0 %576, %v571
      %v578 = vpop.permute.xlu0 %577
      %v580 = vsub.f32 %v565, %v578
      %v581 = vmul.f32 %v580, 1.442695
      %v582 = vpow.pop %v581
      %s583 = scalar_lea.vmem [#allocation3], 8
      %v584 = vld [vmem:[%s583] sm:$0xff]
      %v585 = vmul.f32 %v574, %v584
      %v586 = vsel %vm460, %v582, 0.0
      %587 = vadd.xlane.f32.xlu0 %v586
      %v588 = vpop.xlane.xlu0 %587
      %v589 = vadd.f32 %v585, %v588
      %590 = vst.msk [vmem:[%s583] sm:$0xff] %vm503, %v589
      %s591 = scalar_lea.vmem [#allocation4], 8
      %v592 = vld [vmem:[%s591] sm:$0xff]
      %594 = vset.pattern.permute.xlu0 0
      %595 = vperm.xlu0 %594, %v574
      %v596 = vpop.permute.xlu0 %595
      %v598 = vmul.f32 %v596, %v592
      %v599 = vpack.c.bf16 %v582, %v582
      %v601 = vunpack.c.l.b16 %v442
      %v602 = vpack.c.b16 %v601, %v601
      %603 = vrot.lane.b32.xlu0 %v602, 120
      %v604 = vpop.permute.xlu0 %603
      %v606 = vsel %vm460, %v599, 0
      %v609 = vsel %vm516, %v604, 0
      %611 = vmatpush.bf16.msra.mxu0 0
      %612 = vmatpush.bf16.msra.mxu0 0
      %613 = vmatpush.bf16.msra.mxu0 0
      %614 = vmatpush.bf16.msra.mxu0 0
      %615 = vmatpush.bf16.msra.mxu0 0
      %616 = vmatpush.bf16.msra.mxu0 0
      %617 = vmatpush.bf16.msra.mxu0 0
      %618 = vmatpush.bf16.msra.mxu0 %v609
      %619 = vmatmul.bf16.gmra.mxu0 %v606
      %v620 = vpop.f32.mrf.mxu0
      %v621 = vadd.f32 0.0, %v620
      %v622 = vpop.f32.mrf.mxu0
      %623 = vdwg.mxu0
      %v624 = vadd.f32 %v598, %v621
      %625 = vst.msk [vmem:[%s591] sm:$0xff] %vm460, %v624
      %626 = vst.msk [vmem:[%s566] sm:$0xff] %vm503, %v571
      %627 = vrot.lane.b32.xlu0 %v538, 112
      %v628 = vpop.permute.xlu0 %627
      %629 = vrot.lane.b32.xlu0 %v543, 112
      %v630 = vpop.permute.xlu0 %629
      %v632 = vsel %vm460, %v628, 0
      %v635 = vsel %vm460, %v630, 0
      %637 = vmatpush.bf16.xpose.msra.mxu0 0
      %638 = vmatpush.bf16.xpose.msra.mxu0 0
      %639 = vmatpush.bf16.xpose.msra.mxu0 0
      %640 = vmatpush.bf16.xpose.msra.mxu0 0
      %641 = vmatpush.bf16.xpose.msra.mxu0 0
      %642 = vmatpush.bf16.xpose.msra.mxu0 0
      %643 = vmatpush.bf16.xpose.msra.mxu0 0
      %644 = vmatpush.bf16.xpose.msra.mxu0 %v635
      %645 = vmatmul.bf16.gmra.mxu0 %v632
      %v646 = vpop.f32.mrf.mxu0
      %v647 = vadd.f32 0.0, %v646
      %v648 = vpop.f32.mrf.mxu0
      %649 = vdwg.mxu0
      %v650 = vsel %vm459, %v647, -1e+09
      %s651 = scalar_lea.vmem [#allocation2], 16
      %v652 = vld [vmem:[%s651] sm:$0xff]
      %v653 = vsel %vm460, %v650, -inf
      %654 = vmax.xlane.f32.xlu0 %v653
      %v655 = vpop.xlane.xlu0 %654
      %v656 = vmax.f32 %v652, %v655
      %v657 = vsub.f32 %v652, %v656
      %v658 = vmul.f32 %v657, 1.442695
      %v659 = vpow.pop %v658
      %661 = vset.pattern.permute.xlu0 0
      %662 = vperm.xlu0 %661, %v656
      %v663 = vpop.permute.xlu0 %662
      %v665 = vsub.f32 %v650, %v663
      %v666 = vmul.f32 %v665, 1.442695
      %v667 = vpow.pop %v666
      %s668 = scalar_lea.vmem [#allocation3], 16
      %v669 = vld [vmem:[%s668] sm:$0xff]
      %v670 = vmul.f32 %v659, %v669
      %v671 = vsel %vm460, %v667, 0.0
      %672 = vadd.xlane.f32.xlu0 %v671
      %v673 = vpop.xlane.xlu0 %672
      %v674 = vadd.f32 %v670, %v673
      %675 = vst.msk [vmem:[%s668] sm:$0xff] %vm503, %v674
      %s676 = scalar_lea.vmem [#allocation4], 16
      %v677 = vld [vmem:[%s676] sm:$0xff]
      %679 = vset.pattern.permute.xlu0 0
      %680 = vperm.xlu0 %679, %v659
      %v681 = vpop.permute.xlu0 %680
      %v683 = vmul.f32 %v681, %v677
      %v684 = vpack.c.bf16 %v667, %v667
      %685 = vrot.lane.b32.xlu0 %v602, 112
      %v686 = vpop.permute.xlu0 %685
      %v688 = vsel %vm460, %v684, 0
      %v691 = vsel %vm516, %v686, 0
      %693 = vmatpush.bf16.msra.mxu0 0
      %694 = vmatpush.bf16.msra.mxu0 0
      %695 = vmatpush.bf16.msra.mxu0 0
      %696 = vmatpush.bf16.msra.mxu0 0
      %697 = vmatpush.bf16.msra.mxu0 0
      %698 = vmatpush.bf16.msra.mxu0 0
      %699 = vmatpush.bf16.msra.mxu0 0
      %700 = vmatpush.bf16.msra.mxu0 %v691
      %701 = vmatmul.bf16.gmra.mxu0 %v688
      %v702 = vpop.f32.mrf.mxu0
      %v703 = vadd.f32 0.0, %v702
      %v704 = vpop.f32.mrf.mxu0
      %705 = vdwg.mxu0
      %v706 = vadd.f32 %v683, %v703
      %707 = vst.msk [vmem:[%s676] sm:$0xff] %vm460, %v706
      %708 = vst.msk [vmem:[%s651] sm:$0xff] %vm503, %v656
      %709 = vrot.lane.b32.xlu0 %v538, 104
      %v710 = vpop.permute.xlu0 %709
      %711 = vrot.lane.b32.xlu0 %v543, 104
      %v712 = vpop.permute.xlu0 %711
      %v714 = vsel %vm460, %v710, 0
      %v717 = vsel %vm460, %v712, 0
      %719 = vmatpush.bf16.xpose.msra.mxu0 0
      %720 = vmatpush.bf16.xpose.msra.mxu0 0
      %721 = vmatpush.bf16.xpose.msra.mxu0 0
      %722 = vmatpush.bf16.xpose.msra.mxu0 0
      %723 = vmatpush.bf16.xpose.msra.mxu0 0
      %724 = vmatpush.bf16.xpose.msra.mxu0 0
      %725 = vmatpush.bf16.xpose.msra.mxu0 0
      %726 = vmatpush.bf16.xpose.msra.mxu0 %v717
      %727 = vmatmul.bf16.gmra.mxu0 %v714
      %v728 = vpop.f32.mrf.mxu0
      %v729 = vadd.f32 0.0, %v728
      %v730 = vpop.f32.mrf.mxu0
      %731 = vdwg.mxu0
      %v732 = vsel %vm459, %v729, -1e+09
      %s733 = scalar_lea.vmem [#allocation2], 24
      %v734 = vld [vmem:[%s733] sm:$0xff]
      %v735 = vsel %vm460, %v732, -inf
      %736 = vmax.xlane.f32.xlu0 %v735
      %v737 = vpop.xlane.xlu0 %736
      %v738 = vmax.f32 %v734, %v737
      %v739 = vsub.f32 %v734, %v738
      %v740 = vmul.f32 %v739, 1.442695
      %v741 = vpow.pop %v740
      %743 = vset.pattern.permute.xlu0 0
      %744 = vperm.xlu0 %743, %v738
      %v745 = vpop.permute.xlu0 %744
      %v747 = vsub.f32 %v732, %v745
      %v748 = vmul.f32 %v747, 1.442695
      %v749 = vpow.pop %v748
      %s750 = scalar_lea.vmem [#allocation3], 24
      %v751 = vld [vmem:[%s750] sm:$0xff]
      %v752 = vmul.f32 %v741, %v751
      %v753 = vsel %vm460, %v749, 0.0
      %754 = vadd.xlane.f32.xlu0 %v753
      %v755 = vpop.xlane.xlu0 %754
      %v756 = vadd.f32 %v752, %v755
      %757 = vst.msk [vmem:[%s750] sm:$0xff] %vm503, %v756
      %s758 = scalar_lea.vmem [#allocation4], 24
      %v759 = vld [vmem:[%s758] sm:$0xff]
      %761 = vset.pattern.permute.xlu0 0
      %762 = vperm.xlu0 %761, %v741
      %v763 = vpop.permute.xlu0 %762
      %v765 = vmul.f32 %v763, %v759
      %v766 = vpack.c.bf16 %v749, %v749
      %767 = vrot.lane.b32.xlu0 %v602, 104
      %v768 = vpop.permute.xlu0 %767
      %v770 = vsel %vm460, %v766, 0
      %v773 = vsel %vm516, %v768, 0
      %775 = vmatpush.bf16.msra.mxu0 0
      %776 = vmatpush.bf16.msra.mxu0 0
      %777 = vmatpush.bf16.msra.mxu0 0
      %778 = vmatpush.bf16.msra.mxu0 0
      %779 = vmatpush.bf16.msra.mxu0 0
      %780 = vmatpush.bf16.msra.mxu0 0
      %781 = vmatpush.bf16.msra.mxu0 0
      %782 = vmatpush.bf16.msra.mxu0 %v773
      %783 = vmatmul.bf16.gmra.mxu0 %v770
      %v784 = vpop.f32.mrf.mxu0
      %v785 = vadd.f32 0.0, %v784
      %v786 = vpop.f32.mrf.mxu0
      %787 = vdwg.mxu0
      %v788 = vadd.f32 %v765, %v785
      %789 = vst.msk [vmem:[%s758] sm:$0xff] %vm460, %v788
      %790 = vst.msk [vmem:[%s733] sm:$0xff] %vm503, %v738
      // Predicated region
      $region53: #{gpt2_classifier_forward.8} parent=47 // pred_check
        %p791 = pneg %p422
      $region54: #{gpt2_classifier_forward.8} parent=47 // pred_check_branch
        %793 = sbr.rel (%p791) target = $region56
      $region55: #{gpt2_classifier_forward.8} parent=47 // pred_region
        %v794 = vld [vmem:[#allocation4] sm:$0xff]
        %v795 = vld [vmem:[#allocation3] sm:$0xff]
        %v796 = vrcp.pop %v795
        %798 = vset.pattern.permute.xlu0 0
        %799 = vperm.xlu0 %798, %v796
        %v800 = vpop.permute.xlu0 %799
        %v802 = vmul.f32 %v794, %v800
        %v803 = vpack.c.bf16 %v802, %v802
        %v804 = vld [vmem:[%s591] sm:$0xff]
        %v805 = vld [vmem:[%s583] sm:$0xff]
        %v806 = vrcp.pop %v805
        %808 = vset.pattern.permute.xlu0 0
        %809 = vperm.xlu0 %808, %v806
        %v810 = vpop.permute.xlu0 %809
        %v812 = vmul.f32 %v804, %v810
        %v813 = vpack.c.bf16 %v812, %v812
        %v814 = vld [vmem:[%s676] sm:$0xff]
        %v815 = vld [vmem:[%s668] sm:$0xff]
        %v816 = vrcp.pop %v815
        %818 = vset.pattern.permute.xlu0 0
        %819 = vperm.xlu0 %818, %v816
        %v820 = vpop.permute.xlu0 %819
        %v822 = vmul.f32 %v814, %v820
        %v823 = vpack.c.bf16 %v822, %v822
        %v824 = vld [vmem:[%s758] sm:$0xff]
        %v825 = vld [vmem:[%s750] sm:$0xff]
        %v826 = vrcp.pop %v825
        %828 = vset.pattern.permute.xlu0 0
        %829 = vperm.xlu0 %828, %v826
        %v830 = vpop.permute.xlu0 %829
        %v832 = vmul.f32 %v824, %v830
        %v833 = vpack.c.bf16 %v832, %v832
        %v835 = vunpack.c.l.b16 %v813
        %v836 = vpack.c.b16 %v835, %v835
        %837 = vrot.lane.b32.xlu0 %v836, 8
        %v838 = vpop.permute.xlu0 %837
        %v840 = vunpack.c.l.b16 %v823
        %v841 = vpack.c.b16 %v840, %v840
        %842 = vrot.lane.b32.xlu0 %v841, 16
        %v843 = vpop.permute.xlu0 %842
        %v845 = vunpack.c.l.b16 %v833
        %v846 = vpack.c.b16 %v845, %v845
        %847 = vrot.lane.b32.xlu0 %v846, 24
        %v848 = vpop.permute.xlu0 %847
        %v851 = vsel %vm460, %v803, %v838
        %vm852 = vcmask 130048
        %v854 = vsel %vm852, %v851, %v843
        %vm855 = vcmask 195584
        %v857 = vsel %vm855, %v854, %v848
        %v858 = vld [vmem:[%s5] sm:$0xf]
        %v859 = vld [vmem:[%s5 + $0x4] sm:$0xf]
        %v860 = vld [vmem:[%s5 + $0x8] sm:$0xf]
        %v861 = vld [vmem:[%s5 + $0xc] sm:$0xf]
        %v862 = vld [vmem:[%s6] sm:$0x1]
        %v864 = vperm.slane %v862, 0
        %v870 = vunpack.c.l.b16 %v858
        %v871 = vunpack.c.l.b16 %v859
        %v872 = vunpack.c.l.b16 %v860
        %v873 = vunpack.c.l.b16 %v861
        %v874 = vpack.c.b16 %v871, %v870
        %v875 = vpack.c.b16 %v873, %v872
        %vm878 = vcmask 261120
        %v879 = vsel %vm878, %v857, 0
        %881 = vmatpush.bf16.msra.mxu0 0
        %882 = vmatpush.bf16.msra.mxu0 0
        %883 = vmatpush.bf16.msra.mxu0 0
        %884 = vmatpush.bf16.msra.mxu0 0
        %885 = vmatpush.bf16.msra.mxu0 0
        %886 = vmatpush.bf16.msra.mxu0 0
        %887 = vmatpush.bf16.msra.mxu0 %v875
        %888 = vmatpush.bf16.msra.mxu0 %v874
        %889 = vmatmul.bf16.gmra.mxu0 %v879
        %v890 = vpop.f32.mrf.mxu0
        %v891 = vadd.f32 %v864, %v890
        %v892 = vpop.f32.mrf.mxu0
        %893 = vdwg.mxu0
        %v894 = vld [vmem:[%s386] sm:$0xf]
        %v895 = vunpack.c.l.bf16 %v894
        %v896 = vadd.f32 %v895, %v891
        %v897 = vpack.c.bf16 %v896, %v896
        %vm898 = vcmask 257024
        %899 = vst.msk [vmem:[%s420] sm:$0xf] %vm898, %v897
      $region56: #{gpt2_classifier_forward.8} parent=47 // pred_fallthru
        _
      %p900 = scmp.lt.s32.totalorder %s23, 1
      %s901 = scalar_select %p900, %s23, 1
      %p902 = scmp.lt.s32.totalorder %s24, 0
      %s903 = scalar_select %p902, %s24, 0
      %s904 = sadd.s32 %s903, %s901
      %s905 = smul.addr %s904, 4
      %s906 = scalar_lea.vmem %s7, %s905
      // Predicated region
      $region57: #{gpt2_classifier_forward.8} parent=47 // pred_check
        %p907 = pneg %p239
      $region58: #{gpt2_classifier_forward.8} parent=47 // pred_check_branch
        %909 = sbr.rel (%p907) target = $region60
      $region59: #{gpt2_classifier_forward.8} parent=47 // pred_region
        _
      $region60: #{gpt2_classifier_forward.8} parent=47 // pred_fallthru
        _
    $region48: #{gpt2_classifier_forward.8} parent=5 // pred_fallthru
      _
    %p910 = scmp.le.s32.totalorder 2, %s13
    // Predicated region
    $region61: #{gpt2_classifier_forward.8} parent=5 // pred_check
      %p911 = pneg %p910
    $region62: #{gpt2_classifier_forward.8} parent=5 // pred_check_branch
      %913 = sbr.rel (%p911) target = $region64
    $region63: #{gpt2_classifier_forward.8} parent=5 // pred_region
      %s914 = ssub.s32 %s13, 2
      // Predicated region
      $region65: #{gpt2_classifier_forward.8} parent=63 // pred_check
        %p915 = pneg %p245
      $region66: #{gpt2_classifier_forward.8} parent=63 // pred_check_branch
        %917 = sbr.rel (%p915) target = $region68
      $region67: #{gpt2_classifier_forward.8} parent=63 // pred_region
        %p918 = scmp.lt.s32.totalorder %s26, 1
        %s919 = scalar_select %p918, %s26, 1
        %p920 = scmp.lt.s32.totalorder %s27, 0
        %s921 = scalar_select %p920, %s27, 0
        %s922 = sadd.s32 %s921, %s919
        %s923 = smul.addr %s922, 4
        %s924 = scalar_lea.vmem %s7, %s923
      $region68: #{gpt2_classifier_forward.8} parent=63 // pred_fallthru
        _
    $region64: #{gpt2_classifier_forward.8} parent=5 // pred_fallthru
      _
  $region6: #{gpt2_classifier_forward.8} parent=0 // loop_footer
    %s17 = sadd.s32 1, %s13
  $region7: #{gpt2_classifier_forward.8} parent=0 // loop_footer_branch
    %12 = sbr.rel target = $region3
  $region8: #{gpt2_classifier_forward.8} parent=0 // loop_exit
    _

// kernel: gpt2_classifier_forward.13
$region0: #{gpt2_classifier_forward.13}
  #allocation0 [shape = 'u32[]', space=smem, size = 0x4, offset = 0x4, fixed_abs, tag = 'smem constant byte address 0x4 - core index']
  #allocation1 [shape = 'u32[72,128]{1,0:T(1,128)}', space=vmem, size = 0x9000, scoped, tag = 'internal scratch']
  %s0 = inlined_call_operand.vmem [shape: bf16[2,256], index: 0, kind: input, shape index: {}]
  %s1 = inlined_call_operand.vmem [shape: bf16[256,128], index: 1, kind: input, shape index: {}]
  %s2 = inlined_call_operand.vmem [shape: f32[1,128], index: 2, kind: input, shape index: {}]
  %s3 = inlined_call_operand.hbm [shape: f32[2,128], index: 3, kind: output, shape index: {}]
  %s4 = sld [smem:[#allocation0]]
  $region53: #{gpt2_classifier_forward.13} parent=0
    _
  %s6 = ssub.s32 1, %s4
  %s7 = scalar_select 0, %s6, %s4
  $region1: #{gpt2_classifier_forward.13} parent=0
    #allocation2 [shape = 'u8[1024]{0}', space=vmem, size = 0x400, scoped, tag = 'output window, operand 0, single buffered']
    #allocation3 [shape = 's32[2]{0}', space=sflag, size = 0x8, scoped, tag = 'scoped memory for gpt2_classifier_forward.13']
    %8 = vsyncpa [#allocation3], 0
    loop: start=0, step=1, limit=4
    $region2: #{gpt2_classifier_forward.13} parent=1 // loop_pre_header
      _
    $region3: #{gpt2_classifier_forward.13} parent=1 // loop_header
      %s10 = sphi 0, %s14
      %p11 = scmp.ge.s32.totalorder %s10, 4
      %s20 = sphi 0, %s22
      %s23 = sphi 0, %s20
      %s24 = sphi 0, %s23
      %s40 = sphi 0, %s24
      %s46 = sphi 0, %s48
      %s49 = sphi 0, %s46
      %s50 = sphi 0, %s49
      %s66 = sphi 0, %s50
      %s70 = sphi 0, %s70
      %s72 = sphi 0, %s70
      %s73 = sphi 0, %s72
      %s87 = sphi 0, %s73
      %s91 = sphi 0, %s91
      %s93 = sphi 0, %s91
      %s94 = sphi 0, %s93
      %s108 = sphi 0, %s94
    $region4: #{gpt2_classifier_forward.13} parent=1 // loop_header_branch
      %13 = sbr.rel (%p11) target = $region8
    $region5: #{gpt2_classifier_forward.13} parent=1 // loop_body
      %s15 = ssub.s32 %s10, 1
      %s16 = ssub.s32 %s10, 2
      %s17 = sadd.s32 %s10, 1
      %s18 = ssub.s32 %s10, %s17
      %p19 = scmp.eq.s32.totalorder %s18, 0
      %s21 = sadd.s32 %s20, 1
      %s22 = scalar_select %p19, %s20, %s21
      %p25 = pneg %p19
      %p26 = scmp.eq.s32.totalorder %s10, 1
      %p27 = por %p25, %p26
      %p28 = scmp.ne.s32.totalorder %s20, %s23
      %p29 = scmp.eq.s32.totalorder %s10, 0
      %p30 = por %p28, %p29
      %p31 = scmp.ne.s32.totalorder %s20, %s23
      %p32 = scmp.eq.s32.totalorder %s15, 1
      %p33 = por %p31, %p32
      %p34 = scmp.ne.s32.totalorder %s23, %s24
      %p35 = scmp.eq.s32.totalorder %s15, 0
      %p36 = por %p34, %p35
      %p37 = scmp.ne.s32.totalorder %s23, %s24
      %p38 = scmp.eq.s32.totalorder %s16, 1
      %p39 = por %p37, %p38
      %p41 = scmp.ne.s32.totalorder %s24, %s40
      %p42 = scmp.eq.s32.totalorder %s16, 0
      %p43 = por %p41, %p42
      %s44 = ssub.s32 %s10, %s17
      %p45 = scmp.eq.s32.totalorder %s44, 0
      %s47 = sadd.s32 %s46, 1
      %s48 = scalar_select %p45, %s46, %s47
      %p51 = pneg %p45
      %p52 = scmp.eq.s32.totalorder %s10, 1
      %p53 = por %p51, %p52
      %p54 = scmp.ne.s32.totalorder %s46, %s49
      %p55 = scmp.eq.s32.totalorder %s10, 0
      %p56 = por %p54, %p55
      %p57 = scmp.ne.s32.totalorder %s46, %s49
      %p58 = scmp.eq.s32.totalorder %s15, 1
      %p59 = por %p57, %p58
      %p60 = scmp.ne.s32.totalorder %s49, %s50
      %p61 = scmp.eq.s32.totalorder %s15, 0
      %p62 = por %p60, %p61
      %p63 = scmp.ne.s32.totalorder %s49, %s50
      %p64 = scmp.eq.s32.totalorder %s16, 1
      %p65 = por %p63, %p64
      %p67 = scmp.ne.s32.totalorder %s50, %s66
      %p68 = scmp.eq.s32.totalorder %s16, 0
      %p69 = por %p67, %p68
      %s71 = sadd.s32 %s70, 1
      %p74 = scmp.eq.s32.totalorder %s10, 1
      %p75 = scmp.ne.s32.totalorder %s70, %s72
      %p76 = scmp.eq.s32.totalorder %s10, 0
      %p77 = por %p75, %p76
      %p78 = scmp.ne.s32.totalorder %s70, %s72
      %p79 = scmp.eq.s32.totalorder %s15, 1
      %p80 = por %p78, %p79
      %p81 = scmp.ne.s32.totalorder %s72, %s73
      %p82 = scmp.eq.s32.totalorder %s15, 0
      %p83 = por %p81, %p82
      %p84 = scmp.ne.s32.totalorder %s72, %s73
      %p85 = scmp.eq.s32.totalorder %s16, 1
      %p86 = por %p84, %p85
      %p88 = scmp.ne.s32.totalorder %s73, %s87
      %p89 = scmp.eq.s32.totalorder %s16, 0
      %p90 = por %p88, %p89
      %s92 = sadd.s32 %s91, 1
      %p95 = scmp.eq.s32.totalorder %s10, 1
      %p96 = scmp.ne.s32.totalorder %s91, %s93
      %p97 = scmp.eq.s32.totalorder %s10, 0
      %p98 = por %p96, %p97
      %p99 = scmp.ne.s32.totalorder %s91, %s93
      %p100 = scmp.eq.s32.totalorder %s15, 1
      %p101 = por %p99, %p100
      %p102 = scmp.ne.s32.totalorder %s93, %s94
      %p103 = scmp.eq.s32.totalorder %s15, 0
      %p104 = por %p102, %p103
      %p105 = scmp.ne.s32.totalorder %s93, %s94
      %p106 = scmp.eq.s32.totalorder %s16, 1
      %p107 = por %p105, %p106
      %p109 = scmp.ne.s32.totalorder %s94, %s108
      %p110 = scmp.eq.s32.totalorder %s16, 0
      %p111 = por %p109, %p110
      %p112 = scmp.le.s32.totalorder 1, %s10
      %p113 = scmp.lt.s32.totalorder %s10, 3
      %p114 = pnand %p112, %p113
      %p115 = pneg %p114
      // Predicated region
      $region9: #{gpt2_classifier_forward.13} parent=5 // pred_check
        _
      $region10: #{gpt2_classifier_forward.13} parent=5 // pred_check_branch
        %117 = sbr.rel (%p114) target = $region12
      $region11: #{gpt2_classifier_forward.13} parent=5 // pred_region
        %s118 = ssub.s32 %s10, 1
        // Predicated region
        $region13: #{gpt2_classifier_forward.13} parent=11 // pred_check
          %p119 = pneg %p83
        $region14: #{gpt2_classifier_forward.13} parent=11 // pred_check_branch
          %121 = sbr.rel (%p119) target = $region16
        $region15: #{gpt2_classifier_forward.13} parent=11 // pred_region
          _
        $region16: #{gpt2_classifier_forward.13} parent=11 // pred_fallthru
          _
      $region12: #{gpt2_classifier_forward.13} parent=5 // pred_fallthru
        _
      %p122 = scmp.lt.s32.totalorder %s10, 2
      // Predicated region
      $region17: #{gpt2_classifier_forward.13} parent=5 // pred_check
        %p123 = pneg %p122
      $region18: #{gpt2_classifier_forward.13} parent=5 // pred_check_branch
        %125 = sbr.rel (%p123) target = $region20
      $region19: #{gpt2_classifier_forward.13} parent=5 // pred_region
        // Predicated region
        $region21: #{gpt2_classifier_forward.13} parent=19 // pred_check
          %p126 = pneg %p30
        $region22: #{gpt2_classifier_forward.13} parent=19 // pred_check_branch
          %128 = sbr.rel (%p126) target = $region24
        $region23: #{gpt2_classifier_forward.13} parent=19 // pred_region
          %p129 = scmp.lt.s32.totalorder %s10, 1
          %s130 = scalar_select %p129, %s10, 1
          %s131 = scalar_lea.vmem %s0, %s130
        $region24: #{gpt2_classifier_forward.13} parent=19 // pred_fallthru
          _
        // Predicated region
        $region25: #{gpt2_classifier_forward.13} parent=19 // pred_check
          %p132 = pneg %p56
        $region26: #{gpt2_classifier_forward.13} parent=19 // pred_check_branch
          %134 = sbr.rel (%p132) target = $region28
        $region27: #{gpt2_classifier_forward.13} parent=19 // pred_region
          %s135 = smul.u32 16, %s10
          %p136 = scmp.lt.s32.totalorder %s135, 31
          %s137 = scalar_select %p136, %s135, 31
          %s138 = smul.addr %s137, 4
          %s139 = scalar_lea.vmem %s1, %s138
          %s140 = smul.u32 16, %s10
        $region28: #{gpt2_classifier_forward.13} parent=19 // pred_fallthru
          _
      $region20: #{gpt2_classifier_forward.13} parent=5 // pred_fallthru
        _
      %p141 = scmp.le.s32.totalorder 1, %s10
      %p142 = scmp.lt.s32.totalorder %s10, 3
      %p143 = pnand %p141, %p142
      %p144 = pneg %p143
      // Predicated region
      $region29: #{gpt2_classifier_forward.13} parent=5 // pred_check
        _
      $region30: #{gpt2_classifier_forward.13} parent=5 // pred_check_branch
        %146 = sbr.rel (%p143) target = $region32
      $region31: #{gpt2_classifier_forward.13} parent=5 // pred_region
        %s147 = ssub.s32 %s10, 1
        %p148 = scmp.lt.s32.totalorder %s15, 1
        %s149 = scalar_select %p148, %s15, 1
        %s150 = scalar_lea.vmem %s0, %s149
        %p151 = pneg %p36
        %p152 = pneg %p33
        %s153 = smul.u32 16, %s15
        %p154 = scmp.lt.s32.totalorder %s153, 31
        %s155 = scalar_select %p154, %s153, 31
        %s156 = smul.addr %s155, 4
        %s157 = scalar_lea.vmem %s1, %s156
        %p158 = pneg %p62
        %p159 = pneg %p59
        %p160 = pneg %p83
        %p161 = pneg %p80
        %p162 = pneg %p104
        %p163 = pneg %p101
        %p164 = scmp.lt.s32.totalorder %s15, 1
        %s165 = scalar_select %p164, %s15, 1
        %s166 = scalar_lea.vmem %s0, %s165
        %s167 = smul.u32 16, %s15
        %p168 = scmp.lt.s32.totalorder %s167, 31
        %s169 = scalar_select %p168, %s167, 31
        %s170 = smul.addr %s169, 4
        %s171 = scalar_lea.vmem %s1, %s170
        %s172 = smul.u32 16, %s15
        %p173 = scmp.eq.s32.totalorder %s15, 0
        // Predicated region
        $region33: #{gpt2_classifier_forward.13} parent=31 // pred_check
          %p174 = pneg %p173
        $region34: #{gpt2_classifier_forward.13} parent=31 // pred_check_branch
          %176 = sbr.rel (%p174) target = $region36
        $region35: #{gpt2_classifier_forward.13} parent=31 // pred_region
          %177 = vst [vmem:[#allocation2] sm:$0x3] 0.0
        $region36: #{gpt2_classifier_forward.13} parent=31 // pred_fallthru
          _
        %v178 = vld [vmem:[#allocation2] sm:$0x3]
        %v179 = vld [vmem:[%s166] sm:$0x1]
        %v180 = vld [vmem:[%s171] sm:$0xf]
        %v181 = vld [vmem:[%s171 + $0x4] sm:$0xf]
        %v182 = vld [vmem:[%s171 + $0x8] sm:$0xf]
        %v183 = vld [vmem:[%s171 + $0xc] sm:$0xf]
        %v184 = vld [vmem:[%s171 + $0x10] sm:$0xf]
        %v185 = vld [vmem:[%s171 + $0x14] sm:$0xf]
        %v186 = vld [vmem:[%s171 + $0x18] sm:$0xf]
        %v187 = vld [vmem:[%s171 + $0x1c] sm:$0xf]
        %v188 = vld [vmem:[%s171 + $0x20] sm:$0xf]
        %v189 = vld [vmem:[%s171 + $0x24] sm:$0xf]
        %v190 = vld [vmem:[%s171 + $0x28] sm:$0xf]
        %v191 = vld [vmem:[%s171 + $0x2c] sm:$0xf]
        %v192 = vld [vmem:[%s171 + $0x30] sm:$0xf]
        %v193 = vld [vmem:[%s171 + $0x34] sm:$0xf]
        %v194 = vld [vmem:[%s171 + $0x38] sm:$0xf]
        %v195 = vld [vmem:[%s171 + $0x3c] sm:$0xf]
        %v212 = vunpack.c.l.b16 %v180
        %v213 = vunpack.c.l.b16 %v181
        %v214 = vunpack.c.l.b16 %v182
        %v215 = vunpack.c.l.b16 %v183
        %v216 = vunpack.c.l.b16 %v184
        %v217 = vunpack.c.l.b16 %v185
        %v218 = vunpack.c.l.b16 %v186
        %v219 = vunpack.c.l.b16 %v187
        %v220 = vunpack.c.l.b16 %v188
        %v221 = vunpack.c.l.b16 %v189
        %v222 = vunpack.c.l.b16 %v190
        %v223 = vunpack.c.l.b16 %v191
        %v224 = vunpack.c.l.b16 %v192
        %v225 = vunpack.c.l.b16 %v193
        %v226 = vunpack.c.l.b16 %v194
        %v227 = vunpack.c.l.b16 %v195
        %v228 = vpack.c.b16 %v213, %v212
        %v229 = vpack.c.b16 %v215, %v214
        %v230 = vpack.c.b16 %v217, %v216
        %v231 = vpack.c.b16 %v219, %v218
        %v232 = vpack.c.b16 %v221, %v220
        %v233 = vpack.c.b16 %v223, %v222
        %v234 = vpack.c.b16 %v225, %v224
        %v235 = vpack.c.b16 %v227, %v226
        %244 = vmatpush.bf16.msra.mxu0 %v235
        %245 = vmatpush.bf16.msra.mxu0 %v234
        %246 = vmatpush.bf16.msra.mxu0 %v233
        %247 = vmatpush.bf16.msra.mxu0 %v232
        %248 = vmatpush.bf16.msra.mxu0 %v231
        %249 = vmatpush.bf16.msra.mxu0 %v230
        %250 = vmatpush.bf16.msra.mxu0 %v229
        %251 = vmatpush.bf16.msra.mxu0 %v228
        %252 = vmatmul.bf16.gmra.mxu0 %v179
        %v253 = vpop.f32.mrf.mxu0
        %v254 = vadd.f32 0.0, %v253
        %v255 = vpop.f32.mrf.mxu0
        %256 = vdwg.mxu0
        %v257 = vadd.f32 %v178, %v254
        %258 = vst [vmem:[#allocation2] sm:$0x3] %v257
        %p259 = scmp.eq.s32.totalorder %s15, 1
        // Predicated region
        $region37: #{gpt2_classifier_forward.13} parent=31 // pred_check
          %p260 = pneg %p259
        $region38: #{gpt2_classifier_forward.13} parent=31 // pred_check_branch
          %262 = sbr.rel (%p260) target = $region40
        $region39: #{gpt2_classifier_forward.13} parent=31 // pred_region
          %v263 = vld [vmem:[#allocation2] sm:$0x3]
          %v264 = vld [vmem:[%s2] sm:$0x1]
          %v266 = vperm.slane %v264, 0
          %v268 = vadd.f32 %v263, %v266
          %269 = vst [vmem:[#allocation2] sm:$0x3] %v268
        $region40: #{gpt2_classifier_forward.13} parent=31 // pred_fallthru
          _
        // Predicated region
        $region41: #{gpt2_classifier_forward.13} parent=31 // pred_check
          %p270 = pneg %p101
        $region42: #{gpt2_classifier_forward.13} parent=31 // pred_check_branch
          %272 = sbr.rel (%p270) target = $region44
        $region43: #{gpt2_classifier_forward.13} parent=31 // pred_region
          %274 = vsyncadd [#allocation3], 0
          %s276 = sshll.u32 [#allocation2], 4
          %s277 = int_to_ptr.vmem [resolvable:$true] %s276
          %s278 = sshll.u32 %s3, 4
          %s279 = int_to_ptr.hbm [resolvable:$true] %s278
          %281 = dma.vmem_to_hbm [thread:$0]  %s277, 32, %s279, [#allocation3]
        $region44: #{gpt2_classifier_forward.13} parent=31 // pred_fallthru
          _
        // Predicated region
        $region45: #{gpt2_classifier_forward.13} parent=31 // pred_check
          %p282 = pneg %p101
        $region46: #{gpt2_classifier_forward.13} parent=31 // pred_check_branch
          %284 = sbr.rel (%p282) target = $region48
        $region47: #{gpt2_classifier_forward.13} parent=31 // pred_region
          %286 = dma.done [#allocation3], 32
        $region48: #{gpt2_classifier_forward.13} parent=31 // pred_fallthru
          _
      $region32: #{gpt2_classifier_forward.13} parent=5 // pred_fallthru
        _
      %p287 = scmp.le.s32.totalorder 2, %s10
      // Predicated region
      $region49: #{gpt2_classifier_forward.13} parent=5 // pred_check
        %p288 = pneg %p287
      $region50: #{gpt2_classifier_forward.13} parent=5 // pred_check_branch
        %290 = sbr.rel (%p288) target = $region52
      $region51: #{gpt2_classifier_forward.13} parent=5 // pred_region
        %s291 = ssub.s32 %s10, 2
      $region52: #{gpt2_classifier_forward.13} parent=5 // pred_fallthru
        _
    $region6: #{gpt2_classifier_forward.13} parent=1 // loop_footer
      %s14 = sadd.s32 1, %s10
    $region7: #{gpt2_classifier_forward.13} parent=1 // loop_footer_branch
      %9 = sbr.rel target = $region3
    $region8: #{gpt2_classifier_forward.13} parent=1 // loop_exit
      _
    %292 = vsyncpa [#allocation3], 1
    %s293 = scalar_lea.sflag [#allocation3], 1
    %294 = vsyncpa %s293, 1

</llo_original>
